<compile_context>
chip_gen: v7x
topology: tpu7x:2x2x1
jax: 0.10.0
libtpu: 0.0.40
codegen_flags: <defaults>
</compile_context>

<pallas_src>
import numpy as np
import jax
import jax.numpy as jnp
from jax.experimental import pallas as pl
from jax.experimental.pallas import tpu as pltpu

EMBED_DIM = 16
NUM_HEADS = 2
HEAD_DIM = EMBED_DIM // NUM_HEADS
WINDOW = 4
TOPK = 4
LN_EPS = 1e-5     # nn.LayerNorm default
LA_EPS = 1e-6     # LinearAttention eps

F32 = jnp.float32
BF16 = jnp.bfloat16


# ---------------------------------------------------------------- kernel utils
def _softmax(x, axis, approx):
    m = jnp.max(x, axis=axis, keepdims=True)
    e = jnp.exp(x - m)
    s = jnp.sum(e, axis=axis, keepdims=True)
    if approx:
        return e * pl.reciprocal(s, approx=True)
    return e / s


def _layernorm(x, g, b):
    mu = jnp.mean(x, axis=-1, keepdims=True)
    var = jnp.mean(jnp.square(x - mu), axis=-1, keepdims=True)
    return (x - mu) * jax.lax.rsqrt(var + LN_EPS) * g + b


def _elu_plus_one(x):
    return jnp.where(x > 0, x, jnp.exp(jnp.minimum(x, 0.0)) - 1.0) + 1.0


# -------------------------------------------------------- fused per-image kernel
def fused_kernel(xs_ref, wqkv_w_ref, sel_ref, wm_w_ref, w1_w_ref, w2_w_ref,
                 vec_w_ref, wqkv_l_ref, wm_l_ref, w1_l_ref, w2_l_ref, vec_l_ref,
                 out_ref):
    C = EMBED_DIM
    HD = HEAD_DIM
    R = xs_ref.shape[1] // 2          # tokens per image (= nw * n)
    N = WINDOW * WINDOW               # tokens per window
    NW = R // N                       # windows per image
    LV = float(NW * TOPK)             # v_length of the linear-attention view

    # ------------- phase 1: per-window multi-head self-attention ------------
    xs = xs_ref[0]                    # [2R, C] f32; rows 0:R = x, R:2R = source
    xsb = xs.astype(BF16)             # hoisted bf16 cast, reused below
    x2 = xs[0:R, :]

    bq = vec_w_ref[0:1, :]; bk = vec_w_ref[1:2, :]; bv = vec_w_ref[2:3, :]
    g1w = vec_w_ref[3:4, :]; b1w = vec_w_ref[4:5, :]
    g2w = vec_w_ref[5:6, :]; b2w = vec_w_ref[6:7, :]

    # one packed [2R,C]x[C,3C] projection matmul instead of three narrow ones
    qkv = jnp.dot(xsb, wqkv_w_ref[...], preferred_element_type=F32)   # [2R, 3C]
    q2 = qkv[0:R, 0:C] + bq
    k2 = qkv[R:2 * R, C:2 * C] + bk
    v2 = qkv[R:2 * R, 2 * C:3 * C] + bv

    q3 = q2.reshape(NW, N, C).astype(BF16)
    k3 = k2.reshape(NW, N, C).astype(BF16)
    v3 = v2.reshape(NW, N, C).astype(BF16)

    # flat-embedding scores (top-k ranking path) + per-head scores;
    # head-1 unscaled score = full score - head-0 score (saves one matmul).
    s_full = jnp.einsum('wnc,wmc->wnm', q3, k3, preferred_element_type=F32)
    a0u = jnp.einsum('wnc,wmc->wnm', q3[..., 0:HD], k3[..., 0:HD],
                     preferred_element_type=F32)
    a1u = s_full - a0u

    a1 = _softmax(s_full, -1, approx=False)                       # attention_scores
    score = _softmax(a1, -1, approx=False) * _softmax(a1, -2, approx=False)

    temp = 1.0 / (HD ** 0.5)
    p0 = _softmax(a0u * temp, -1, approx=True).astype(BF16)
    p1 = _softmax(a1u * temp, -1, approx=True).astype(BF16)
    o0 = jnp.einsum('wnm,wmd->wnd', p0, v3[..., 0:HD], preferred_element_type=F32)
    o1 = jnp.einsum('wnm,wmd->wnd', p1, v3[..., HD:C], preferred_element_type=F32)

    # torch `.view(b, -1, nh*hd)` head/token interleave as two wide 2-D
    # selection matmuls (K = 2R = 128).  0/1 matrix + f32 accumulate is exact.
    r_flat = jnp.concatenate([o0, o1], axis=1).reshape(2 * R, HD).astype(BF16)
    me = jnp.dot(sel_ref[0], r_flat, preferred_element_type=F32)        # [R, HD]
    mo = jnp.dot(sel_ref[1], r_flat, preferred_element_type=F32)
    m2 = jnp.concatenate([me, mo], axis=1)                              # [R, C]

    merged = jnp.dot(m2.astype(BF16), wm_w_ref[...], preferred_element_type=F32)
    y = _layernorm(merged, g1w, b1w)
    # MLP on cat([x, y]) with W1 split -> no [R, 2C] concat materialized.
    hid = jnp.maximum(
        jnp.dot(xsb[0:R, :], w1_w_ref[0], preferred_element_type=F32)
        + jnp.dot(y.astype(BF16), w1_w_ref[1], preferred_element_type=F32), 0.0)
    y2 = _layernorm(jnp.dot(hid.astype(BF16), w2_w_ref[...],
                            preferred_element_type=F32), g2w, b2w)
    out2 = x2 + y2                                                      # window_output
    out3 = out2.reshape(NW, N, C)

    # ------------- fused top-k (dim=1) over `score` + gather ----------------
    neg = jnp.float32(-1e30)
    iota_f = jax.lax.broadcasted_iota(jnp.int32, (NW, N, N), 1).astype(F32)
    masked = score
    picks = []
    for _ in range(TOPK):
        mmax = jnp.max(masked, axis=1, keepdims=True)
        cand = jnp.where(masked == mmax, iota_f, float(N))
        pick = jnp.min(cand, axis=1, keepdims=True)       # [NW,1,N] f32-coded index
        picks.append(pick)
        masked = jnp.where(iota_f == pick, neg, masked)
    topk_idx = jnp.concatenate(picks, axis=1)             # [NW,TOPK,N]

    # torch.gather(window_output, dim=2, index=topk_idx): only the first TOPK
    # token rows participate; C masked selects, kept fully in f32 (exact).
    wo_top = out3[:, 0:TOPK, :]                           # [NW,TOPK,C]
    gat = jnp.zeros((NW, TOPK, N), F32)
    for c in range(C):
        gat = gat + jnp.where(topk_idx == float(c), wo_top[:, :, c:c + 1], 0.0)

    # ------------- phase 2: linear-attention EncoderLayer -------------------
    g1l = vec_l_ref[0:1, :]; b1l = vec_l_ref[1:2, :]
    g2l = vec_l_ref[2:3, :]; b2l = vec_l_ref[3:4, :]

    x_topk = gat.reshape(NW * TOPK, C)                    # [nw*topk, C]
    xtb = x_topk.astype(BF16)
    qkv_l = jnp.dot(xtb, wqkv_l_ref[...], preferred_element_type=F32)   # [L, 3C]
    Q = _elu_plus_one(qkv_l[:, 0:C])
    K = _elu_plus_one(qkv_l[:, C:2 * C])
    Vn = qkv_l[:, 2 * C:3 * C] * (1.0 / LV)

    heads = []
    for h in range(NUM_HEADS):
        sl = slice(h * HD, (h + 1) * HD)
        Qh, Kh, Vh = Q[:, sl], K[:, sl], Vn[:, sl]
        KV = jax.lax.dot_general(Kh.astype(BF16), Vh.astype(BF16),
                                 (((0,), (0,)), ((), ())),
                                 preferred_element_type=F32)        # [HD, HD]
        Ks = jnp.sum(Kh, axis=0, keepdims=True)                     # [1, HD]
        Z = pl.reciprocal(jnp.sum(Qh * Ks, axis=1, keepdims=True) + LA_EPS,
                          approx=True)                              # [L, 1]
        heads.append(jnp.dot(Qh.astype(BF16), KV.astype(BF16),
                             preferred_element_type=F32) * Z * LV)  # [L, HD]
    msg = jnp.concatenate(heads, axis=1)                            # [L, C]
    msg = _layernorm(jnp.dot(msg.astype(BF16), wm_l_ref[...],
                             preferred_element_type=F32), g1l, b1l)
    hid = jnp.maximum(
        jnp.dot(xtb, w1_l_ref[0], preferred_element_type=F32)
        + jnp.dot(msg.astype(BF16), w1_l_ref[1], preferred_element_type=F32), 0.0)
    msg = _layernorm(jnp.dot(hid.astype(BF16), w2_l_ref[...],
                             preferred_element_type=F32), g2l, b2l)
    wao = x_topk + msg                                              # [L, C]
    wao3 = wao.reshape(NW, TOPK, C)

    # fused mask.scatter_(1, topk_idx, wao); window_output += mask
    # (top-k rows per column are distinct, so scatter == scatter-add).
    acc = out3
    for t in range(TOPK):
        acc = acc + jnp.where(iota_f == topk_idx[:, t:t + 1, :],
                              wao3[:, t:t + 1, :], 0.0)
    out_ref[0] = acc.reshape(R, C)


def run_fused(xs, params, B, R, C):
    (wqkv_w, sel_w, wm_w, w1_w, w2_w, vec_w,
     wqkv_l, wm_l, w1_l, w2_l, vec_l) = params

    def fullspec(a):
        nd = a.ndim
        return pl.BlockSpec(a.shape, lambda i, _nd=nd: (0,) * _nd)

    in_specs = [pl.BlockSpec((1, 2 * R, C), lambda i: (i, 0, 0))]
    in_specs += [fullspec(a) for a in (wqkv_w, sel_w, wm_w, w1_w, w2_w, vec_w,
                                       wqkv_l, wm_l, w1_l, w2_l, vec_l)]
    out_specs = pl.BlockSpec((1, R, C), lambda i: (i, 0, 0))
    out_shape = jax.ShapeDtypeStruct((B, R, C), jnp.float32)

    return pl.pallas_call(
        fused_kernel,
        grid=(B,),
        in_specs=in_specs,
        out_specs=out_specs,
        out_shape=out_shape,
        compiler_params=pltpu.CompilerParams(dimension_semantics=("parallel",)),
    )(xs, wqkv_w, sel_w, wm_w, w1_w, w2_w, vec_w, wqkv_l, wm_l, w1_l, w2_l, vec_l)


# -------------------------------------------------------------- glue (JAX)
def window_partition_nchw(x, ws):
    B, C, H, W = x.shape
    x = x.reshape(B, C, H // ws, ws, W // ws, ws)
    return x.transpose(0, 2, 4, 1, 3, 5).reshape(-1, C, ws, ws)


def window_reverse_nchw(windows, ws, H, W):
    C = windows.shape[-1]
    w = jnp.swapaxes(windows, 1, 2).reshape(-1, H // ws, W // ws, C, ws, ws)
    return w.transpose(0, 3, 1, 4, 2, 5).reshape(-1, C, H, W)


@jax.jit
def window_topk_attention(x, source, params):
    B, C, H, W = x.shape
    ws = WINDOW
    n = ws * ws
    assert n == C, "module requires window_size**2 == embed_dim"
    nw = (H // ws) * (W // ws)
    R = nw * n
    Bw = B * nw

    xw = window_partition_nchw(x, ws)                          # [B*nw, C, ws, ws]
    sw = window_partition_nchw(source, ws)
    x_seq = jnp.transpose(xw.reshape(Bw, C, n), (0, 2, 1))     # [Bw, n, C]
    s_seq = jnp.transpose(sw.reshape(Bw, C, n), (0, 2, 1))
    # x tokens (rows 0:R) and source tokens (rows R:2R) per image, stacked so
    # the kernel can run a single packed qkv matmul over 128 rows.
    xs = jnp.concatenate([x_seq.reshape(B, R, C), s_seq.reshape(B, R, C)], axis=1)

    out = run_fused(xs, params, B, R, C)                       # [B, R, C]
    win = out.reshape(Bw, n, C)
    return window_reverse_nchw(win, ws, H, W)


# -------------------------------------------------------------- param init
def init_params(key, nw):
    C = EMBED_DIM
    n = WINDOW * WINDOW
    ks = jax.random.split(key, 16)

    def lin(k, din, dout):
        return jax.random.normal(k, (din, dout), jnp.float32) * 0.1

    def vec(k):
        return jax.random.normal(k, (C,), jnp.float32) * 0.1

    ones = jnp.ones((C,), jnp.float32)
    zeros = jnp.zeros((C,), jnp.float32)

    # head/token interleave selection matrices for torch's `.view(b,-1,nh*hd)`
    selE = np.zeros((nw * n, 2 * nw * n), np.float32)
    selO = np.zeros_like(selE)
    for w in range(nw):
        for i in range(n):
            h = (i * NUM_HEADS) // n
            tok = (i * NUM_HEADS) % n
            selE[w * n + i, w * 2 * n + h * n + tok] = 1.0
            selO[w * n + i, w * 2 * n + h * n + tok + 1] = 1.0
    sel_w = jnp.asarray(np.stack([selE, selO])).astype(BF16)    # [2, nw*n, 2*nw*n]

    # ---- window multi-head self-attention (packed Wq|Wk|Wv, split W1) ----
    wqkv_w = jnp.concatenate([lin(ks[0], C, C), lin(ks[1], C, C),
                              lin(ks[2], C, C)], axis=1).astype(BF16)    # [C, 3C]
    wm_w = lin(ks[3], C, C).astype(BF16)
    w1_full = lin(ks[4], 2 * C, 2 * C)
    w1_w = jnp.stack([w1_full[:C], w1_full[C:]]).astype(BF16)            # [2, C, 2C]
    w2_w = lin(ks[5], 2 * C, C).astype(BF16)
    vec_w = jnp.stack([vec(ks[6]), vec(ks[7]), vec(ks[8]),               # bq,bk,bv
                       ones, zeros, ones, zeros, zeros])                 # ln1, ln2, pad

    # ---- linear-attention encoder layer (all projections bias-free) ------
    wqkv_l = jnp.concatenate([lin(ks[9], C, C), lin(ks[10], C, C),
                              lin(ks[11], C, C)], axis=1).astype(BF16)
    wm_l = lin(ks[12], C, C).astype(BF16)
    w1l_full = lin(ks[13], 2 * C, 2 * C)
    w1_l = jnp.stack([w1l_full[:C], w1l_full[C:]]).astype(BF16)
    w2_l = lin(ks[14], 2 * C, C).astype(BF16)
    vec_l = jnp.stack([ones, zeros, ones, zeros, zeros, zeros, zeros, zeros])

    return (wqkv_w, sel_w, wm_w, w1_w, w2_w, vec_w,
            wqkv_l, wm_l, w1_l, w2_l, vec_l)


if __name__ == "__main__":
    key = jax.random.PRNGKey(0)
    kx, ksrc, kp = jax.random.split(key, 3)
    B, C, H, W = 2, EMBED_DIM, 8, 8
    x = jax.random.normal(kx, (B, C, H, W), jnp.float32)
    source = jax.random.normal(ksrc, (B, C, H, W), jnp.float32)
    nw = (H // WINDOW) * (W // WINDOW)
    params = init_params(kp, nw)

    out = window_topk_attention(x, source, params)
    out = jax.block_until_ready(out)
    assert out.shape == (B, C, H, W)
    assert bool(jnp.all(jnp.isfinite(out)))
    print("KERNEL_OK")
</pallas_src>

<mosaic_0001>
module attributes {stable_mosaic.version = 11 : i64} {
  func.func @fused_kernel(%arg0: i32, %arg1: memref<1x128x16xf32, #tpu.memory_space<vmem>>, %arg2: memref<16x48xbf16, #tpu.memory_space<vmem>>, %arg3: memref<2x64x128xbf16, #tpu.memory_space<vmem>>, %arg4: memref<16x16xbf16, #tpu.memory_space<vmem>>, %arg5: memref<2x16x32xbf16, #tpu.memory_space<vmem>>, %arg6: memref<32x16xbf16, #tpu.memory_space<vmem>>, %arg7: memref<8x16xf32, #tpu.memory_space<vmem>>, %arg8: memref<16x48xbf16, #tpu.memory_space<vmem>>, %arg9: memref<16x16xbf16, #tpu.memory_space<vmem>>, %arg10: memref<2x16x32xbf16, #tpu.memory_space<vmem>>, %arg11: memref<32x16xbf16, #tpu.memory_space<vmem>>, %arg12: memref<8x16xf32, #tpu.memory_space<vmem>>, %arg13: memref<1x64x16xf32, #tpu.memory_space<vmem>>) attributes {dimension_semantics = [#tpu.dimension_semantics<parallel>], iteration_bounds = array<i64: 2>, scalar_prefetch = 0 : i64, scratch_operands = 0 : i64, tpu.core_type = #tpu.core_type<tc>, window_params = [{transform_indices = @transform_0, window_bounds = array<i64: 1, 128, 16>}, {pipeline_mode = #tpu.pipeline_mode<synchronous>, transform_indices = @transform_1, window_bounds = array<i64: 16, 48>}, {pipeline_mode = #tpu.pipeline_mode<synchronous>, transform_indices = @transform_2, window_bounds = array<i64: 2, 64, 128>}, {pipeline_mode = #tpu.pipeline_mode<synchronous>, transform_indices = @transform_3, window_bounds = array<i64: 16, 16>}, {pipeline_mode = #tpu.pipeline_mode<synchronous>, transform_indices = @transform_4, window_bounds = array<i64: 2, 16, 32>}, {pipeline_mode = #tpu.pipeline_mode<synchronous>, transform_indices = @transform_5, window_bounds = array<i64: 32, 16>}, {pipeline_mode = #tpu.pipeline_mode<synchronous>, transform_indices = @transform_6, window_bounds = array<i64: 8, 16>}, {pipeline_mode = #tpu.pipeline_mode<synchronous>, transform_indices = @transform_7, window_bounds = array<i64: 16, 48>}, {pipeline_mode = #tpu.pipeline_mode<synchronous>, transform_indices = @transform_8, window_bounds = array<i64: 16, 16>}, {pipeline_mode = #tpu.pipeline_mode<synchronous>, transform_indices = @transform_9, window_bounds = array<i64: 2, 16, 32>}, {pipeline_mode = #tpu.pipeline_mode<synchronous>, transform_indices = @transform_10, window_bounds = array<i64: 32, 16>}, {pipeline_mode = #tpu.pipeline_mode<synchronous>, transform_indices = @transform_11, window_bounds = array<i64: 8, 16>}, {transform_indices = @transform_12, window_bounds = array<i64: 1, 64, 16>}]} {
    %c0 = arith.constant 0 : index
    %c0_0 = arith.constant 0 : index
    %c0_1 = arith.constant 0 : index
    %0 = vector.load %arg1[%c0, %c0_0, %c0_1] : memref<1x128x16xf32, #tpu.memory_space<vmem>>, vector<1x128x16xf32>
    %1 = vector.shape_cast %0 : vector<1x128x16xf32> to vector<128x16xf32>
    %2 = arith.truncf %1 : vector<128x16xf32> to vector<128x16xbf16>
    %3 = vector.extract_strided_slice %1 {offsets = [0, 0], sizes = [64, 16], strides = [1, 1]} : vector<128x16xf32> to vector<64x16xf32>
    %c0_2 = arith.constant 0 : index
    %c0_3 = arith.constant 0 : index
    %4 = vector.load %arg7[%c0_2, %c0_3] : memref<8x16xf32, #tpu.memory_space<vmem>>, vector<1x16xf32>
    %c1 = arith.constant 1 : index
    %c0_4 = arith.constant 0 : index
    %5 = vector.load %arg7[%c1, %c0_4] : memref<8x16xf32, #tpu.memory_space<vmem>>, vector<1x16xf32>
    %c2 = arith.constant 2 : index
    %c0_5 = arith.constant 0 : index
    %6 = vector.load %arg7[%c2, %c0_5] : memref<8x16xf32, #tpu.memory_space<vmem>>, vector<1x16xf32>
    %c3 = arith.constant 3 : index
    %c0_6 = arith.constant 0 : index
    %7 = vector.load %arg7[%c3, %c0_6] : memref<8x16xf32, #tpu.memory_space<vmem>>, vector<1x16xf32>
    %c4 = arith.constant 4 : index
    %c0_7 = arith.constant 0 : index
    %8 = vector.load %arg7[%c4, %c0_7] : memref<8x16xf32, #tpu.memory_space<vmem>>, vector<1x16xf32>
    %c5 = arith.constant 5 : index
    %c0_8 = arith.constant 0 : index
    %9 = vector.load %arg7[%c5, %c0_8] : memref<8x16xf32, #tpu.memory_space<vmem>>, vector<1x16xf32>
    %c6 = arith.constant 6 : index
    %c0_9 = arith.constant 0 : index
    %10 = vector.load %arg7[%c6, %c0_9] : memref<8x16xf32, #tpu.memory_space<vmem>>, vector<1x16xf32>
    %c0_10 = arith.constant 0 : index
    %c0_11 = arith.constant 0 : index
    %11 = vector.load %arg2[%c0_10, %c0_11] : memref<16x48xbf16, #tpu.memory_space<vmem>>, vector<16x48xbf16>
    %cst = arith.constant dense<0.000000e+00> : vector<128x48xf32>
    %12 = tpu.matmul %2, %11, %cst {dimension_numbers = #tpu.dot_dimension_numbers<[1], [0], [0], [1], [0, 0, 1, 1], [], []>} : vector<128x16xbf16>, vector<16x48xbf16>, vector<128x48xf32> -> vector<128x48xf32>
    %13 = vector.extract_strided_slice %12 {offsets = [0, 0], sizes = [64, 16], strides = [1, 1]} : vector<128x48xf32> to vector<64x16xf32>
    %14 = vector.broadcast %4 : vector<1x16xf32> to vector<64x16xf32>
    %15 = arith.addf %13, %14 : vector<64x16xf32>
    %16 = vector.extract_strided_slice %12 {offsets = [64, 16], sizes = [64, 16], strides = [1, 1]} : vector<128x48xf32> to vector<64x16xf32>
    %17 = vector.broadcast %5 : vector<1x16xf32> to vector<64x16xf32>
    %18 = arith.addf %16, %17 : vector<64x16xf32>
    %19 = vector.extract_strided_slice %12 {offsets = [64, 32], sizes = [64, 16], strides = [1, 1]} : vector<128x48xf32> to vector<64x16xf32>
    %20 = vector.broadcast %6 : vector<1x16xf32> to vector<64x16xf32>
    %21 = arith.addf %19, %20 : vector<64x16xf32>
    %22 = vector.shape_cast %15 : vector<64x16xf32> to vector<4x16x16xf32>
    %23 = arith.truncf %22 : vector<4x16x16xf32> to vector<4x16x16xbf16>
    %24 = vector.shape_cast %18 : vector<64x16xf32> to vector<4x16x16xf32>
    %25 = arith.truncf %24 : vector<4x16x16xf32> to vector<4x16x16xbf16>
    %26 = vector.shape_cast %21 : vector<64x16xf32> to vector<4x16x16xf32>
    %27 = arith.truncf %26 : vector<4x16x16xf32> to vector<4x16x16xbf16>
    "tpu.trace_start"() <{level = 10 : i32, message = "wnc,wmc->wnm"}> : () -> ()
    %cst_12 = arith.constant dense<0.000000e+00> : vector<4x16x16xf32>
    %28 = tpu.matmul %23, %25, %cst_12 {dimension_numbers = #tpu.dot_dimension_numbers<[2], [2], [1], [1], [0, 0, 0, 1, 1, 1], [0], [0]>} : vector<4x16x16xbf16>, vector<4x16x16xbf16>, vector<4x16x16xf32> -> vector<4x16x16xf32>
    "tpu.trace_stop"() : () -> ()
    %29 = vector.extract_strided_slice %23 {offsets = [0, 0, 0], sizes = [4, 16, 8], strides = [1, 1, 1]} : vector<4x16x16xbf16> to vector<4x16x8xbf16>
    %30 = vector.extract_strided_slice %25 {offsets = [0, 0, 0], sizes = [4, 16, 8], strides = [1, 1, 1]} : vector<4x16x16xbf16> to vector<4x16x8xbf16>
    "tpu.trace_start"() <{level = 10 : i32, message = "wnc,wmc->wnm"}> : () -> ()
    %cst_13 = arith.constant dense<0.000000e+00> : vector<4x16x16xf32>
    %31 = tpu.matmul %29, %30, %cst_13 {dimension_numbers = #tpu.dot_dimension_numbers<[2], [2], [1], [1], [0, 0, 0, 1, 1, 1], [0], [0]>} : vector<4x16x8xbf16>, vector<4x16x8xbf16>, vector<4x16x16xf32> -> vector<4x16x16xf32>
    "tpu.trace_stop"() : () -> ()
    %32 = arith.subf %28, %31 : vector<4x16x16xf32>
    %cst_14 = arith.constant dense<0xFF800000> : vector<4x16xf32>
    %33 = vector.multi_reduction <maximumf>, %28, %cst_14 [2] : vector<4x16x16xf32> to vector<4x16xf32>
    %34 = vector.shape_cast %33 : vector<4x16xf32> to vector<4x16x1xf32>
    %35 = vector.broadcast %34 : vector<4x16x1xf32> to vector<4x16x16xf32>
    %36 = arith.subf %28, %35 : vector<4x16x16xf32>
    %37 = math.exp %36 : vector<4x16x16xf32>
    %cst_15 = arith.constant dense<0.000000e+00> : vector<4x16xf32>
    %38 = vector.multi_reduction <add>, %37, %cst_15 [2] : vector<4x16x16xf32> to vector<4x16xf32>
    %39 = vector.shape_cast %38 : vector<4x16xf32> to vector<4x16x1xf32>
    %40 = vector.broadcast %39 : vector<4x16x1xf32> to vector<4x16x16xf32>
    %41 = arith.divf %37, %40 : vector<4x16x16xf32>
    %cst_16 = arith.constant dense<0xFF800000> : vector<4x16xf32>
    %42 = vector.multi_reduction <maximumf>, %41, %cst_16 [2] : vector<4x16x16xf32> to vector<4x16xf32>
    %43 = vector.shape_cast %42 : vector<4x16xf32> to vector<4x16x1xf32>
    %44 = vector.broadcast %43 : vector<4x16x1xf32> to vector<4x16x16xf32>
    %45 = arith.subf %41, %44 : vector<4x16x16xf32>
    %46 = math.exp %45 : vector<4x16x16xf32>
    %cst_17 = arith.constant dense<0.000000e+00> : vector<4x16xf32>
    %47 = vector.multi_reduction <add>, %46, %cst_17 [2] : vector<4x16x16xf32> to vector<4x16xf32>
    %48 = vector.shape_cast %47 : vector<4x16xf32> to vector<4x16x1xf32>
    %49 = vector.broadcast %48 : vector<4x16x1xf32> to vector<4x16x16xf32>
    %50 = arith.divf %46, %49 : vector<4x16x16xf32>
    %cst_18 = arith.constant dense<0xFF800000> : vector<4x16xf32>
    %51 = vector.multi_reduction <maximumf>, %41, %cst_18 [1] : vector<4x16x16xf32> to vector<4x16xf32>
    %52 = vector.shape_cast %51 : vector<4x16xf32> to vector<4x1x16xf32>
    %53 = vector.broadcast %52 : vector<4x1x16xf32> to vector<4x16x16xf32>
    %54 = arith.subf %41, %53 : vector<4x16x16xf32>
    %55 = math.exp %54 : vector<4x16x16xf32>
    %cst_19 = arith.constant dense<0.000000e+00> : vector<4x16xf32>
    %56 = vector.multi_reduction <add>, %55, %cst_19 [1] : vector<4x16x16xf32> to vector<4x16xf32>
    %57 = vector.shape_cast %56 : vector<4x16xf32> to vector<4x1x16xf32>
    %58 = vector.broadcast %57 : vector<4x1x16xf32> to vector<4x16x16xf32>
    %59 = arith.divf %55, %58 : vector<4x16x16xf32>
    %60 = arith.mulf %50, %59 : vector<4x16x16xf32>
    %cst_20 = arith.constant 0.353553385 : f32
    %61 = vector.broadcast %cst_20 : f32 to vector<4x16x16xf32>
    %62 = arith.mulf %31, %61 : vector<4x16x16xf32>
    %cst_21 = arith.constant dense<0xFF800000> : vector<4x16xf32>
    %63 = vector.multi_reduction <maximumf>, %62, %cst_21 [2] : vector<4x16x16xf32> to vector<4x16xf32>
    %64 = vector.shape_cast %63 : vector<4x16xf32> to vector<4x16x1xf32>
    %65 = vector.broadcast %64 : vector<4x16x1xf32> to vector<4x16x16xf32>
    %66 = arith.subf %62, %65 : vector<4x16x16xf32>
    %67 = math.exp %66 : vector<4x16x16xf32>
    %cst_22 = arith.constant dense<0.000000e+00> : vector<4x16xf32>
    %68 = vector.multi_reduction <add>, %67, %cst_22 [2] : vector<4x16x16xf32> to vector<4x16xf32>
    %69 = vector.shape_cast %68 : vector<4x16xf32> to vector<4x16x1xf32>
    %70 = tpu.reciprocal %69 {approx = true} : vector<4x16x1xf32> -> vector<4x16x1xf32>
    %71 = vector.broadcast %70 : vector<4x16x1xf32> to vector<4x16x16xf32>
    %72 = arith.mulf %67, %71 : vector<4x16x16xf32>
    %73 = arith.truncf %72 : vector<4x16x16xf32> to vector<4x16x16xbf16>
    %cst_23 = arith.constant 0.353553385 : f32
    %74 = vector.broadcast %cst_23 : f32 to vector<4x16x16xf32>
    %75 = arith.mulf %32, %74 : vector<4x16x16xf32>
    %cst_24 = arith.constant dense<0xFF800000> : vector<4x16xf32>
    %76 = vector.multi_reduction <maximumf>, %75, %cst_24 [2] : vector<4x16x16xf32> to vector<4x16xf32>
    %77 = vector.shape_cast %76 : vector<4x16xf32> to vector<4x16x1xf32>
    %78 = vector.broadcast %77 : vector<4x16x1xf32> to vector<4x16x16xf32>
    %79 = arith.subf %75, %78 : vector<4x16x16xf32>
    %80 = math.exp %79 : vector<4x16x16xf32>
    %cst_25 = arith.constant dense<0.000000e+00> : vector<4x16xf32>
    %81 = vector.multi_reduction <add>, %80, %cst_25 [2] : vector<4x16x16xf32> to vector<4x16xf32>
    %82 = vector.shape_cast %81 : vector<4x16xf32> to vector<4x16x1xf32>
    %83 = tpu.reciprocal %82 {approx = true} : vector<4x16x1xf32> -> vector<4x16x1xf32>
    %84 = vector.broadcast %83 : vector<4x16x1xf32> to vector<4x16x16xf32>
    %85 = arith.mulf %80, %84 : vector<4x16x16xf32>
    %86 = arith.truncf %85 : vector<4x16x16xf32> to vector<4x16x16xbf16>
    %87 = vector.extract_strided_slice %27 {offsets = [0, 0, 0], sizes = [4, 16, 8], strides = [1, 1, 1]} : vector<4x16x16xbf16> to vector<4x16x8xbf16>
    "tpu.trace_start"() <{level = 10 : i32, message = "wnm,wmd->wnd"}> : () -> ()
    %cst_26 = arith.constant dense<0.000000e+00> : vector<4x16x8xf32>
    %88 = tpu.matmul %73, %87, %cst_26 {dimension_numbers = #tpu.dot_dimension_numbers<[2], [1], [1], [2], [0, 0, 0, 1, 1, 2], [0], [0]>} : vector<4x16x16xbf16>, vector<4x16x8xbf16>, vector<4x16x8xf32> -> vector<4x16x8xf32>
    "tpu.trace_stop"() : () -> ()
    %89 = vector.extract_strided_slice %27 {offsets = [0, 0, 8], sizes = [4, 16, 8], strides = [1, 1, 1]} : vector<4x16x16xbf16> to vector<4x16x8xbf16>
    "tpu.trace_start"() <{level = 10 : i32, message = "wnm,wmd->wnd"}> : () -> ()
    %cst_27 = arith.constant dense<0.000000e+00> : vector<4x16x8xf32>
    %90 = tpu.matmul %86, %89, %cst_27 {dimension_numbers = #tpu.dot_dimension_numbers<[2], [1], [1], [2], [0, 0, 0, 1, 1, 2], [0], [0]>} : vector<4x16x16xbf16>, vector<4x16x8xbf16>, vector<4x16x8xf32> -> vector<4x16x8xf32>
    "tpu.trace_stop"() : () -> ()
    %91 = tpu.concatenate %88, %90 in 1 : vector<4x16x8xf32>, vector<4x16x8xf32> -> vector<4x32x8xf32>
    %92 = vector.shape_cast %91 : vector<4x32x8xf32> to vector<128x8xf32>
    %93 = arith.truncf %92 : vector<128x8xf32> to vector<128x8xbf16>
    %c0_28 = arith.constant 0 : index
    %c0_29 = arith.constant 0 : index
    %c0_30 = arith.constant 0 : index
    %94 = vector.load %arg3[%c0_28, %c0_29, %c0_30] : memref<2x64x128xbf16, #tpu.memory_space<vmem>>, vector<1x64x128xbf16>
    %95 = vector.shape_cast %94 : vector<1x64x128xbf16> to vector<64x128xbf16>
    %cst_31 = arith.constant dense<0.000000e+00> : vector<64x8xf32>
    %96 = tpu.matmul %95, %93, %cst_31 {dimension_numbers = #tpu.dot_dimension_numbers<[1], [0], [0], [1], [0, 0, 1, 1], [], []>} : vector<64x128xbf16>, vector<128x8xbf16>, vector<64x8xf32> -> vector<64x8xf32>
    %c1_32 = arith.constant 1 : index
    %c0_33 = arith.constant 0 : index
    %c0_34 = arith.constant 0 : index
    %97 = vector.load %arg3[%c1_32, %c0_33, %c0_34] : memref<2x64x128xbf16, #tpu.memory_space<vmem>>, vector<1x64x128xbf16>
    %98 = vector.shape_cast %97 : vector<1x64x128xbf16> to vector<64x128xbf16>
    %cst_35 = arith.constant dense<0.000000e+00> : vector<64x8xf32>
    %99 = tpu.matmul %98, %93, %cst_35 {dimension_numbers = #tpu.dot_dimension_numbers<[1], [0], [0], [1], [0, 0, 1, 1], [], []>} : vector<64x128xbf16>, vector<128x8xbf16>, vector<64x8xf32> -> vector<64x8xf32>
    %100 = tpu.concatenate %96, %99 in 1 : vector<64x8xf32>, vector<64x8xf32> -> vector<64x16xf32>
    %101 = arith.truncf %100 : vector<64x16xf32> to vector<64x16xbf16>
    %c0_36 = arith.constant 0 : index
    %c0_37 = arith.constant 0 : index
    %102 = vector.load %arg4[%c0_36, %c0_37] : memref<16x16xbf16, #tpu.memory_space<vmem>>, vector<16x16xbf16>
    %cst_38 = arith.constant dense<0.000000e+00> : vector<64x16xf32>
    %103 = tpu.matmul %101, %102, %cst_38 {dimension_numbers = #tpu.dot_dimension_numbers<[1], [0], [0], [1], [0, 0, 1, 1], [], []>} : vector<64x16xbf16>, vector<16x16xbf16>, vector<64x16xf32> -> vector<64x16xf32>
    %cst_39 = arith.constant dense<0.000000e+00> : vector<64xf32>
    %104 = vector.multi_reduction <add>, %103, %cst_39 [1] : vector<64x16xf32> to vector<64xf32>
    %105 = vector.shape_cast %104 : vector<64xf32> to vector<64x1xf32>
    %cst_40 = arith.constant 1.600000e+01 : f32
    %106 = vector.broadcast %cst_40 : f32 to vector<64x1xf32>
    %107 = arith.divf %105, %106 : vector<64x1xf32>
    %108 = vector.broadcast %107 : vector<64x1xf32> to vector<64x16xf32>
    %109 = arith.subf %103, %108 : vector<64x16xf32>
    %110 = arith.mulf %109, %109 : vector<64x16xf32>
    %cst_41 = arith.constant dense<0.000000e+00> : vector<64xf32>
    %111 = vector.multi_reduction <add>, %110, %cst_41 [1] : vector<64x16xf32> to vector<64xf32>
    %112 = vector.shape_cast %111 : vector<64xf32> to vector<64x1xf32>
    %cst_42 = arith.constant 1.600000e+01 : f32
    %113 = vector.broadcast %cst_42 : f32 to vector<64x1xf32>
    %114 = arith.divf %112, %113 : vector<64x1xf32>
    %115 = vector.broadcast %107 : vector<64x1xf32> to vector<64x16xf32>
    %116 = arith.subf %103, %115 : vector<64x16xf32>
    %cst_43 = arith.constant 9.99999974E-6 : f32
    %117 = vector.broadcast %cst_43 : f32 to vector<64x1xf32>
    %118 = arith.addf %114, %117 : vector<64x1xf32>
    %119 = math.rsqrt %118 : vector<64x1xf32>
    %120 = vector.broadcast %119 : vector<64x1xf32> to vector<64x16xf32>
    %121 = arith.mulf %116, %120 : vector<64x16xf32>
    %122 = vector.broadcast %7 : vector<1x16xf32> to vector<64x16xf32>
    %123 = arith.mulf %121, %122 : vector<64x16xf32>
    %124 = vector.broadcast %8 : vector<1x16xf32> to vector<64x16xf32>
    %125 = arith.addf %123, %124 : vector<64x16xf32>
    %126 = vector.extract_strided_slice %2 {offsets = [0, 0], sizes = [64, 16], strides = [1, 1]} : vector<128x16xbf16> to vector<64x16xbf16>
    %c0_44 = arith.constant 0 : index
    %c0_45 = arith.constant 0 : index
    %c0_46 = arith.constant 0 : index
    %127 = vector.load %arg5[%c0_44, %c0_45, %c0_46] : memref<2x16x32xbf16, #tpu.memory_space<vmem>>, vector<1x16x32xbf16>
    %128 = vector.shape_cast %127 : vector<1x16x32xbf16> to vector<16x32xbf16>
    %cst_47 = arith.constant dense<0.000000e+00> : vector<64x32xf32>
    %129 = tpu.matmul %126, %128, %cst_47 {dimension_numbers = #tpu.dot_dimension_numbers<[1], [0], [0], [1], [0, 0, 1, 1], [], []>} : vector<64x16xbf16>, vector<16x32xbf16>, vector<64x32xf32> -> vector<64x32xf32>
    %130 = arith.truncf %125 : vector<64x16xf32> to vector<64x16xbf16>
    %c1_48 = arith.constant 1 : index
    %c0_49 = arith.constant 0 : index
    %c0_50 = arith.constant 0 : index
    %131 = vector.load %arg5[%c1_48, %c0_49, %c0_50] : memref<2x16x32xbf16, #tpu.memory_space<vmem>>, vector<1x16x32xbf16>
    %132 = vector.shape_cast %131 : vector<1x16x32xbf16> to vector<16x32xbf16>
    %cst_51 = arith.constant dense<0.000000e+00> : vector<64x32xf32>
    %133 = tpu.matmul %130, %132, %cst_51 {dimension_numbers = #tpu.dot_dimension_numbers<[1], [0], [0], [1], [0, 0, 1, 1], [], []>} : vector<64x16xbf16>, vector<16x32xbf16>, vector<64x32xf32> -> vector<64x32xf32>
    %134 = arith.addf %129, %133 : vector<64x32xf32>
    %cst_52 = arith.constant 0.000000e+00 : f32
    %135 = vector.broadcast %cst_52 : f32 to vector<64x32xf32>
    %136 = arith.maximumf %134, %135 : vector<64x32xf32>
    %137 = arith.truncf %136 : vector<64x32xf32> to vector<64x32xbf16>
    %c0_53 = arith.constant 0 : index
    %c0_54 = arith.constant 0 : index
    %138 = vector.load %arg6[%c0_53, %c0_54] : memref<32x16xbf16, #tpu.memory_space<vmem>>, vector<32x16xbf16>
    %cst_55 = arith.constant dense<0.000000e+00> : vector<64x16xf32>
    %139 = tpu.matmul %137, %138, %cst_55 {dimension_numbers = #tpu.dot_dimension_numbers<[1], [0], [0], [1], [0, 0, 1, 1], [], []>} : vector<64x32xbf16>, vector<32x16xbf16>, vector<64x16xf32> -> vector<64x16xf32>
    %cst_56 = arith.constant dense<0.000000e+00> : vector<64xf32>
    %140 = vector.multi_reduction <add>, %139, %cst_56 [1] : vector<64x16xf32> to vector<64xf32>
    %141 = vector.shape_cast %140 : vector<64xf32> to vector<64x1xf32>
    %cst_57 = arith.constant 1.600000e+01 : f32
    %142 = vector.broadcast %cst_57 : f32 to vector<64x1xf32>
    %143 = arith.divf %141, %142 : vector<64x1xf32>
    %144 = vector.broadcast %143 : vector<64x1xf32> to vector<64x16xf32>
    %145 = arith.subf %139, %144 : vector<64x16xf32>
    %146 = arith.mulf %145, %145 : vector<64x16xf32>
    %cst_58 = arith.constant dense<0.000000e+00> : vector<64xf32>
    %147 = vector.multi_reduction <add>, %146, %cst_58 [1] : vector<64x16xf32> to vector<64xf32>
    %148 = vector.shape_cast %147 : vector<64xf32> to vector<64x1xf32>
    %cst_59 = arith.constant 1.600000e+01 : f32
    %149 = vector.broadcast %cst_59 : f32 to vector<64x1xf32>
    %150 = arith.divf %148, %149 : vector<64x1xf32>
    %151 = vector.broadcast %143 : vector<64x1xf32> to vector<64x16xf32>
    %152 = arith.subf %139, %151 : vector<64x16xf32>
    %cst_60 = arith.constant 9.99999974E-6 : f32
    %153 = vector.broadcast %cst_60 : f32 to vector<64x1xf32>
    %154 = arith.addf %150, %153 : vector<64x1xf32>
    %155 = math.rsqrt %154 : vector<64x1xf32>
    %156 = vector.broadcast %155 : vector<64x1xf32> to vector<64x16xf32>
    %157 = arith.mulf %152, %156 : vector<64x16xf32>
    %158 = vector.broadcast %9 : vector<1x16xf32> to vector<64x16xf32>
    %159 = arith.mulf %157, %158 : vector<64x16xf32>
    %160 = vector.broadcast %10 : vector<1x16xf32> to vector<64x16xf32>
    %161 = arith.addf %159, %160 : vector<64x16xf32>
    %162 = arith.addf %3, %161 : vector<64x16xf32>
    %163 = vector.shape_cast %162 : vector<64x16xf32> to vector<4x16x16xf32>
    %164 = tpu.iota {dimensions = array<i32: 1>} : vector<4x16x16xi32>
    %165 = arith.sitofp %164 : vector<4x16x16xi32> to vector<4x16x16xf32>
    %cst_61 = arith.constant dense<0xFF800000> : vector<4x16xf32>
    %166 = vector.multi_reduction <maximumf>, %60, %cst_61 [1] : vector<4x16x16xf32> to vector<4x16xf32>
    %167 = vector.shape_cast %166 : vector<4x16xf32> to vector<4x1x16xf32>
    %168 = vector.broadcast %167 : vector<4x1x16xf32> to vector<4x16x16xf32>
    %169 = arith.cmpf oeq, %60, %168 : vector<4x16x16xf32>
    %cst_62 = arith.constant 1.600000e+01 : f32
    %170 = vector.broadcast %cst_62 : f32 to vector<4x16x16xf32>
    %171 = arith.select %169, %165, %170 : vector<4x16x16xi1>, vector<4x16x16xf32>
    %cst_63 = arith.constant dense<0x7F800000> : vector<4x16xf32>
    %172 = vector.multi_reduction <minimumf>, %171, %cst_63 [1] : vector<4x16x16xf32> to vector<4x16xf32>
    %173 = vector.shape_cast %172 : vector<4x16xf32> to vector<4x1x16xf32>
    %174 = vector.broadcast %173 : vector<4x1x16xf32> to vector<4x16x16xf32>
    %175 = arith.cmpf oeq, %165, %174 : vector<4x16x16xf32>
    %cst_64 = arith.constant -1.000000e+30 : f32
    %176 = vector.broadcast %cst_64 : f32 to vector<4x16x16xf32>
    %177 = arith.select %175, %176, %60 : vector<4x16x16xi1>, vector<4x16x16xf32>
    %cst_65 = arith.constant dense<0xFF800000> : vector<4x16xf32>
    %178 = vector.multi_reduction <maximumf>, %177, %cst_65 [1] : vector<4x16x16xf32> to vector<4x16xf32>
    %179 = vector.shape_cast %178 : vector<4x16xf32> to vector<4x1x16xf32>
    %180 = vector.broadcast %179 : vector<4x1x16xf32> to vector<4x16x16xf32>
    %181 = arith.cmpf oeq, %177, %180 : vector<4x16x16xf32>
    %cst_66 = arith.constant 1.600000e+01 : f32
    %182 = vector.broadcast %cst_66 : f32 to vector<4x16x16xf32>
    %183 = arith.select %181, %165, %182 : vector<4x16x16xi1>, vector<4x16x16xf32>
    %cst_67 = arith.constant dense<0x7F800000> : vector<4x16xf32>
    %184 = vector.multi_reduction <minimumf>, %183, %cst_67 [1] : vector<4x16x16xf32> to vector<4x16xf32>
    %185 = vector.shape_cast %184 : vector<4x16xf32> to vector<4x1x16xf32>
    %186 = vector.broadcast %185 : vector<4x1x16xf32> to vector<4x16x16xf32>
    %187 = arith.cmpf oeq, %165, %186 : vector<4x16x16xf32>
    %cst_68 = arith.constant -1.000000e+30 : f32
    %188 = vector.broadcast %cst_68 : f32 to vector<4x16x16xf32>
    %189 = arith.select %187, %188, %177 : vector<4x16x16xi1>, vector<4x16x16xf32>
    %cst_69 = arith.constant dense<0xFF800000> : vector<4x16xf32>
    %190 = vector.multi_reduction <maximumf>, %189, %cst_69 [1] : vector<4x16x16xf32> to vector<4x16xf32>
    %191 = vector.shape_cast %190 : vector<4x16xf32> to vector<4x1x16xf32>
    %192 = vector.broadcast %191 : vector<4x1x16xf32> to vector<4x16x16xf32>
    %193 = arith.cmpf oeq, %189, %192 : vector<4x16x16xf32>
    %cst_70 = arith.constant 1.600000e+01 : f32
    %194 = vector.broadcast %cst_70 : f32 to vector<4x16x16xf32>
    %195 = arith.select %193, %165, %194 : vector<4x16x16xi1>, vector<4x16x16xf32>
    %cst_71 = arith.constant dense<0x7F800000> : vector<4x16xf32>
    %196 = vector.multi_reduction <minimumf>, %195, %cst_71 [1] : vector<4x16x16xf32> to vector<4x16xf32>
    %197 = vector.shape_cast %196 : vector<4x16xf32> to vector<4x1x16xf32>
    %198 = vector.broadcast %197 : vector<4x1x16xf32> to vector<4x16x16xf32>
    %199 = arith.cmpf oeq, %165, %198 : vector<4x16x16xf32>
    %cst_72 = arith.constant -1.000000e+30 : f32
    %200 = vector.broadcast %cst_72 : f32 to vector<4x16x16xf32>
    %201 = arith.select %199, %200, %189 : vector<4x16x16xi1>, vector<4x16x16xf32>
    %cst_73 = arith.constant dense<0xFF800000> : vector<4x16xf32>
    %202 = vector.multi_reduction <maximumf>, %201, %cst_73 [1] : vector<4x16x16xf32> to vector<4x16xf32>
    %203 = vector.shape_cast %202 : vector<4x16xf32> to vector<4x1x16xf32>
    %204 = vector.broadcast %203 : vector<4x1x16xf32> to vector<4x16x16xf32>
    %205 = arith.cmpf oeq, %201, %204 : vector<4x16x16xf32>
    %cst_74 = arith.constant 1.600000e+01 : f32
    %206 = vector.broadcast %cst_74 : f32 to vector<4x16x16xf32>
    %207 = arith.select %205, %165, %206 : vector<4x16x16xi1>, vector<4x16x16xf32>
    %cst_75 = arith.constant dense<0x7F800000> : vector<4x16xf32>
    %208 = vector.multi_reduction <minimumf>, %207, %cst_75 [1] : vector<4x16x16xf32> to vector<4x16xf32>
    %209 = vector.shape_cast %208 : vector<4x16xf32> to vector<4x1x16xf32>
    %210 = tpu.concatenate %173, %185, %197, %209 in 1 : vector<4x1x16xf32>, vector<4x1x16xf32>, vector<4x1x16xf32>, vector<4x1x16xf32> -> vector<4x4x16xf32>
    %211 = vector.extract_strided_slice %163 {offsets = [0, 0, 0], sizes = [4, 4, 16], strides = [1, 1, 1]} : vector<4x16x16xf32> to vector<4x4x16xf32>
    %cst_76 = arith.constant 0.000000e+00 : f32
    %212 = vector.broadcast %cst_76 : f32 to vector<4x4x16xf32>
    %cst_77 = arith.constant 0.000000e+00 : f32
    %213 = vector.broadcast %cst_77 : f32 to vector<4x4x16xf32>
    %214 = arith.cmpf oeq, %210, %213 : vector<4x4x16xf32>
    %215 = vector.extract_strided_slice %211 {offsets = [0, 0, 0], sizes = [4, 4, 1], strides = [1, 1, 1]} : vector<4x4x16xf32> to vector<4x4x1xf32>
    %cst_78 = arith.constant 0.000000e+00 : f32
    %216 = vector.shape_cast %215 : vector<4x4x1xf32> to vector<4x4x1xf32>
    %217 = vector.broadcast %216 : vector<4x4x1xf32> to vector<4x4x16xf32>
    %218 = vector.broadcast %cst_78 : f32 to vector<4x4x16xf32>
    %219 = arith.select %214, %217, %218 : vector<4x4x16xi1>, vector<4x4x16xf32>
    %220 = arith.addf %212, %219 : vector<4x4x16xf32>
    %cst_79 = arith.constant 1.000000e+00 : f32
    %221 = vector.broadcast %cst_79 : f32 to vector<4x4x16xf32>
    %222 = arith.cmpf oeq, %210, %221 : vector<4x4x16xf32>
    %223 = vector.extract_strided_slice %211 {offsets = [0, 0, 1], sizes = [4, 4, 1], strides = [1, 1, 1]} : vector<4x4x16xf32> to vector<4x4x1xf32>
    %cst_80 = arith.constant 0.000000e+00 : f32
    %224 = vector.shape_cast %223 : vector<4x4x1xf32> to vector<4x4x1xf32>
    %225 = vector.broadcast %224 : vector<4x4x1xf32> to vector<4x4x16xf32>
    %226 = vector.broadcast %cst_80 : f32 to vector<4x4x16xf32>
    %227 = arith.select %222, %225, %226 : vector<4x4x16xi1>, vector<4x4x16xf32>
    %228 = arith.addf %220, %227 : vector<4x4x16xf32>
    %cst_81 = arith.constant 2.000000e+00 : f32
    %229 = vector.broadcast %cst_81 : f32 to vector<4x4x16xf32>
    %230 = arith.cmpf oeq, %210, %229 : vector<4x4x16xf32>
    %231 = vector.extract_strided_slice %211 {offsets = [0, 0, 2], sizes = [4, 4, 1], strides = [1, 1, 1]} : vector<4x4x16xf32> to vector<4x4x1xf32>
    %cst_82 = arith.constant 0.000000e+00 : f32
    %232 = vector.shape_cast %231 : vector<4x4x1xf32> to vector<4x4x1xf32>
    %233 = vector.broadcast %232 : vector<4x4x1xf32> to vector<4x4x16xf32>
    %234 = vector.broadcast %cst_82 : f32 to vector<4x4x16xf32>
    %235 = arith.select %230, %233, %234 : vector<4x4x16xi1>, vector<4x4x16xf32>
    %236 = arith.addf %228, %235 : vector<4x4x16xf32>
    %cst_83 = arith.constant 3.000000e+00 : f32
    %237 = vector.broadcast %cst_83 : f32 to vector<4x4x16xf32>
    %238 = arith.cmpf oeq, %210, %237 : vector<4x4x16xf32>
    %239 = vector.extract_strided_slice %211 {offsets = [0, 0, 3], sizes = [4, 4, 1], strides = [1, 1, 1]} : vector<4x4x16xf32> to vector<4x4x1xf32>
    %cst_84 = arith.constant 0.000000e+00 : f32
    %240 = vector.shape_cast %239 : vector<4x4x1xf32> to vector<4x4x1xf32>
    %241 = vector.broadcast %240 : vector<4x4x1xf32> to vector<4x4x16xf32>
    %242 = vector.broadcast %cst_84 : f32 to vector<4x4x16xf32>
    %243 = arith.select %238, %241, %242 : vector<4x4x16xi1>, vector<4x4x16xf32>
    %244 = arith.addf %236, %243 : vector<4x4x16xf32>
    %cst_85 = arith.constant 4.000000e+00 : f32
    %245 = vector.broadcast %cst_85 : f32 to vector<4x4x16xf32>
    %246 = arith.cmpf oeq, %210, %245 : vector<4x4x16xf32>
    %247 = vector.extract_strided_slice %211 {offsets = [0, 0, 4], sizes = [4, 4, 1], strides = [1, 1, 1]} : vector<4x4x16xf32> to vector<4x4x1xf32>
    %cst_86 = arith.constant 0.000000e+00 : f32
    %248 = vector.shape_cast %247 : vector<4x4x1xf32> to vector<4x4x1xf32>
    %249 = vector.broadcast %248 : vector<4x4x1xf32> to vector<4x4x16xf32>
    %250 = vector.broadcast %cst_86 : f32 to vector<4x4x16xf32>
    %251 = arith.select %246, %249, %250 : vector<4x4x16xi1>, vector<4x4x16xf32>
    %252 = arith.addf %244, %251 : vector<4x4x16xf32>
    %cst_87 = arith.constant 5.000000e+00 : f32
    %253 = vector.broadcast %cst_87 : f32 to vector<4x4x16xf32>
    %254 = arith.cmpf oeq, %210, %253 : vector<4x4x16xf32>
    %255 = vector.extract_strided_slice %211 {offsets = [0, 0, 5], sizes = [4, 4, 1], strides = [1, 1, 1]} : vector<4x4x16xf32> to vector<4x4x1xf32>
    %cst_88 = arith.constant 0.000000e+00 : f32
    %256 = vector.shape_cast %255 : vector<4x4x1xf32> to vector<4x4x1xf32>
    %257 = vector.broadcast %256 : vector<4x4x1xf32> to vector<4x4x16xf32>
    %258 = vector.broadcast %cst_88 : f32 to vector<4x4x16xf32>
    %259 = arith.select %254, %257, %258 : vector<4x4x16xi1>, vector<4x4x16xf32>
    %260 = arith.addf %252, %259 : vector<4x4x16xf32>
    %cst_89 = arith.constant 6.000000e+00 : f32
    %261 = vector.broadcast %cst_89 : f32 to vector<4x4x16xf32>
    %262 = arith.cmpf oeq, %210, %261 : vector<4x4x16xf32>
    %263 = vector.extract_strided_slice %211 {offsets = [0, 0, 6], sizes = [4, 4, 1], strides = [1, 1, 1]} : vector<4x4x16xf32> to vector<4x4x1xf32>
    %cst_90 = arith.constant 0.000000e+00 : f32
    %264 = vector.shape_cast %263 : vector<4x4x1xf32> to vector<4x4x1xf32>
    %265 = vector.broadcast %264 : vector<4x4x1xf32> to vector<4x4x16xf32>
    %266 = vector.broadcast %cst_90 : f32 to vector<4x4x16xf32>
    %267 = arith.select %262, %265, %266 : vector<4x4x16xi1>, vector<4x4x16xf32>
    %268 = arith.addf %260, %267 : vector<4x4x16xf32>
    %cst_91 = arith.constant 7.000000e+00 : f32
    %269 = vector.broadcast %cst_91 : f32 to vector<4x4x16xf32>
    %270 = arith.cmpf oeq, %210, %269 : vector<4x4x16xf32>
    %271 = vector.extract_strided_slice %211 {offsets = [0, 0, 7], sizes = [4, 4, 1], strides = [1, 1, 1]} : vector<4x4x16xf32> to vector<4x4x1xf32>
    %cst_92 = arith.constant 0.000000e+00 : f32
    %272 = vector.shape_cast %271 : vector<4x4x1xf32> to vector<4x4x1xf32>
    %273 = vector.broadcast %272 : vector<4x4x1xf32> to vector<4x4x16xf32>
    %274 = vector.broadcast %cst_92 : f32 to vector<4x4x16xf32>
    %275 = arith.select %270, %273, %274 : vector<4x4x16xi1>, vector<4x4x16xf32>
    %276 = arith.addf %268, %275 : vector<4x4x16xf32>
    %cst_93 = arith.constant 8.000000e+00 : f32
    %277 = vector.broadcast %cst_93 : f32 to vector<4x4x16xf32>
    %278 = arith.cmpf oeq, %210, %277 : vector<4x4x16xf32>
    %279 = vector.extract_strided_slice %211 {offsets = [0, 0, 8], sizes = [4, 4, 1], strides = [1, 1, 1]} : vector<4x4x16xf32> to vector<4x4x1xf32>
    %cst_94 = arith.constant 0.000000e+00 : f32
    %280 = vector.shape_cast %279 : vector<4x4x1xf32> to vector<4x4x1xf32>
    %281 = vector.broadcast %280 : vector<4x4x1xf32> to vector<4x4x16xf32>
    %282 = vector.broadcast %cst_94 : f32 to vector<4x4x16xf32>
    %283 = arith.select %278, %281, %282 : vector<4x4x16xi1>, vector<4x4x16xf32>
    %284 = arith.addf %276, %283 : vector<4x4x16xf32>
    %cst_95 = arith.constant 9.000000e+00 : f32
    %285 = vector.broadcast %cst_95 : f32 to vector<4x4x16xf32>
    %286 = arith.cmpf oeq, %210, %285 : vector<4x4x16xf32>
    %287 = vector.extract_strided_slice %211 {offsets = [0, 0, 9], sizes = [4, 4, 1], strides = [1, 1, 1]} : vector<4x4x16xf32> to vector<4x4x1xf32>
    %cst_96 = arith.constant 0.000000e+00 : f32
    %288 = vector.shape_cast %287 : vector<4x4x1xf32> to vector<4x4x1xf32>
    %289 = vector.broadcast %288 : vector<4x4x1xf32> to vector<4x4x16xf32>
    %290 = vector.broadcast %cst_96 : f32 to vector<4x4x16xf32>
    %291 = arith.select %286, %289, %290 : vector<4x4x16xi1>, vector<4x4x16xf32>
    %292 = arith.addf %284, %291 : vector<4x4x16xf32>
    %cst_97 = arith.constant 1.000000e+01 : f32
    %293 = vector.broadcast %cst_97 : f32 to vector<4x4x16xf32>
    %294 = arith.cmpf oeq, %210, %293 : vector<4x4x16xf32>
    %295 = vector.extract_strided_slice %211 {offsets = [0, 0, 10], sizes = [4, 4, 1], strides = [1, 1, 1]} : vector<4x4x16xf32> to vector<4x4x1xf32>
    %cst_98 = arith.constant 0.000000e+00 : f32
    %296 = vector.shape_cast %295 : vector<4x4x1xf32> to vector<4x4x1xf32>
    %297 = vector.broadcast %296 : vector<4x4x1xf32> to vector<4x4x16xf32>
    %298 = vector.broadcast %cst_98 : f32 to vector<4x4x16xf32>
    %299 = arith.select %294, %297, %298 : vector<4x4x16xi1>, vector<4x4x16xf32>
    %300 = arith.addf %292, %299 : vector<4x4x16xf32>
    %cst_99 = arith.constant 1.100000e+01 : f32
    %301 = vector.broadcast %cst_99 : f32 to vector<4x4x16xf32>
    %302 = arith.cmpf oeq, %210, %301 : vector<4x4x16xf32>
    %303 = vector.extract_strided_slice %211 {offsets = [0, 0, 11], sizes = [4, 4, 1], strides = [1, 1, 1]} : vector<4x4x16xf32> to vector<4x4x1xf32>
    %cst_100 = arith.constant 0.000000e+00 : f32
    %304 = vector.shape_cast %303 : vector<4x4x1xf32> to vector<4x4x1xf32>
    %305 = vector.broadcast %304 : vector<4x4x1xf32> to vector<4x4x16xf32>
    %306 = vector.broadcast %cst_100 : f32 to vector<4x4x16xf32>
    %307 = arith.select %302, %305, %306 : vector<4x4x16xi1>, vector<4x4x16xf32>
    %308 = arith.addf %300, %307 : vector<4x4x16xf32>
    %cst_101 = arith.constant 1.200000e+01 : f32
    %309 = vector.broadcast %cst_101 : f32 to vector<4x4x16xf32>
    %310 = arith.cmpf oeq, %210, %309 : vector<4x4x16xf32>
    %311 = vector.extract_strided_slice %211 {offsets = [0, 0, 12], sizes = [4, 4, 1], strides = [1, 1, 1]} : vector<4x4x16xf32> to vector<4x4x1xf32>
    %cst_102 = arith.constant 0.000000e+00 : f32
    %312 = vector.shape_cast %311 : vector<4x4x1xf32> to vector<4x4x1xf32>
    %313 = vector.broadcast %312 : vector<4x4x1xf32> to vector<4x4x16xf32>
    %314 = vector.broadcast %cst_102 : f32 to vector<4x4x16xf32>
    %315 = arith.select %310, %313, %314 : vector<4x4x16xi1>, vector<4x4x16xf32>
    %316 = arith.addf %308, %315 : vector<4x4x16xf32>
    %cst_103 = arith.constant 1.300000e+01 : f32
    %317 = vector.broadcast %cst_103 : f32 to vector<4x4x16xf32>
    %318 = arith.cmpf oeq, %210, %317 : vector<4x4x16xf32>
    %319 = vector.extract_strided_slice %211 {offsets = [0, 0, 13], sizes = [4, 4, 1], strides = [1, 1, 1]} : vector<4x4x16xf32> to vector<4x4x1xf32>
    %cst_104 = arith.constant 0.000000e+00 : f32
    %320 = vector.shape_cast %319 : vector<4x4x1xf32> to vector<4x4x1xf32>
    %321 = vector.broadcast %320 : vector<4x4x1xf32> to vector<4x4x16xf32>
    %322 = vector.broadcast %cst_104 : f32 to vector<4x4x16xf32>
    %323 = arith.select %318, %321, %322 : vector<4x4x16xi1>, vector<4x4x16xf32>
    %324 = arith.addf %316, %323 : vector<4x4x16xf32>
    %cst_105 = arith.constant 1.400000e+01 : f32
    %325 = vector.broadcast %cst_105 : f32 to vector<4x4x16xf32>
    %326 = arith.cmpf oeq, %210, %325 : vector<4x4x16xf32>
    %327 = vector.extract_strided_slice %211 {offsets = [0, 0, 14], sizes = [4, 4, 1], strides = [1, 1, 1]} : vector<4x4x16xf32> to vector<4x4x1xf32>
    %cst_106 = arith.constant 0.000000e+00 : f32
    %328 = vector.shape_cast %327 : vector<4x4x1xf32> to vector<4x4x1xf32>
    %329 = vector.broadcast %328 : vector<4x4x1xf32> to vector<4x4x16xf32>
    %330 = vector.broadcast %cst_106 : f32 to vector<4x4x16xf32>
    %331 = arith.select %326, %329, %330 : vector<4x4x16xi1>, vector<4x4x16xf32>
    %332 = arith.addf %324, %331 : vector<4x4x16xf32>
    %cst_107 = arith.constant 1.500000e+01 : f32
    %333 = vector.broadcast %cst_107 : f32 to vector<4x4x16xf32>
    %334 = arith.cmpf oeq, %210, %333 : vector<4x4x16xf32>
    %335 = vector.extract_strided_slice %211 {offsets = [0, 0, 15], sizes = [4, 4, 1], strides = [1, 1, 1]} : vector<4x4x16xf32> to vector<4x4x1xf32>
    %cst_108 = arith.constant 0.000000e+00 : f32
    %336 = vector.shape_cast %335 : vector<4x4x1xf32> to vector<4x4x1xf32>
    %337 = vector.broadcast %336 : vector<4x4x1xf32> to vector<4x4x16xf32>
    %338 = vector.broadcast %cst_108 : f32 to vector<4x4x16xf32>
    %339 = arith.select %334, %337, %338 : vector<4x4x16xi1>, vector<4x4x16xf32>
    %340 = arith.addf %332, %339 : vector<4x4x16xf32>
    %c0_109 = arith.constant 0 : index
    %c0_110 = arith.constant 0 : index
    %341 = vector.load %arg12[%c0_109, %c0_110] : memref<8x16xf32, #tpu.memory_space<vmem>>, vector<1x16xf32>
    %c1_111 = arith.constant 1 : index
    %c0_112 = arith.constant 0 : index
    %342 = vector.load %arg12[%c1_111, %c0_112] : memref<8x16xf32, #tpu.memory_space<vmem>>, vector<1x16xf32>
    %c2_113 = arith.constant 2 : index
    %c0_114 = arith.constant 0 : index
    %343 = vector.load %arg12[%c2_113, %c0_114] : memref<8x16xf32, #tpu.memory_space<vmem>>, vector<1x16xf32>
    %c3_115 = arith.constant 3 : index
    %c0_116 = arith.constant 0 : index
    %344 = vector.load %arg12[%c3_115, %c0_116] : memref<8x16xf32, #tpu.memory_space<vmem>>, vector<1x16xf32>
    %345 = vector.shape_cast %340 : vector<4x4x16xf32> to vector<16x16xf32>
    %346 = arith.truncf %345 : vector<16x16xf32> to vector<16x16xbf16>
    %c0_117 = arith.constant 0 : index
    %c0_118 = arith.constant 0 : index
    %347 = vector.load %arg8[%c0_117, %c0_118] : memref<16x48xbf16, #tpu.memory_space<vmem>>, vector<16x48xbf16>
    %cst_119 = arith.constant dense<0.000000e+00> : vector<16x48xf32>
    %348 = tpu.matmul %346, %347, %cst_119 {dimension_numbers = #tpu.dot_dimension_numbers<[1], [0], [0], [1], [0, 0, 1, 1], [], []>} : vector<16x16xbf16>, vector<16x48xbf16>, vector<16x48xf32> -> vector<16x48xf32>
    %349 = vector.extract_strided_slice %348 {offsets = [0, 0], sizes = [16, 16], strides = [1, 1]} : vector<16x48xf32> to vector<16x16xf32>
    %cst_120 = arith.constant 0.000000e+00 : f32
    %350 = vector.broadcast %cst_120 : f32 to vector<16x16xf32>
    %351 = arith.cmpf ogt, %349, %350 : vector<16x16xf32>
    %cst_121 = arith.constant 0.000000e+00 : f32
    %352 = vector.broadcast %cst_121 : f32 to vector<16x16xf32>
    %353 = arith.minimumf %349, %352 : vector<16x16xf32>
    %354 = math.exp %353 : vector<16x16xf32>
    %cst_122 = arith.constant 1.000000e+00 : f32
    %355 = vector.broadcast %cst_122 : f32 to vector<16x16xf32>
    %356 = arith.subf %354, %355 : vector<16x16xf32>
    %357 = arith.select %351, %349, %356 : vector<16x16xi1>, vector<16x16xf32>
    %cst_123 = arith.constant 1.000000e+00 : f32
    %358 = vector.broadcast %cst_123 : f32 to vector<16x16xf32>
    %359 = arith.addf %357, %358 : vector<16x16xf32>
    %360 = vector.extract_strided_slice %348 {offsets = [0, 16], sizes = [16, 16], strides = [1, 1]} : vector<16x48xf32> to vector<16x16xf32>
    %cst_124 = arith.constant 0.000000e+00 : f32
    %361 = vector.broadcast %cst_124 : f32 to vector<16x16xf32>
    %362 = arith.cmpf ogt, %360, %361 : vector<16x16xf32>
    %cst_125 = arith.constant 0.000000e+00 : f32
    %363 = vector.broadcast %cst_125 : f32 to vector<16x16xf32>
    %364 = arith.minimumf %360, %363 : vector<16x16xf32>
    %365 = math.exp %364 : vector<16x16xf32>
    %cst_126 = arith.constant 1.000000e+00 : f32
    %366 = vector.broadcast %cst_126 : f32 to vector<16x16xf32>
    %367 = arith.subf %365, %366 : vector<16x16xf32>
    %368 = arith.select %362, %360, %367 : vector<16x16xi1>, vector<16x16xf32>
    %cst_127 = arith.constant 1.000000e+00 : f32
    %369 = vector.broadcast %cst_127 : f32 to vector<16x16xf32>
    %370 = arith.addf %368, %369 : vector<16x16xf32>
    %371 = vector.extract_strided_slice %348 {offsets = [0, 32], sizes = [16, 16], strides = [1, 1]} : vector<16x48xf32> to vector<16x16xf32>
    %cst_128 = arith.constant 6.250000e-02 : f32
    %372 = vector.broadcast %cst_128 : f32 to vector<16x16xf32>
    %373 = arith.mulf %371, %372 : vector<16x16xf32>
    %374 = vector.extract_strided_slice %359 {offsets = [0, 0], sizes = [16, 8], strides = [1, 1]} : vector<16x16xf32> to vector<16x8xf32>
    %375 = vector.extract_strided_slice %370 {offsets = [0, 0], sizes = [16, 8], strides = [1, 1]} : vector<16x16xf32> to vector<16x8xf32>
    %376 = vector.extract_strided_slice %373 {offsets = [0, 0], sizes = [16, 8], strides = [1, 1]} : vector<16x16xf32> to vector<16x8xf32>
    %377 = arith.truncf %375 : vector<16x8xf32> to vector<16x8xbf16>
    %378 = arith.truncf %376 : vector<16x8xf32> to vector<16x8xbf16>
    %cst_129 = arith.constant dense<0.000000e+00> : vector<8x8xf32>
    %379 = tpu.matmul %377, %378, %cst_129 {dimension_numbers = #tpu.dot_dimension_numbers<[0], [0], [1], [1], [0, 1, 1, 1], [], []>} : vector<16x8xbf16>, vector<16x8xbf16>, vector<8x8xf32> -> vector<8x8xf32>
    %cst_130 = arith.constant dense<0.000000e+00> : vector<8xf32>
    %380 = vector.multi_reduction <add>, %375, %cst_130 [0] : vector<16x8xf32> to vector<8xf32>
    %381 = vector.shape_cast %380 : vector<8xf32> to vector<1x8xf32>
    %382 = vector.broadcast %381 : vector<1x8xf32> to vector<16x8xf32>
    %383 = arith.mulf %374, %382 : vector<16x8xf32>
    %cst_131 = arith.constant dense<0.000000e+00> : vector<16xf32>
    %384 = vector.multi_reduction <add>, %383, %cst_131 [1] : vector<16x8xf32> to vector<16xf32>
    %385 = vector.shape_cast %384 : vector<16xf32> to vector<16x1xf32>
    %cst_132 = arith.constant 9.99999997E-7 : f32
    %386 = vector.broadcast %cst_132 : f32 to vector<16x1xf32>
    %387 = arith.addf %385, %386 : vector<16x1xf32>
    %388 = tpu.reciprocal %387 {approx = true} : vector<16x1xf32> -> vector<16x1xf32>
    %389 = arith.truncf %374 : vector<16x8xf32> to vector<16x8xbf16>
    %390 = arith.truncf %379 : vector<8x8xf32> to vector<8x8xbf16>
    %cst_133 = arith.constant dense<0.000000e+00> : vector<16x8xf32>
    %391 = tpu.matmul %389, %390, %cst_133 {dimension_numbers = #tpu.dot_dimension_numbers<[1], [0], [0], [1], [0, 0, 1, 1], [], []>} : vector<16x8xbf16>, vector<8x8xbf16>, vector<16x8xf32> -> vector<16x8xf32>
    %392 = vector.broadcast %388 : vector<16x1xf32> to vector<16x8xf32>
    %393 = arith.mulf %391, %392 : vector<16x8xf32>
    %cst_134 = arith.constant 1.600000e+01 : f32
    %394 = vector.broadcast %cst_134 : f32 to vector<16x8xf32>
    %395 = arith.mulf %393, %394 : vector<16x8xf32>
    %396 = vector.extract_strided_slice %359 {offsets = [0, 8], sizes = [16, 8], strides = [1, 1]} : vector<16x16xf32> to vector<16x8xf32>
    %397 = vector.extract_strided_slice %370 {offsets = [0, 8], sizes = [16, 8], strides = [1, 1]} : vector<16x16xf32> to vector<16x8xf32>
    %398 = vector.extract_strided_slice %373 {offsets = [0, 8], sizes = [16, 8], strides = [1, 1]} : vector<16x16xf32> to vector<16x8xf32>
    %399 = arith.truncf %397 : vector<16x8xf32> to vector<16x8xbf16>
    %400 = arith.truncf %398 : vector<16x8xf32> to vector<16x8xbf16>
    %cst_135 = arith.constant dense<0.000000e+00> : vector<8x8xf32>
    %401 = tpu.matmul %399, %400, %cst_135 {dimension_numbers = #tpu.dot_dimension_numbers<[0], [0], [1], [1], [0, 1, 1, 1], [], []>} : vector<16x8xbf16>, vector<16x8xbf16>, vector<8x8xf32> -> vector<8x8xf32>
    %cst_136 = arith.constant dense<0.000000e+00> : vector<8xf32>
    %402 = vector.multi_reduction <add>, %397, %cst_136 [0] : vector<16x8xf32> to vector<8xf32>
    %403 = vector.shape_cast %402 : vector<8xf32> to vector<1x8xf32>
    %404 = vector.broadcast %403 : vector<1x8xf32> to vector<16x8xf32>
    %405 = arith.mulf %396, %404 : vector<16x8xf32>
    %cst_137 = arith.constant dense<0.000000e+00> : vector<16xf32>
    %406 = vector.multi_reduction <add>, %405, %cst_137 [1] : vector<16x8xf32> to vector<16xf32>
    %407 = vector.shape_cast %406 : vector<16xf32> to vector<16x1xf32>
    %cst_138 = arith.constant 9.99999997E-7 : f32
    %408 = vector.broadcast %cst_138 : f32 to vector<16x1xf32>
    %409 = arith.addf %407, %408 : vector<16x1xf32>
    %410 = tpu.reciprocal %409 {approx = true} : vector<16x1xf32> -> vector<16x1xf32>
    %411 = arith.truncf %396 : vector<16x8xf32> to vector<16x8xbf16>
    %412 = arith.truncf %401 : vector<8x8xf32> to vector<8x8xbf16>
    %cst_139 = arith.constant dense<0.000000e+00> : vector<16x8xf32>
    %413 = tpu.matmul %411, %412, %cst_139 {dimension_numbers = #tpu.dot_dimension_numbers<[1], [0], [0], [1], [0, 0, 1, 1], [], []>} : vector<16x8xbf16>, vector<8x8xbf16>, vector<16x8xf32> -> vector<16x8xf32>
    %414 = vector.broadcast %410 : vector<16x1xf32> to vector<16x8xf32>
    %415 = arith.mulf %413, %414 : vector<16x8xf32>
    %cst_140 = arith.constant 1.600000e+01 : f32
    %416 = vector.broadcast %cst_140 : f32 to vector<16x8xf32>
    %417 = arith.mulf %415, %416 : vector<16x8xf32>
    %418 = tpu.concatenate %395, %417 in 1 : vector<16x8xf32>, vector<16x8xf32> -> vector<16x16xf32>
    %419 = arith.truncf %418 : vector<16x16xf32> to vector<16x16xbf16>
    %c0_141 = arith.constant 0 : index
    %c0_142 = arith.constant 0 : index
    %420 = vector.load %arg9[%c0_141, %c0_142] : memref<16x16xbf16, #tpu.memory_space<vmem>>, vector<16x16xbf16>
    %cst_143 = arith.constant dense<0.000000e+00> : vector<16x16xf32>
    %421 = tpu.matmul %419, %420, %cst_143 {dimension_numbers = #tpu.dot_dimension_numbers<[1], [0], [0], [1], [0, 0, 1, 1], [], []>} : vector<16x16xbf16>, vector<16x16xbf16>, vector<16x16xf32> -> vector<16x16xf32>
    %cst_144 = arith.constant dense<0.000000e+00> : vector<16xf32>
    %422 = vector.multi_reduction <add>, %421, %cst_144 [1] : vector<16x16xf32> to vector<16xf32>
    %423 = vector.shape_cast %422 : vector<16xf32> to vector<16x1xf32>
    %cst_145 = arith.constant 1.600000e+01 : f32
    %424 = vector.broadcast %cst_145 : f32 to vector<16x1xf32>
    %425 = arith.divf %423, %424 : vector<16x1xf32>
    %426 = vector.broadcast %425 : vector<16x1xf32> to vector<16x16xf32>
    %427 = arith.subf %421, %426 : vector<16x16xf32>
    %428 = arith.mulf %427, %427 : vector<16x16xf32>
    %cst_146 = arith.constant dense<0.000000e+00> : vector<16xf32>
    %429 = vector.multi_reduction <add>, %428, %cst_146 [1] : vector<16x16xf32> to vector<16xf32>
    %430 = vector.shape_cast %429 : vector<16xf32> to vector<16x1xf32>
    %cst_147 = arith.constant 1.600000e+01 : f32
    %431 = vector.broadcast %cst_147 : f32 to vector<16x1xf32>
    %432 = arith.divf %430, %431 : vector<16x1xf32>
    %433 = vector.broadcast %425 : vector<16x1xf32> to vector<16x16xf32>
    %434 = arith.subf %421, %433 : vector<16x16xf32>
    %cst_148 = arith.constant 9.99999974E-6 : f32
    %435 = vector.broadcast %cst_148 : f32 to vector<16x1xf32>
    %436 = arith.addf %432, %435 : vector<16x1xf32>
    %437 = math.rsqrt %436 : vector<16x1xf32>
    %438 = vector.broadcast %437 : vector<16x1xf32> to vector<16x16xf32>
    %439 = arith.mulf %434, %438 : vector<16x16xf32>
    %440 = vector.broadcast %341 : vector<1x16xf32> to vector<16x16xf32>
    %441 = arith.mulf %439, %440 : vector<16x16xf32>
    %442 = vector.broadcast %342 : vector<1x16xf32> to vector<16x16xf32>
    %443 = arith.addf %441, %442 : vector<16x16xf32>
    %c0_149 = arith.constant 0 : index
    %c0_150 = arith.constant 0 : index
    %c0_151 = arith.constant 0 : index
    %444 = vector.load %arg10[%c0_149, %c0_150, %c0_151] : memref<2x16x32xbf16, #tpu.memory_space<vmem>>, vector<1x16x32xbf16>
    %445 = vector.shape_cast %444 : vector<1x16x32xbf16> to vector<16x32xbf16>
    %cst_152 = arith.constant dense<0.000000e+00> : vector<16x32xf32>
    %446 = tpu.matmul %346, %445, %cst_152 {dimension_numbers = #tpu.dot_dimension_numbers<[1], [0], [0], [1], [0, 0, 1, 1], [], []>} : vector<16x16xbf16>, vector<16x32xbf16>, vector<16x32xf32> -> vector<16x32xf32>
    %447 = arith.truncf %443 : vector<16x16xf32> to vector<16x16xbf16>
    %c1_153 = arith.constant 1 : index
    %c0_154 = arith.constant 0 : index
    %c0_155 = arith.constant 0 : index
    %448 = vector.load %arg10[%c1_153, %c0_154, %c0_155] : memref<2x16x32xbf16, #tpu.memory_space<vmem>>, vector<1x16x32xbf16>
    %449 = vector.shape_cast %448 : vector<1x16x32xbf16> to vector<16x32xbf16>
    %cst_156 = arith.constant dense<0.000000e+00> : vector<16x32xf32>
    %450 = tpu.matmul %447, %449, %cst_156 {dimension_numbers = #tpu.dot_dimension_numbers<[1], [0], [0], [1], [0, 0, 1, 1], [], []>} : vector<16x16xbf16>, vector<16x32xbf16>, vector<16x32xf32> -> vector<16x32xf32>
    %451 = arith.addf %446, %450 : vector<16x32xf32>
    %cst_157 = arith.constant 0.000000e+00 : f32
    %452 = vector.broadcast %cst_157 : f32 to vector<16x32xf32>
    %453 = arith.maximumf %451, %452 : vector<16x32xf32>
    %454 = arith.truncf %453 : vector<16x32xf32> to vector<16x32xbf16>
    %c0_158 = arith.constant 0 : index
    %c0_159 = arith.constant 0 : index
    %455 = vector.load %arg11[%c0_158, %c0_159] : memref<32x16xbf16, #tpu.memory_space<vmem>>, vector<32x16xbf16>
    %cst_160 = arith.constant dense<0.000000e+00> : vector<16x16xf32>
    %456 = tpu.matmul %454, %455, %cst_160 {dimension_numbers = #tpu.dot_dimension_numbers<[1], [0], [0], [1], [0, 0, 1, 1], [], []>} : vector<16x32xbf16>, vector<32x16xbf16>, vector<16x16xf32> -> vector<16x16xf32>
    %cst_161 = arith.constant dense<0.000000e+00> : vector<16xf32>
    %457 = vector.multi_reduction <add>, %456, %cst_161 [1] : vector<16x16xf32> to vector<16xf32>
    %458 = vector.shape_cast %457 : vector<16xf32> to vector<16x1xf32>
    %cst_162 = arith.constant 1.600000e+01 : f32
    %459 = vector.broadcast %cst_162 : f32 to vector<16x1xf32>
    %460 = arith.divf %458, %459 : vector<16x1xf32>
    %461 = vector.broadcast %460 : vector<16x1xf32> to vector<16x16xf32>
    %462 = arith.subf %456, %461 : vector<16x16xf32>
    %463 = arith.mulf %462, %462 : vector<16x16xf32>
    %cst_163 = arith.constant dense<0.000000e+00> : vector<16xf32>
    %464 = vector.multi_reduction <add>, %463, %cst_163 [1] : vector<16x16xf32> to vector<16xf32>
    %465 = vector.shape_cast %464 : vector<16xf32> to vector<16x1xf32>
    %cst_164 = arith.constant 1.600000e+01 : f32
    %466 = vector.broadcast %cst_164 : f32 to vector<16x1xf32>
    %467 = arith.divf %465, %466 : vector<16x1xf32>
    %468 = vector.broadcast %460 : vector<16x1xf32> to vector<16x16xf32>
    %469 = arith.subf %456, %468 : vector<16x16xf32>
    %cst_165 = arith.constant 9.99999974E-6 : f32
    %470 = vector.broadcast %cst_165 : f32 to vector<16x1xf32>
    %471 = arith.addf %467, %470 : vector<16x1xf32>
    %472 = math.rsqrt %471 : vector<16x1xf32>
    %473 = vector.broadcast %472 : vector<16x1xf32> to vector<16x16xf32>
    %474 = arith.mulf %469, %473 : vector<16x16xf32>
    %475 = vector.broadcast %343 : vector<1x16xf32> to vector<16x16xf32>
    %476 = arith.mulf %474, %475 : vector<16x16xf32>
    %477 = vector.broadcast %344 : vector<1x16xf32> to vector<16x16xf32>
    %478 = arith.addf %476, %477 : vector<16x16xf32>
    %479 = arith.addf %345, %478 : vector<16x16xf32>
    %480 = vector.shape_cast %479 : vector<16x16xf32> to vector<4x4x16xf32>
    %481 = vector.extract_strided_slice %210 {offsets = [0, 0, 0], sizes = [4, 1, 16], strides = [1, 1, 1]} : vector<4x4x16xf32> to vector<4x1x16xf32>
    %482 = vector.broadcast %481 : vector<4x1x16xf32> to vector<4x16x16xf32>
    %483 = arith.cmpf oeq, %165, %482 : vector<4x16x16xf32>
    %484 = vector.extract_strided_slice %480 {offsets = [0, 0, 0], sizes = [4, 1, 16], strides = [1, 1, 1]} : vector<4x4x16xf32> to vector<4x1x16xf32>
    %cst_166 = arith.constant 0.000000e+00 : f32
    %485 = vector.shape_cast %484 : vector<4x1x16xf32> to vector<4x1x16xf32>
    %486 = vector.broadcast %485 : vector<4x1x16xf32> to vector<4x16x16xf32>
    %487 = vector.broadcast %cst_166 : f32 to vector<4x16x16xf32>
    %488 = arith.select %483, %486, %487 : vector<4x16x16xi1>, vector<4x16x16xf32>
    %489 = arith.addf %163, %488 : vector<4x16x16xf32>
    %490 = vector.extract_strided_slice %210 {offsets = [0, 1, 0], sizes = [4, 1, 16], strides = [1, 1, 1]} : vector<4x4x16xf32> to vector<4x1x16xf32>
    %491 = vector.broadcast %490 : vector<4x1x16xf32> to vector<4x16x16xf32>
    %492 = arith.cmpf oeq, %165, %491 : vector<4x16x16xf32>
    %493 = vector.extract_strided_slice %480 {offsets = [0, 1, 0], sizes = [4, 1, 16], strides = [1, 1, 1]} : vector<4x4x16xf32> to vector<4x1x16xf32>
    %cst_167 = arith.constant 0.000000e+00 : f32
    %494 = vector.shape_cast %493 : vector<4x1x16xf32> to vector<4x1x16xf32>
    %495 = vector.broadcast %494 : vector<4x1x16xf32> to vector<4x16x16xf32>
    %496 = vector.broadcast %cst_167 : f32 to vector<4x16x16xf32>
    %497 = arith.select %492, %495, %496 : vector<4x16x16xi1>, vector<4x16x16xf32>
    %498 = arith.addf %489, %497 : vector<4x16x16xf32>
    %499 = vector.extract_strided_slice %210 {offsets = [0, 2, 0], sizes = [4, 1, 16], strides = [1, 1, 1]} : vector<4x4x16xf32> to vector<4x1x16xf32>
    %500 = vector.broadcast %499 : vector<4x1x16xf32> to vector<4x16x16xf32>
    %501 = arith.cmpf oeq, %165, %500 : vector<4x16x16xf32>
    %502 = vector.extract_strided_slice %480 {offsets = [0, 2, 0], sizes = [4, 1, 16], strides = [1, 1, 1]} : vector<4x4x16xf32> to vector<4x1x16xf32>
    %cst_168 = arith.constant 0.000000e+00 : f32
    %503 = vector.shape_cast %502 : vector<4x1x16xf32> to vector<4x1x16xf32>
    %504 = vector.broadcast %503 : vector<4x1x16xf32> to vector<4x16x16xf32>
    %505 = vector.broadcast %cst_168 : f32 to vector<4x16x16xf32>
    %506 = arith.select %501, %504, %505 : vector<4x16x16xi1>, vector<4x16x16xf32>
    %507 = arith.addf %498, %506 : vector<4x16x16xf32>
    %508 = vector.extract_strided_slice %210 {offsets = [0, 3, 0], sizes = [4, 1, 16], strides = [1, 1, 1]} : vector<4x4x16xf32> to vector<4x1x16xf32>
    %509 = vector.broadcast %508 : vector<4x1x16xf32> to vector<4x16x16xf32>
    %510 = arith.cmpf oeq, %165, %509 : vector<4x16x16xf32>
    %511 = vector.extract_strided_slice %480 {offsets = [0, 3, 0], sizes = [4, 1, 16], strides = [1, 1, 1]} : vector<4x4x16xf32> to vector<4x1x16xf32>
    %cst_169 = arith.constant 0.000000e+00 : f32
    %512 = vector.shape_cast %511 : vector<4x1x16xf32> to vector<4x1x16xf32>
    %513 = vector.broadcast %512 : vector<4x1x16xf32> to vector<4x16x16xf32>
    %514 = vector.broadcast %cst_169 : f32 to vector<4x16x16xf32>
    %515 = arith.select %510, %513, %514 : vector<4x16x16xi1>, vector<4x16x16xf32>
    %516 = arith.addf %507, %515 : vector<4x16x16xf32>
    %517 = vector.shape_cast %516 : vector<4x16x16xf32> to vector<64x16xf32>
    %c0_170 = arith.constant 0 : index
    %c0_171 = arith.constant 0 : index
    %c0_172 = arith.constant 0 : index
    %518 = vector.load %arg13[%c0_170, %c0_171, %c0_172] : memref<1x64x16xf32, #tpu.memory_space<vmem>>, vector<1x64x16xf32>
    %519 = vector.shape_cast %518 : vector<1x64x16xf32> to vector<64x16xf32>
    %520 = vector.shape_cast %517 : vector<64x16xf32> to vector<1x64x16xf32>
    tpu.vector_store %arg13[%c0_170, %c0_171, %c0_172], %520 {strides = array<i32>} : memref<1x64x16xf32, #tpu.memory_space<vmem>>, vector<1x64x16xf32>,
    return
  }
  func.func @transform_0(%arg0: i32) -> (i32, i32, i32) {
    %c0_i32 = arith.constant 0 : i32
    %c0_i32_0 = arith.constant 0 : i32
    %c0_i32_1 = arith.constant 0 : i32
    return %arg0, %c0_i32, %c0_i32_0 : i32, i32, i32
  }
  func.func @transform_1(%arg0: i32) -> (i32, i32) {
    %c0_i32 = arith.constant 0 : i32
    %c0_i32_0 = arith.constant 0 : i32
    %c0_i32_1 = arith.constant 0 : i32
    return %c0_i32, %c0_i32_0 : i32, i32
  }
  func.func @transform_2(%arg0: i32) -> (i32, i32, i32) {
    %c0_i32 = arith.constant 0 : i32
    %c0_i32_0 = arith.constant 0 : i32
    %c0_i32_1 = arith.constant 0 : i32
    %c0_i32_2 = arith.constant 0 : i32
    return %c0_i32, %c0_i32_0, %c0_i32_1 : i32, i32, i32
  }
  func.func @transform_3(%arg0: i32) -> (i32, i32) {
    %c0_i32 = arith.constant 0 : i32
    %c0_i32_0 = arith.constant 0 : i32
    %c0_i32_1 = arith.constant 0 : i32
    return %c0_i32, %c0_i32_0 : i32, i32
  }
  func.func @transform_4(%arg0: i32) -> (i32, i32, i32) {
    %c0_i32 = arith.constant 0 : i32
    %c0_i32_0 = arith.constant 0 : i32
    %c0_i32_1 = arith.constant 0 : i32
    %c0_i32_2 = arith.constant 0 : i32
    return %c0_i32, %c0_i32_0, %c0_i32_1 : i32, i32, i32
  }
  func.func @transform_5(%arg0: i32) -> (i32, i32) {
    %c0_i32 = arith.constant 0 : i32
    %c0_i32_0 = arith.constant 0 : i32
    %c0_i32_1 = arith.constant 0 : i32
    return %c0_i32, %c0_i32_0 : i32, i32
  }
  func.func @transform_6(%arg0: i32) -> (i32, i32) {
    %c0_i32 = arith.constant 0 : i32
    %c0_i32_0 = arith.constant 0 : i32
    %c0_i32_1 = arith.constant 0 : i32
    return %c0_i32, %c0_i32_0 : i32, i32
  }
  func.func @transform_7(%arg0: i32) -> (i32, i32) {
    %c0_i32 = arith.constant 0 : i32
    %c0_i32_0 = arith.constant 0 : i32
    %c0_i32_1 = arith.constant 0 : i32
    return %c0_i32, %c0_i32_0 : i32, i32
  }
  func.func @transform_8(%arg0: i32) -> (i32, i32) {
    %c0_i32 = arith.constant 0 : i32
    %c0_i32_0 = arith.constant 0 : i32
    %c0_i32_1 = arith.constant 0 : i32
    return %c0_i32, %c0_i32_0 : i32, i32
  }
  func.func @transform_9(%arg0: i32) -> (i32, i32, i32) {
    %c0_i32 = arith.constant 0 : i32
    %c0_i32_0 = arith.constant 0 : i32
    %c0_i32_1 = arith.constant 0 : i32
    %c0_i32_2 = arith.constant 0 : i32
    return %c0_i32, %c0_i32_0, %c0_i32_1 : i32, i32, i32
  }
  func.func @transform_10(%arg0: i32) -> (i32, i32) {
    %c0_i32 = arith.constant 0 : i32
    %c0_i32_0 = arith.constant 0 : i32
    %c0_i32_1 = arith.constant 0 : i32
    return %c0_i32, %c0_i32_0 : i32, i32
  }
  func.func @transform_11(%arg0: i32) -> (i32, i32) {
    %c0_i32 = arith.constant 0 : i32
    %c0_i32_0 = arith.constant 0 : i32
    %c0_i32_1 = arith.constant 0 : i32
    return %c0_i32, %c0_i32_0 : i32, i32
  }
  func.func @transform_12(%arg0: i32) -> (i32, i32, i32) {
    %c0_i32 = arith.constant 0 : i32
    %c0_i32_0 = arith.constant 0 : i32
    %c0_i32_1 = arith.constant 0 : i32
    return %arg0, %c0_i32, %c0_i32_0 : i32, i32, i32
  }
}

</mosaic_0001>

<llo_original>
// kernel: window_topk_attention.1
$region0: #{window_topk_attention.1}
  #allocation0 [shape = 'u32[]', space=smem, size = 0x4, offset = 0x4, fixed_abs, tag = 'smem constant byte address 0x4 - core index']
  #allocation1 [shape = 'u32[144,128]{1,0:T(1,128)}', space=vmem, size = 0x12000, scoped, tag = 'internal scratch']
  %s0 = inlined_call_operand.vmem [shape: f32[2,128,16], index: 0, kind: input, shape index: {}]
  %s1 = inlined_call_operand.vmem [shape: bf16[16,48], index: 1, kind: input, shape index: {}]
  %s2 = inlined_call_operand.vmem [shape: bf16[2,64,128], index: 2, kind: input, shape index: {}]
  %s3 = inlined_call_operand.vmem [shape: bf16[16,16], index: 3, kind: input, shape index: {}]
  %s4 = inlined_call_operand.vmem [shape: bf16[2,16,32], index: 4, kind: input, shape index: {}]
  %s5 = inlined_call_operand.vmem [shape: bf16[32,16], index: 5, kind: input, shape index: {}]
  %s6 = inlined_call_operand.vmem [shape: f32[8,16], index: 6, kind: input, shape index: {}]
  %s7 = inlined_call_operand.vmem [shape: bf16[16,48], index: 7, kind: input, shape index: {}]
  %s8 = inlined_call_operand.vmem [shape: bf16[16,16], index: 8, kind: input, shape index: {}]
  %s9 = inlined_call_operand.vmem [shape: bf16[2,16,32], index: 9, kind: input, shape index: {}]
  %s10 = inlined_call_operand.vmem [shape: bf16[32,16], index: 10, kind: input, shape index: {}]
  %s11 = inlined_call_operand.vmem [shape: f32[8,16], index: 11, kind: input, shape index: {}]
  %s12 = inlined_call_operand.vmem [shape: f32[2,64,16], index: 12, kind: output, shape index: {}]
  %s13 = sld [smem:[#allocation0]]
  $region81: #{window_topk_attention.1} parent=0
    _
  %s15 = ssub.s32 1, %s13
  %s16 = scalar_select 0, %s15, %s13
  loop: start=0, step=1, limit=4
  $region2: #{window_topk_attention.1} parent=0 // loop_pre_header
    _
  $region3: #{window_topk_attention.1} parent=0 // loop_header
    %s18 = sphi 0, %s22
    %p19 = scmp.ge.s32.totalorder %s18, 4
    %s28 = sphi 0, %s30
    %s31 = sphi 0, %s28
    %s32 = sphi 0, %s31
    %s48 = sphi 0, %s32
    %s52 = sphi 0, %s52
    %s54 = sphi 0, %s52
    %s55 = sphi 0, %s54
    %s69 = sphi 0, %s55
    %s73 = sphi 0, %s73
    %s75 = sphi 0, %s73
    %s76 = sphi 0, %s75
    %s90 = sphi 0, %s76
    %s94 = sphi 0, %s94
    %s96 = sphi 0, %s94
    %s97 = sphi 0, %s96
    %s111 = sphi 0, %s97
    %s115 = sphi 0, %s115
    %s117 = sphi 0, %s115
    %s118 = sphi 0, %s117
    %s132 = sphi 0, %s118
    %s136 = sphi 0, %s136
    %s138 = sphi 0, %s136
    %s139 = sphi 0, %s138
    %s153 = sphi 0, %s139
    %s157 = sphi 0, %s157
    %s159 = sphi 0, %s157
    %s160 = sphi 0, %s159
    %s174 = sphi 0, %s160
    %s178 = sphi 0, %s178
    %s180 = sphi 0, %s178
    %s181 = sphi 0, %s180
    %s195 = sphi 0, %s181
    %s199 = sphi 0, %s199
    %s201 = sphi 0, %s199
    %s202 = sphi 0, %s201
    %s216 = sphi 0, %s202
    %s220 = sphi 0, %s220
    %s222 = sphi 0, %s220
    %s223 = sphi 0, %s222
    %s237 = sphi 0, %s223
    %s241 = sphi 0, %s241
    %s243 = sphi 0, %s241
    %s244 = sphi 0, %s243
    %s258 = sphi 0, %s244
    %s262 = sphi 0, %s262
    %s264 = sphi 0, %s262
    %s265 = sphi 0, %s264
    %s279 = sphi 0, %s265
    %s285 = sphi 0, %s287
    %s288 = sphi 0, %s285
    %s289 = sphi 0, %s288
    %s305 = sphi 0, %s289
  $region4: #{window_topk_attention.1} parent=0 // loop_header_branch
    %21 = sbr.rel (%p19) target = $region8
  $region5: #{window_topk_attention.1} parent=0 // loop_body
    %s23 = ssub.s32 %s18, 1
    %s24 = ssub.s32 %s18, 2
    %s25 = sadd.s32 %s18, 1
    %s26 = ssub.s32 %s18, %s25
    %p27 = scmp.eq.s32.totalorder %s26, 0
    %s29 = sadd.s32 %s28, 1
    %s30 = scalar_select %p27, %s28, %s29
    %p33 = pneg %p27
    %p34 = scmp.eq.s32.totalorder %s18, 1
    %p35 = por %p33, %p34
    %p36 = scmp.ne.s32.totalorder %s28, %s31
    %p37 = scmp.eq.s32.totalorder %s18, 0
    %p38 = por %p36, %p37
    %p39 = scmp.ne.s32.totalorder %s28, %s31
    %p40 = scmp.eq.s32.totalorder %s23, 1
    %p41 = por %p39, %p40
    %p42 = scmp.ne.s32.totalorder %s31, %s32
    %p43 = scmp.eq.s32.totalorder %s23, 0
    %p44 = por %p42, %p43
    %p45 = scmp.ne.s32.totalorder %s31, %s32
    %p46 = scmp.eq.s32.totalorder %s24, 1
    %p47 = por %p45, %p46
    %p49 = scmp.ne.s32.totalorder %s32, %s48
    %p50 = scmp.eq.s32.totalorder %s24, 0
    %p51 = por %p49, %p50
    %s53 = sadd.s32 %s52, 1
    %p56 = scmp.eq.s32.totalorder %s18, 1
    %p57 = scmp.ne.s32.totalorder %s52, %s54
    %p58 = scmp.eq.s32.totalorder %s18, 0
    %p59 = por %p57, %p58
    %p60 = scmp.ne.s32.totalorder %s52, %s54
    %p61 = scmp.eq.s32.totalorder %s23, 1
    %p62 = por %p60, %p61
    %p63 = scmp.ne.s32.totalorder %s54, %s55
    %p64 = scmp.eq.s32.totalorder %s23, 0
    %p65 = por %p63, %p64
    %p66 = scmp.ne.s32.totalorder %s54, %s55
    %p67 = scmp.eq.s32.totalorder %s24, 1
    %p68 = por %p66, %p67
    %p70 = scmp.ne.s32.totalorder %s55, %s69
    %p71 = scmp.eq.s32.totalorder %s24, 0
    %p72 = por %p70, %p71
    %s74 = sadd.s32 %s73, 1
    %p77 = scmp.eq.s32.totalorder %s18, 1
    %p78 = scmp.ne.s32.totalorder %s73, %s75
    %p79 = scmp.eq.s32.totalorder %s18, 0
    %p80 = por %p78, %p79
    %p81 = scmp.ne.s32.totalorder %s73, %s75
    %p82 = scmp.eq.s32.totalorder %s23, 1
    %p83 = por %p81, %p82
    %p84 = scmp.ne.s32.totalorder %s75, %s76
    %p85 = scmp.eq.s32.totalorder %s23, 0
    %p86 = por %p84, %p85
    %p87 = scmp.ne.s32.totalorder %s75, %s76
    %p88 = scmp.eq.s32.totalorder %s24, 1
    %p89 = por %p87, %p88
    %p91 = scmp.ne.s32.totalorder %s76, %s90
    %p92 = scmp.eq.s32.totalorder %s24, 0
    %p93 = por %p91, %p92
    %s95 = sadd.s32 %s94, 1
    %p98 = scmp.eq.s32.totalorder %s18, 1
    %p99 = scmp.ne.s32.totalorder %s94, %s96
    %p100 = scmp.eq.s32.totalorder %s18, 0
    %p101 = por %p99, %p100
    %p102 = scmp.ne.s32.totalorder %s94, %s96
    %p103 = scmp.eq.s32.totalorder %s23, 1
    %p104 = por %p102, %p103
    %p105 = scmp.ne.s32.totalorder %s96, %s97
    %p106 = scmp.eq.s32.totalorder %s23, 0
    %p107 = por %p105, %p106
    %p108 = scmp.ne.s32.totalorder %s96, %s97
    %p109 = scmp.eq.s32.totalorder %s24, 1
    %p110 = por %p108, %p109
    %p112 = scmp.ne.s32.totalorder %s97, %s111
    %p113 = scmp.eq.s32.totalorder %s24, 0
    %p114 = por %p112, %p113
    %s116 = sadd.s32 %s115, 1
    %p119 = scmp.eq.s32.totalorder %s18, 1
    %p120 = scmp.ne.s32.totalorder %s115, %s117
    %p121 = scmp.eq.s32.totalorder %s18, 0
    %p122 = por %p120, %p121
    %p123 = scmp.ne.s32.totalorder %s115, %s117
    %p124 = scmp.eq.s32.totalorder %s23, 1
    %p125 = por %p123, %p124
    %p126 = scmp.ne.s32.totalorder %s117, %s118
    %p127 = scmp.eq.s32.totalorder %s23, 0
    %p128 = por %p126, %p127
    %p129 = scmp.ne.s32.totalorder %s117, %s118
    %p130 = scmp.eq.s32.totalorder %s24, 1
    %p131 = por %p129, %p130
    %p133 = scmp.ne.s32.totalorder %s118, %s132
    %p134 = scmp.eq.s32.totalorder %s24, 0
    %p135 = por %p133, %p134
    %s137 = sadd.s32 %s136, 1
    %p140 = scmp.eq.s32.totalorder %s18, 1
    %p141 = scmp.ne.s32.totalorder %s136, %s138
    %p142 = scmp.eq.s32.totalorder %s18, 0
    %p143 = por %p141, %p142
    %p144 = scmp.ne.s32.totalorder %s136, %s138
    %p145 = scmp.eq.s32.totalorder %s23, 1
    %p146 = por %p144, %p145
    %p147 = scmp.ne.s32.totalorder %s138, %s139
    %p148 = scmp.eq.s32.totalorder %s23, 0
    %p149 = por %p147, %p148
    %p150 = scmp.ne.s32.totalorder %s138, %s139
    %p151 = scmp.eq.s32.totalorder %s24, 1
    %p152 = por %p150, %p151
    %p154 = scmp.ne.s32.totalorder %s139, %s153
    %p155 = scmp.eq.s32.totalorder %s24, 0
    %p156 = por %p154, %p155
    %s158 = sadd.s32 %s157, 1
    %p161 = scmp.eq.s32.totalorder %s18, 1
    %p162 = scmp.ne.s32.totalorder %s157, %s159
    %p163 = scmp.eq.s32.totalorder %s18, 0
    %p164 = por %p162, %p163
    %p165 = scmp.ne.s32.totalorder %s157, %s159
    %p166 = scmp.eq.s32.totalorder %s23, 1
    %p167 = por %p165, %p166
    %p168 = scmp.ne.s32.totalorder %s159, %s160
    %p169 = scmp.eq.s32.totalorder %s23, 0
    %p170 = por %p168, %p169
    %p171 = scmp.ne.s32.totalorder %s159, %s160
    %p172 = scmp.eq.s32.totalorder %s24, 1
    %p173 = por %p171, %p172
    %p175 = scmp.ne.s32.totalorder %s160, %s174
    %p176 = scmp.eq.s32.totalorder %s24, 0
    %p177 = por %p175, %p176
    %s179 = sadd.s32 %s178, 1
    %p182 = scmp.eq.s32.totalorder %s18, 1
    %p183 = scmp.ne.s32.totalorder %s178, %s180
    %p184 = scmp.eq.s32.totalorder %s18, 0
    %p185 = por %p183, %p184
    %p186 = scmp.ne.s32.totalorder %s178, %s180
    %p187 = scmp.eq.s32.totalorder %s23, 1
    %p188 = por %p186, %p187
    %p189 = scmp.ne.s32.totalorder %s180, %s181
    %p190 = scmp.eq.s32.totalorder %s23, 0
    %p191 = por %p189, %p190
    %p192 = scmp.ne.s32.totalorder %s180, %s181
    %p193 = scmp.eq.s32.totalorder %s24, 1
    %p194 = por %p192, %p193
    %p196 = scmp.ne.s32.totalorder %s181, %s195
    %p197 = scmp.eq.s32.totalorder %s24, 0
    %p198 = por %p196, %p197
    %s200 = sadd.s32 %s199, 1
    %p203 = scmp.eq.s32.totalorder %s18, 1
    %p204 = scmp.ne.s32.totalorder %s199, %s201
    %p205 = scmp.eq.s32.totalorder %s18, 0
    %p206 = por %p204, %p205
    %p207 = scmp.ne.s32.totalorder %s199, %s201
    %p208 = scmp.eq.s32.totalorder %s23, 1
    %p209 = por %p207, %p208
    %p210 = scmp.ne.s32.totalorder %s201, %s202
    %p211 = scmp.eq.s32.totalorder %s23, 0
    %p212 = por %p210, %p211
    %p213 = scmp.ne.s32.totalorder %s201, %s202
    %p214 = scmp.eq.s32.totalorder %s24, 1
    %p215 = por %p213, %p214
    %p217 = scmp.ne.s32.totalorder %s202, %s216
    %p218 = scmp.eq.s32.totalorder %s24, 0
    %p219 = por %p217, %p218
    %s221 = sadd.s32 %s220, 1
    %p224 = scmp.eq.s32.totalorder %s18, 1
    %p225 = scmp.ne.s32.totalorder %s220, %s222
    %p226 = scmp.eq.s32.totalorder %s18, 0
    %p227 = por %p225, %p226
    %p228 = scmp.ne.s32.totalorder %s220, %s222
    %p229 = scmp.eq.s32.totalorder %s23, 1
    %p230 = por %p228, %p229
    %p231 = scmp.ne.s32.totalorder %s222, %s223
    %p232 = scmp.eq.s32.totalorder %s23, 0
    %p233 = por %p231, %p232
    %p234 = scmp.ne.s32.totalorder %s222, %s223
    %p235 = scmp.eq.s32.totalorder %s24, 1
    %p236 = por %p234, %p235
    %p238 = scmp.ne.s32.totalorder %s223, %s237
    %p239 = scmp.eq.s32.totalorder %s24, 0
    %p240 = por %p238, %p239
    %s242 = sadd.s32 %s241, 1
    %p245 = scmp.eq.s32.totalorder %s18, 1
    %p246 = scmp.ne.s32.totalorder %s241, %s243
    %p247 = scmp.eq.s32.totalorder %s18, 0
    %p248 = por %p246, %p247
    %p249 = scmp.ne.s32.totalorder %s241, %s243
    %p250 = scmp.eq.s32.totalorder %s23, 1
    %p251 = por %p249, %p250
    %p252 = scmp.ne.s32.totalorder %s243, %s244
    %p253 = scmp.eq.s32.totalorder %s23, 0
    %p254 = por %p252, %p253
    %p255 = scmp.ne.s32.totalorder %s243, %s244
    %p256 = scmp.eq.s32.totalorder %s24, 1
    %p257 = por %p255, %p256
    %p259 = scmp.ne.s32.totalorder %s244, %s258
    %p260 = scmp.eq.s32.totalorder %s24, 0
    %p261 = por %p259, %p260
    %s263 = sadd.s32 %s262, 1
    %p266 = scmp.eq.s32.totalorder %s18, 1
    %p267 = scmp.ne.s32.totalorder %s262, %s264
    %p268 = scmp.eq.s32.totalorder %s18, 0
    %p269 = por %p267, %p268
    %p270 = scmp.ne.s32.totalorder %s262, %s264
    %p271 = scmp.eq.s32.totalorder %s23, 1
    %p272 = por %p270, %p271
    %p273 = scmp.ne.s32.totalorder %s264, %s265
    %p274 = scmp.eq.s32.totalorder %s23, 0
    %p275 = por %p273, %p274
    %p276 = scmp.ne.s32.totalorder %s264, %s265
    %p277 = scmp.eq.s32.totalorder %s24, 1
    %p278 = por %p276, %p277
    %p280 = scmp.ne.s32.totalorder %s265, %s279
    %p281 = scmp.eq.s32.totalorder %s24, 0
    %p282 = por %p280, %p281
    %s283 = ssub.s32 %s18, %s25
    %p284 = scmp.eq.s32.totalorder %s283, 0
    %s286 = sadd.s32 %s285, 1
    %s287 = scalar_select %p284, %s285, %s286
    %p290 = pneg %p284
    %p291 = scmp.eq.s32.totalorder %s18, 1
    %p292 = por %p290, %p291
    %p293 = scmp.ne.s32.totalorder %s285, %s288
    %p294 = scmp.eq.s32.totalorder %s18, 0
    %p295 = por %p293, %p294
    %p296 = scmp.ne.s32.totalorder %s285, %s288
    %p297 = scmp.eq.s32.totalorder %s23, 1
    %p298 = por %p296, %p297
    %p299 = scmp.ne.s32.totalorder %s288, %s289
    %p300 = scmp.eq.s32.totalorder %s23, 0
    %p301 = por %p299, %p300
    %p302 = scmp.ne.s32.totalorder %s288, %s289
    %p303 = scmp.eq.s32.totalorder %s24, 1
    %p304 = por %p302, %p303
    %p306 = scmp.ne.s32.totalorder %s289, %s305
    %p307 = scmp.eq.s32.totalorder %s24, 0
    %p308 = por %p306, %p307
    %p309 = scmp.le.s32.totalorder 1, %s18
    %p310 = scmp.lt.s32.totalorder %s18, 3
    %p311 = pnand %p309, %p310
    %p312 = pneg %p311
    // Predicated region
    $region9: #{window_topk_attention.1} parent=5 // pred_check
      _
    $region10: #{window_topk_attention.1} parent=5 // pred_check_branch
      %314 = sbr.rel (%p311) target = $region12
    $region11: #{window_topk_attention.1} parent=5 // pred_region
      %s315 = ssub.s32 %s18, 1
      // Predicated region
      $region13: #{window_topk_attention.1} parent=11 // pred_check
        %p316 = pneg %p65
      $region14: #{window_topk_attention.1} parent=11 // pred_check_branch
        %318 = sbr.rel (%p316) target = $region16
      $region15: #{window_topk_attention.1} parent=11 // pred_region
        _
      $region16: #{window_topk_attention.1} parent=11 // pred_fallthru
        _
      // Predicated region
      $region17: #{window_topk_attention.1} parent=11 // pred_check
        %p319 = pneg %p86
      $region18: #{window_topk_attention.1} parent=11 // pred_check_branch
        %321 = sbr.rel (%p319) target = $region20
      $region19: #{window_topk_attention.1} parent=11 // pred_region
        _
      $region20: #{window_topk_attention.1} parent=11 // pred_fallthru
        _
      // Predicated region
      $region21: #{window_topk_attention.1} parent=11 // pred_check
        %p322 = pneg %p107
      $region22: #{window_topk_attention.1} parent=11 // pred_check_branch
        %324 = sbr.rel (%p322) target = $region24
      $region23: #{window_topk_attention.1} parent=11 // pred_region
        _
      $region24: #{window_topk_attention.1} parent=11 // pred_fallthru
        _
      // Predicated region
      $region25: #{window_topk_attention.1} parent=11 // pred_check
        %p325 = pneg %p128
      $region26: #{window_topk_attention.1} parent=11 // pred_check_branch
        %327 = sbr.rel (%p325) target = $region28
      $region27: #{window_topk_attention.1} parent=11 // pred_region
        _
      $region28: #{window_topk_attention.1} parent=11 // pred_fallthru
        _
      // Predicated region
      $region29: #{window_topk_attention.1} parent=11 // pred_check
        %p328 = pneg %p149
      $region30: #{window_topk_attention.1} parent=11 // pred_check_branch
        %330 = sbr.rel (%p328) target = $region32
      $region31: #{window_topk_attention.1} parent=11 // pred_region
        _
      $region32: #{window_topk_attention.1} parent=11 // pred_fallthru
        _
      // Predicated region
      $region33: #{window_topk_attention.1} parent=11 // pred_check
        %p331 = pneg %p170
      $region34: #{window_topk_attention.1} parent=11 // pred_check_branch
        %333 = sbr.rel (%p331) target = $region36
      $region35: #{window_topk_attention.1} parent=11 // pred_region
        _
      $region36: #{window_topk_attention.1} parent=11 // pred_fallthru
        _
      // Predicated region
      $region37: #{window_topk_attention.1} parent=11 // pred_check
        %p334 = pneg %p191
      $region38: #{window_topk_attention.1} parent=11 // pred_check_branch
        %336 = sbr.rel (%p334) target = $region40
      $region39: #{window_topk_attention.1} parent=11 // pred_region
        _
      $region40: #{window_topk_attention.1} parent=11 // pred_fallthru
        _
      // Predicated region
      $region41: #{window_topk_attention.1} parent=11 // pred_check
        %p337 = pneg %p212
      $region42: #{window_topk_attention.1} parent=11 // pred_check_branch
        %339 = sbr.rel (%p337) target = $region44
      $region43: #{window_topk_attention.1} parent=11 // pred_region
        _
      $region44: #{window_topk_attention.1} parent=11 // pred_fallthru
        _
      // Predicated region
      $region45: #{window_topk_attention.1} parent=11 // pred_check
        %p340 = pneg %p233
      $region46: #{window_topk_attention.1} parent=11 // pred_check_branch
        %342 = sbr.rel (%p340) target = $region48
      $region47: #{window_topk_attention.1} parent=11 // pred_region
        _
      $region48: #{window_topk_attention.1} parent=11 // pred_fallthru
        _
      // Predicated region
      $region49: #{window_topk_attention.1} parent=11 // pred_check
        %p343 = pneg %p254
      $region50: #{window_topk_attention.1} parent=11 // pred_check_branch
        %345 = sbr.rel (%p343) target = $region52
      $region51: #{window_topk_attention.1} parent=11 // pred_region
        _
      $region52: #{window_topk_attention.1} parent=11 // pred_fallthru
        _
      // Predicated region
      $region53: #{window_topk_attention.1} parent=11 // pred_check
        %p346 = pneg %p275
      $region54: #{window_topk_attention.1} parent=11 // pred_check_branch
        %348 = sbr.rel (%p346) target = $region56
      $region55: #{window_topk_attention.1} parent=11 // pred_region
        _
      $region56: #{window_topk_attention.1} parent=11 // pred_fallthru
        _
    $region12: #{window_topk_attention.1} parent=5 // pred_fallthru
      _
    %p349 = scmp.lt.s32.totalorder %s18, 2
    // Predicated region
    $region57: #{window_topk_attention.1} parent=5 // pred_check
      %p350 = pneg %p349
    $region58: #{window_topk_attention.1} parent=5 // pred_check_branch
      %352 = sbr.rel (%p350) target = $region60
    $region59: #{window_topk_attention.1} parent=5 // pred_region
      // Predicated region
      $region61: #{window_topk_attention.1} parent=59 // pred_check
        %p353 = pneg %p38
      $region62: #{window_topk_attention.1} parent=59 // pred_check_branch
        %355 = sbr.rel (%p353) target = $region64
      $region63: #{window_topk_attention.1} parent=59 // pred_region
        %p356 = scmp.lt.s32.totalorder %s18, 1
        %s357 = scalar_select %p356, %s18, 1
        %s358 = smul.addr %s357, 16
        %s359 = smul.addr %s358, 8
        %s360 = scalar_lea.vmem %s0, %s359
      $region64: #{window_topk_attention.1} parent=59 // pred_fallthru
        _
    $region60: #{window_topk_attention.1} parent=5 // pred_fallthru
      _
    %p361 = scmp.le.s32.totalorder 1, %s18
    %p362 = scmp.lt.s32.totalorder %s18, 3
    %p363 = pnand %p361, %p362
    %p364 = pneg %p363
    // Predicated region
    $region65: #{window_topk_attention.1} parent=5 // pred_check
      _
    $region66: #{window_topk_attention.1} parent=5 // pred_check_branch
      %366 = sbr.rel (%p363) target = $region68
    $region67: #{window_topk_attention.1} parent=5 // pred_region
      %s367 = ssub.s32 %s18, 1
      %p368 = scmp.lt.s32.totalorder %s23, 1
      %s369 = scalar_select %p368, %s23, 1
      %s370 = smul.addr %s369, 16
      %s371 = smul.addr %s370, 8
      %s372 = scalar_lea.vmem %s0, %s371
      %p373 = pneg %p44
      %p374 = pneg %p41
      %p375 = pneg %p65
      %p376 = pneg %p62
      %p377 = pneg %p86
      %p378 = pneg %p83
      %p379 = pneg %p107
      %p380 = pneg %p104
      %p381 = pneg %p128
      %p382 = pneg %p125
      %p383 = pneg %p149
      %p384 = pneg %p146
      %p385 = pneg %p170
      %p386 = pneg %p167
      %p387 = pneg %p191
      %p388 = pneg %p188
      %p389 = pneg %p212
      %p390 = pneg %p209
      %p391 = pneg %p233
      %p392 = pneg %p230
      %p393 = pneg %p254
      %p394 = pneg %p251
      %p395 = pneg %p275
      %p396 = pneg %p272
      %p397 = pneg %p301
      %p398 = pneg %p298
      %p399 = scmp.lt.s32.totalorder %s23, 1
      %s400 = scalar_select %p399, %s23, 1
      %s401 = smul.addr %s400, 8
      %s402 = smul.addr %s401, 8
      %s403 = scalar_lea.vmem %s12, %s402
      %p404 = scmp.lt.s32.totalorder %s23, 1
      %s405 = scalar_select %p404, %s23, 1
      %s406 = smul.addr %s405, 16
      %s407 = smul.addr %s406, 8
      %s408 = scalar_lea.vmem %s0, %s407
      %p409 = scmp.lt.s32.totalorder %s23, 1
      %s410 = scalar_select %p409, %s23, 1
      %s411 = smul.addr %s410, 8
      %s412 = smul.addr %s411, 8
      %s413 = scalar_lea.vmem %s12, %s412
      %v415 = vld [vmem:[%s408] sm:$0xff]
      %v416 = vld [vmem:[%s408 + $0x8] sm:$0xff]
      %v417 = vld [vmem:[%s408 + $0x10] sm:$0xff]
      %v418 = vld [vmem:[%s408 + $0x18] sm:$0xff]
      %v419 = vld [vmem:[%s408 + $0x20] sm:$0xff]
      %v420 = vld [vmem:[%s408 + $0x28] sm:$0xff]
      %v421 = vld [vmem:[%s408 + $0x30] sm:$0xff]
      %v422 = vld [vmem:[%s408 + $0x38] sm:$0xff]
      %v423 = vld [vmem:[%s408 + $0x40] sm:$0xff]
      %v424 = vld [vmem:[%s408 + $0x48] sm:$0xff]
      %v425 = vld [vmem:[%s408 + $0x50] sm:$0xff]
      %v426 = vld [vmem:[%s408 + $0x58] sm:$0xff]
      %v427 = vld [vmem:[%s408 + $0x60] sm:$0xff]
      %v428 = vld [vmem:[%s408 + $0x68] sm:$0xff]
      %v429 = vld [vmem:[%s408 + $0x70] sm:$0xff]
      %v430 = vld [vmem:[%s408 + $0x78] sm:$0xff]
      %v431 = vpack.c.bf16 %v416, %v415
      %v432 = vpack.c.bf16 %v418, %v417
      %v433 = vpack.c.bf16 %v420, %v419
      %v434 = vpack.c.bf16 %v422, %v421
      %v435 = vpack.c.bf16 %v424, %v423
      %v436 = vpack.c.bf16 %v426, %v425
      %v437 = vpack.c.bf16 %v428, %v427
      %v438 = vpack.c.bf16 %v430, %v429
      %v439 = vld [vmem:[%s6] sm:$0x1]
      %v440 = vld [vmem:[%s6 + $0x1] sm:$0x1]
      %v441 = vld [vmem:[%s6 + $0x2] sm:$0x1]
      %v442 = vld [vmem:[%s6 + $0x3] sm:$0x1]
      %v443 = vld [vmem:[%s6 + $0x4] sm:$0x1]
      %v444 = vld [vmem:[%s6 + $0x5] sm:$0x1]
      %v445 = vld [vmem:[%s6 + $0x6] sm:$0x1]
      %v446 = vld [vmem:[%s1] sm:$0xf]
      %v447 = vld [vmem:[%s1 + $0x4] sm:$0xf]
      %v450 = vunpack.c.l.b16 %v446
      %v451 = vunpack.c.l.b16 %v447
      %v452 = vpack.c.b16 %v451, %v450
      %vm454 = vcmask 130048
      %v456 = vsel %vm454, %v431, 0
      %v459 = vsel %vm454, %v432, 0
      %v462 = vsel %vm454, %v433, 0
      %v465 = vsel %vm454, %v434, 0
      %v468 = vsel %vm454, %v435, 0
      %v471 = vsel %vm454, %v436, 0
      %v474 = vsel %vm454, %v437, 0
      %v477 = vsel %vm454, %v438, 0
      %479 = vmatprep.subr.bf16.mxu0 0
      %480 = vmatpush1.bf16.msra.mxu0 %v452
      %481 = vmatprep.subr.bf16.mxu0 0
      %482 = vmatpush1.bf16.msra.mxu0 0
      %483 = vmatprep.subr.bf16.mxu0 0
      %484 = vmatpush1.bf16.msra.mxu0 0
      %485 = vmatprep.subr.bf16.mxu0 0
      %486 = vmatpush1.bf16.msra.mxu0 0
      %487 = vmatprep.subr.bf16.mxu0 0
      %488 = vmatpush1.bf16.msra.mxu0 0
      %489 = vmatprep.subr.bf16.mxu0 0
      %490 = vmatpush1.bf16.msra.mxu0 0
      %491 = vmatprep.subr.bf16.mxu0 0
      %492 = vmatpush1.bf16.msra.mxu0 0
      %493 = vmatprep.subr.bf16.mxu0 0
      %494 = vmatpush1.bf16.msra.mxu0 0
      %495 = vmatprep.subr.bf16.mxu0 0
      %496 = vmatpush1.bf16.msra.mxu0 0
      %497 = vmatprep.subr.bf16.mxu0 0
      %498 = vmatpush1.bf16.msra.mxu0 0
      %499 = vmatprep.subr.bf16.mxu0 0
      %500 = vmatpush1.bf16.msra.mxu0 0
      %501 = vmatprep.subr.bf16.mxu0 0
      %502 = vmatpush1.bf16.msra.mxu0 0
      %503 = vmatprep.subr.bf16.mxu0 0
      %504 = vmatpush1.bf16.msra.mxu0 0
      %505 = vmatprep.subr.bf16.mxu0 0
      %506 = vmatpush1.bf16.msra.mxu0 0
      %507 = vmatprep.subr.bf16.mxu0 0
      %508 = vmatpush1.bf16.msra.mxu0 0
      %509 = vmatprep.subr.bf16.mxu0 0
      %510 = vmatpush1.bf16.msra.mxu0 0
      %511 = vmatprep.mubr.bf16.mxu0 0
      %512 = vmatmul.mubr.bf16.gmra.mrb[0].mxu0 %v456
      %v513 = vpop.f32.mrb[0].mxu0
      %v514 = vadd.f32 0.0, %v513
      %v515 = vpop.f32.mrb[0].mxu0
      %v516 = vpop.f32.mrb[0].mxu0
      %v517 = vadd.f32 0.0, %v516
      %v518 = vpop.f32.mrb[0].mxu0
      %519 = vmatprep.mubr.bf16.mxu0 0
      %520 = vmatmul.mubr.bf16.gmra.mrb[0].mxu0 %v459
      %v521 = vpop.f32.mrb[0].mxu0
      %v522 = vadd.f32 0.0, %v521
      %v523 = vpop.f32.mrb[0].mxu0
      %v524 = vpop.f32.mrb[0].mxu0
      %v525 = vadd.f32 0.0, %v524
      %v526 = vpop.f32.mrb[0].mxu0
      %527 = vmatprep.mubr.bf16.mxu0 0
      %528 = vmatmul.mubr.bf16.gmra.mrb[0].mxu0 %v462
      %v529 = vpop.f32.mrb[0].mxu0
      %v530 = vadd.f32 0.0, %v529
      %v531 = vpop.f32.mrb[0].mxu0
      %v532 = vpop.f32.mrb[0].mxu0
      %v533 = vadd.f32 0.0, %v532
      %v534 = vpop.f32.mrb[0].mxu0
      %535 = vmatprep.mubr.bf16.mxu0 0
      %536 = vmatmul.mubr.bf16.gmra.mrb[0].mxu0 %v465
      %v537 = vpop.f32.mrb[0].mxu0
      %v538 = vadd.f32 0.0, %v537
      %v539 = vpop.f32.mrb[0].mxu0
      %v540 = vpop.f32.mrb[0].mxu0
      %v541 = vadd.f32 0.0, %v540
      %v542 = vpop.f32.mrb[0].mxu0
      %543 = vmatprep.mubr.bf16.mxu0 0
      %544 = vmatmul.mubr.bf16.gmra.mrb[0].mxu0 %v468
      %v545 = vpop.f32.mrb[0].mxu0
      %v546 = vadd.f32 0.0, %v545
      %v547 = vpop.f32.mrb[0].mxu0
      %v548 = vpop.f32.mrb[0].mxu0
      %v549 = vadd.f32 0.0, %v548
      %v550 = vpop.f32.mrb[0].mxu0
      %551 = vmatprep.mubr.bf16.mxu0 0
      %552 = vmatmul.mubr.bf16.gmra.mrb[0].mxu0 %v471
      %v553 = vpop.f32.mrb[0].mxu0
      %v554 = vadd.f32 0.0, %v553
      %v555 = vpop.f32.mrb[0].mxu0
      %v556 = vpop.f32.mrb[0].mxu0
      %v557 = vadd.f32 0.0, %v556
      %v558 = vpop.f32.mrb[0].mxu0
      %559 = vmatprep.mubr.bf16.mxu0 0
      %560 = vmatmul.mubr.bf16.gmra.mrb[0].mxu0 %v474
      %v561 = vpop.f32.mrb[0].mxu0
      %v562 = vadd.f32 0.0, %v561
      %v563 = vpop.f32.mrb[0].mxu0
      %v564 = vpop.f32.mrb[0].mxu0
      %v565 = vadd.f32 0.0, %v564
      %v566 = vpop.f32.mrb[0].mxu0
      %567 = vmatprep.mubr.bf16.mxu0 0
      %568 = vmatmul.mubr.bf16.gmra.mrb[0].mxu0 %v477
      %v569 = vpop.f32.mrb[0].mxu0
      %v570 = vadd.f32 0.0, %v569
      %v571 = vpop.f32.mrb[0].mxu0
      %v572 = vpop.f32.mrb[0].mxu0
      %v573 = vadd.f32 0.0, %v572
      %v574 = vpop.f32.mrb[0].mxu0
      %575 = vdwg.mxu0
      %v576 = vlaneseq
      %v577 = vshrl.u32 %v576, 7
      %v578 = vsub.s32 0, %v577
      %v579 = vrot.slane %v439, %v578
      %v580 = vadd.f32 %v514, %v579
      %v581 = vadd.f32 %v517, %v579
      %v582 = vadd.f32 %v522, %v579
      %v583 = vadd.f32 %v525, %v579
      %v584 = vadd.f32 %v530, %v579
      %v585 = vadd.f32 %v533, %v579
      %v586 = vadd.f32 %v538, %v579
      %v587 = vadd.f32 %v541, %v579
      %v588 = vlaneseq
      %v589 = vshrl.u32 %v588, 7
      %v590 = vsub.s32 0, %v589
      %v591 = vrot.slane %v440, %v590
      %593 = vrot.lane.b32.xlu0 %v591, 16
      %v594 = vpop.permute.xlu0 %593
      %v596 = vadd.f32 %v546, %v594
      %v597 = vadd.f32 %v549, %v594
      %v598 = vadd.f32 %v554, %v594
      %v599 = vadd.f32 %v557, %v594
      %v600 = vadd.f32 %v562, %v594
      %v601 = vadd.f32 %v565, %v594
      %v602 = vadd.f32 %v570, %v594
      %v603 = vadd.f32 %v573, %v594
      %v604 = vlaneseq
      %v605 = vshrl.u32 %v604, 7
      %v606 = vsub.s32 0, %v605
      %v607 = vrot.slane %v441, %v606
      %609 = vrot.lane.b32.xlu0 %v607, 32
      %v610 = vpop.permute.xlu0 %609
      %v612 = vadd.f32 %v546, %v610
      %v613 = vadd.f32 %v549, %v610
      %v614 = vadd.f32 %v554, %v610
      %v615 = vadd.f32 %v557, %v610
      %v616 = vadd.f32 %v562, %v610
      %v617 = vadd.f32 %v565, %v610
      %v618 = vadd.f32 %v570, %v610
      %v619 = vadd.f32 %v573, %v610
      %v620 = vpack.c.bf16 %v581, %v580
      %v621 = vpack.c.bf16 %v583, %v582
      %v622 = vpack.c.bf16 %v585, %v584
      %v623 = vpack.c.bf16 %v587, %v586
      %v624 = vpack.c.bf16 %v597, %v596
      %v625 = vpack.c.bf16 %v599, %v598
      %v626 = vpack.c.bf16 %v601, %v600
      %v627 = vpack.c.bf16 %v603, %v602
      %v628 = vpack.c.bf16 %v613, %v612
      %v629 = vpack.c.bf16 %v615, %v614
      %v630 = vpack.c.bf16 %v617, %v616
      %v631 = vpack.c.bf16 %v619, %v618
      %633 = vrot.lane.b32.xlu0 %v624, 112
      %v634 = vpop.permute.xlu0 %633
      %v636 = vsel %vm454, %v620, 0
      %v639 = vsel %vm454, %v634, 0
      %641 = vmatprep.subr.bf16.mxu0 0
      %642 = vmatpush1.bf16.xpose.msra.mxu0 %v639
      %643 = vmatprep.subr.bf16.mxu0 0
      %644 = vmatpush1.bf16.xpose.msra.mxu0 0
      %645 = vmatprep.subr.bf16.mxu0 0
      %646 = vmatpush1.bf16.xpose.msra.mxu0 0
      %647 = vmatprep.subr.bf16.mxu0 0
      %648 = vmatpush1.bf16.xpose.msra.mxu0 0
      %649 = vmatprep.subr.bf16.mxu0 0
      %650 = vmatpush1.bf16.xpose.msra.mxu0 0
      %651 = vmatprep.subr.bf16.mxu0 0
      %652 = vmatpush1.bf16.xpose.msra.mxu0 0
      %653 = vmatprep.subr.bf16.mxu0 0
      %654 = vmatpush1.bf16.xpose.msra.mxu0 0
      %655 = vmatprep.subr.bf16.mxu0 0
      %656 = vmatpush1.bf16.xpose.msra.mxu0 0
      %657 = vmatprep.subr.bf16.mxu0 0
      %658 = vmatpush1.bf16.xpose.msra.mxu0 0
      %659 = vmatprep.subr.bf16.mxu0 0
      %660 = vmatpush1.bf16.xpose.msra.mxu0 0
      %661 = vmatprep.subr.bf16.mxu0 0
      %662 = vmatpush1.bf16.xpose.msra.mxu0 0
      %663 = vmatprep.subr.bf16.mxu0 0
      %664 = vmatpush1.bf16.xpose.msra.mxu0 0
      %665 = vmatprep.subr.bf16.mxu0 0
      %666 = vmatpush1.bf16.xpose.msra.mxu0 0
      %667 = vmatprep.subr.bf16.mxu0 0
      %668 = vmatpush1.bf16.xpose.msra.mxu0 0
      %669 = vmatprep.subr.bf16.mxu0 0
      %670 = vmatpush1.bf16.xpose.msra.mxu0 0
      %671 = vmatprep.subr.bf16.mxu0 0
      %672 = vmatpush1.bf16.xpose.msra.mxu0 0
      %673 = vmatprep.mubr.bf16.mxu0 0
      %674 = vmatmul.mubr.bf16.gmra.mrb[0].mxu0 %v636
      %v675 = vpop.f32.mrb[0].mxu0
      %v676 = vadd.f32 0.0, %v675
      %v677 = vpop.f32.mrb[0].mxu0
      %v678 = vpop.f32.mrb[0].mxu0
      %v679 = vadd.f32 0.0, %v678
      %v680 = vpop.f32.mrb[0].mxu0
      %681 = vdwg.mxu0
      %683 = vrot.lane.b32.xlu0 %v625, 112
      %v684 = vpop.permute.xlu0 %683
      %v686 = vsel %vm454, %v621, 0
      %v689 = vsel %vm454, %v684, 0
      %691 = vmatprep.subr.bf16.mxu0 0
      %692 = vmatpush1.bf16.xpose.msra.mxu0 %v689
      %693 = vmatprep.subr.bf16.mxu0 0
      %694 = vmatpush1.bf16.xpose.msra.mxu0 0
      %695 = vmatprep.subr.bf16.mxu0 0
      %696 = vmatpush1.bf16.xpose.msra.mxu0 0
      %697 = vmatprep.subr.bf16.mxu0 0
      %698 = vmatpush1.bf16.xpose.msra.mxu0 0
      %699 = vmatprep.subr.bf16.mxu0 0
      %700 = vmatpush1.bf16.xpose.msra.mxu0 0
      %701 = vmatprep.subr.bf16.mxu0 0
      %702 = vmatpush1.bf16.xpose.msra.mxu0 0
      %703 = vmatprep.subr.bf16.mxu0 0
      %704 = vmatpush1.bf16.xpose.msra.mxu0 0
      %705 = vmatprep.subr.bf16.mxu0 0
      %706 = vmatpush1.bf16.xpose.msra.mxu0 0
      %707 = vmatprep.subr.bf16.mxu0 0
      %708 = vmatpush1.bf16.xpose.msra.mxu0 0
      %709 = vmatprep.subr.bf16.mxu0 0
      %710 = vmatpush1.bf16.xpose.msra.mxu0 0
      %711 = vmatprep.subr.bf16.mxu0 0
      %712 = vmatpush1.bf16.xpose.msra.mxu0 0
      %713 = vmatprep.subr.bf16.mxu0 0
      %714 = vmatpush1.bf16.xpose.msra.mxu0 0
      %715 = vmatprep.subr.bf16.mxu0 0
      %716 = vmatpush1.bf16.xpose.msra.mxu0 0
      %717 = vmatprep.subr.bf16.mxu0 0
      %718 = vmatpush1.bf16.xpose.msra.mxu0 0
      %719 = vmatprep.subr.bf16.mxu0 0
      %720 = vmatpush1.bf16.xpose.msra.mxu0 0
      %721 = vmatprep.subr.bf16.mxu0 0
      %722 = vmatpush1.bf16.xpose.msra.mxu0 0
      %723 = vmatprep.mubr.bf16.mxu0 0
      %724 = vmatmul.mubr.bf16.gmra.mrb[0].mxu0 %v686
      %v725 = vpop.f32.mrb[0].mxu0
      %v726 = vadd.f32 0.0, %v725
      %v727 = vpop.f32.mrb[0].mxu0
      %v728 = vpop.f32.mrb[0].mxu0
      %v729 = vadd.f32 0.0, %v728
      %v730 = vpop.f32.mrb[0].mxu0
      %731 = vdwg.mxu0
      %733 = vrot.lane.b32.xlu0 %v626, 112
      %v734 = vpop.permute.xlu0 %733
      %v736 = vsel %vm454, %v622, 0
      %v739 = vsel %vm454, %v734, 0
      %741 = vmatprep.subr.bf16.mxu0 0
      %742 = vmatpush1.bf16.xpose.msra.mxu0 %v739
      %743 = vmatprep.subr.bf16.mxu0 0
      %744 = vmatpush1.bf16.xpose.msra.mxu0 0
      %745 = vmatprep.subr.bf16.mxu0 0
      %746 = vmatpush1.bf16.xpose.msra.mxu0 0
      %747 = vmatprep.subr.bf16.mxu0 0
      %748 = vmatpush1.bf16.xpose.msra.mxu0 0
      %749 = vmatprep.subr.bf16.mxu0 0
      %750 = vmatpush1.bf16.xpose.msra.mxu0 0
      %751 = vmatprep.subr.bf16.mxu0 0
      %752 = vmatpush1.bf16.xpose.msra.mxu0 0
      %753 = vmatprep.subr.bf16.mxu0 0
      %754 = vmatpush1.bf16.xpose.msra.mxu0 0
      %755 = vmatprep.subr.bf16.mxu0 0
      %756 = vmatpush1.bf16.xpose.msra.mxu0 0
      %757 = vmatprep.subr.bf16.mxu0 0
      %758 = vmatpush1.bf16.xpose.msra.mxu0 0
      %759 = vmatprep.subr.bf16.mxu0 0
      %760 = vmatpush1.bf16.xpose.msra.mxu0 0
      %761 = vmatprep.subr.bf16.mxu0 0
      %762 = vmatpush1.bf16.xpose.msra.mxu0 0
      %763 = vmatprep.subr.bf16.mxu0 0
      %764 = vmatpush1.bf16.xpose.msra.mxu0 0
      %765 = vmatprep.subr.bf16.mxu0 0
      %766 = vmatpush1.bf16.xpose.msra.mxu0 0
      %767 = vmatprep.subr.bf16.mxu0 0
      %768 = vmatpush1.bf16.xpose.msra.mxu0 0
      %769 = vmatprep.subr.bf16.mxu0 0
      %770 = vmatpush1.bf16.xpose.msra.mxu0 0
      %771 = vmatprep.subr.bf16.mxu0 0
      %772 = vmatpush1.bf16.xpose.msra.mxu0 0
      %773 = vmatprep.mubr.bf16.mxu0 0
      %774 = vmatmul.mubr.bf16.gmra.mrb[0].mxu0 %v736
      %v775 = vpop.f32.mrb[0].mxu0
      %v776 = vadd.f32 0.0, %v775
      %v777 = vpop.f32.mrb[0].mxu0
      %v778 = vpop.f32.mrb[0].mxu0
      %v779 = vadd.f32 0.0, %v778
      %v780 = vpop.f32.mrb[0].mxu0
      %781 = vdwg.mxu0
      %783 = vrot.lane.b32.xlu0 %v627, 112
      %v784 = vpop.permute.xlu0 %783
      %v786 = vsel %vm454, %v623, 0
      %v789 = vsel %vm454, %v784, 0
      %791 = vmatprep.subr.bf16.mxu0 0
      %792 = vmatpush1.bf16.xpose.msra.mxu0 %v789
      %793 = vmatprep.subr.bf16.mxu0 0
      %794 = vmatpush1.bf16.xpose.msra.mxu0 0
      %795 = vmatprep.subr.bf16.mxu0 0
      %796 = vmatpush1.bf16.xpose.msra.mxu0 0
      %797 = vmatprep.subr.bf16.mxu0 0
      %798 = vmatpush1.bf16.xpose.msra.mxu0 0
      %799 = vmatprep.subr.bf16.mxu0 0
      %800 = vmatpush1.bf16.xpose.msra.mxu0 0
      %801 = vmatprep.subr.bf16.mxu0 0
      %802 = vmatpush1.bf16.xpose.msra.mxu0 0
      %803 = vmatprep.subr.bf16.mxu0 0
      %804 = vmatpush1.bf16.xpose.msra.mxu0 0
      %805 = vmatprep.subr.bf16.mxu0 0
      %806 = vmatpush1.bf16.xpose.msra.mxu0 0
      %807 = vmatprep.subr.bf16.mxu0 0
      %808 = vmatpush1.bf16.xpose.msra.mxu0 0
      %809 = vmatprep.subr.bf16.mxu0 0
      %810 = vmatpush1.bf16.xpose.msra.mxu0 0
      %811 = vmatprep.subr.bf16.mxu0 0
      %812 = vmatpush1.bf16.xpose.msra.mxu0 0
      %813 = vmatprep.subr.bf16.mxu0 0
      %814 = vmatpush1.bf16.xpose.msra.mxu0 0
      %815 = vmatprep.subr.bf16.mxu0 0
      %816 = vmatpush1.bf16.xpose.msra.mxu0 0
      %817 = vmatprep.subr.bf16.mxu0 0
      %818 = vmatpush1.bf16.xpose.msra.mxu0 0
      %819 = vmatprep.subr.bf16.mxu0 0
      %820 = vmatpush1.bf16.xpose.msra.mxu0 0
      %821 = vmatprep.subr.bf16.mxu0 0
      %822 = vmatpush1.bf16.xpose.msra.mxu0 0
      %823 = vmatprep.mubr.bf16.mxu0 0
      %824 = vmatmul.mubr.bf16.gmra.mrb[0].mxu0 %v786
      %v825 = vpop.f32.mrb[0].mxu0
      %v826 = vadd.f32 0.0, %v825
      %v827 = vpop.f32.mrb[0].mxu0
      %v828 = vpop.f32.mrb[0].mxu0
      %v829 = vadd.f32 0.0, %v828
      %v830 = vpop.f32.mrb[0].mxu0
      %831 = vdwg.mxu0
      %vm832 = vcmask 64512
      %v833 = vsel %vm832, %v620, 0
      %v835 = vsel %vm832, %v634, 0
      %837 = vmatprep.subr.bf16.mxu0 0
      %838 = vmatpush1.bf16.xpose.msra.mxu0 %v835
      %839 = vmatprep.subr.bf16.mxu0 0
      %840 = vmatpush1.bf16.xpose.msra.mxu0 0
      %841 = vmatprep.subr.bf16.mxu0 0
      %842 = vmatpush1.bf16.xpose.msra.mxu0 0
      %843 = vmatprep.subr.bf16.mxu0 0
      %844 = vmatpush1.bf16.xpose.msra.mxu0 0
      %845 = vmatprep.subr.bf16.mxu0 0
      %846 = vmatpush1.bf16.xpose.msra.mxu0 0
      %847 = vmatprep.subr.bf16.mxu0 0
      %848 = vmatpush1.bf16.xpose.msra.mxu0 0
      %849 = vmatprep.subr.bf16.mxu0 0
      %850 = vmatpush1.bf16.xpose.msra.mxu0 0
      %851 = vmatprep.subr.bf16.mxu0 0
      %852 = vmatpush1.bf16.xpose.msra.mxu0 0
      %853 = vmatprep.subr.bf16.mxu0 0
      %854 = vmatpush1.bf16.xpose.msra.mxu0 0
      %855 = vmatprep.subr.bf16.mxu0 0
      %856 = vmatpush1.bf16.xpose.msra.mxu0 0
      %857 = vmatprep.subr.bf16.mxu0 0
      %858 = vmatpush1.bf16.xpose.msra.mxu0 0
      %859 = vmatprep.subr.bf16.mxu0 0
      %860 = vmatpush1.bf16.xpose.msra.mxu0 0
      %861 = vmatprep.subr.bf16.mxu0 0
      %862 = vmatpush1.bf16.xpose.msra.mxu0 0
      %863 = vmatprep.subr.bf16.mxu0 0
      %864 = vmatpush1.bf16.xpose.msra.mxu0 0
      %865 = vmatprep.subr.bf16.mxu0 0
      %866 = vmatpush1.bf16.xpose.msra.mxu0 0
      %867 = vmatprep.subr.bf16.mxu0 0
      %868 = vmatpush1.bf16.xpose.msra.mxu0 0
      %869 = vmatprep.mubr.bf16.mxu0 0
      %870 = vmatmul.mubr.bf16.gmra.mrb[0].mxu0 %v833
      %v871 = vpop.f32.mrb[0].mxu0
      %v872 = vadd.f32 0.0, %v871
      %v873 = vpop.f32.mrb[0].mxu0
      %v874 = vpop.f32.mrb[0].mxu0
      %v875 = vadd.f32 0.0, %v874
      %v876 = vpop.f32.mrb[0].mxu0
      %877 = vdwg.mxu0
      %v878 = vsel %vm832, %v621, 0
      %v880 = vsel %vm832, %v684, 0
      %882 = vmatprep.subr.bf16.mxu0 0
      %883 = vmatpush1.bf16.xpose.msra.mxu0 %v880
      %884 = vmatprep.subr.bf16.mxu0 0
      %885 = vmatpush1.bf16.xpose.msra.mxu0 0
      %886 = vmatprep.subr.bf16.mxu0 0
      %887 = vmatpush1.bf16.xpose.msra.mxu0 0
      %888 = vmatprep.subr.bf16.mxu0 0
      %889 = vmatpush1.bf16.xpose.msra.mxu0 0
      %890 = vmatprep.subr.bf16.mxu0 0
      %891 = vmatpush1.bf16.xpose.msra.mxu0 0
      %892 = vmatprep.subr.bf16.mxu0 0
      %893 = vmatpush1.bf16.xpose.msra.mxu0 0
      %894 = vmatprep.subr.bf16.mxu0 0
      %895 = vmatpush1.bf16.xpose.msra.mxu0 0
      %896 = vmatprep.subr.bf16.mxu0 0
      %897 = vmatpush1.bf16.xpose.msra.mxu0 0
      %898 = vmatprep.subr.bf16.mxu0 0
      %899 = vmatpush1.bf16.xpose.msra.mxu0 0
      %900 = vmatprep.subr.bf16.mxu0 0
      %901 = vmatpush1.bf16.xpose.msra.mxu0 0
      %902 = vmatprep.subr.bf16.mxu0 0
      %903 = vmatpush1.bf16.xpose.msra.mxu0 0
      %904 = vmatprep.subr.bf16.mxu0 0
      %905 = vmatpush1.bf16.xpose.msra.mxu0 0
      %906 = vmatprep.subr.bf16.mxu0 0
      %907 = vmatpush1.bf16.xpose.msra.mxu0 0
      %908 = vmatprep.subr.bf16.mxu0 0
      %909 = vmatpush1.bf16.xpose.msra.mxu0 0
      %910 = vmatprep.subr.bf16.mxu0 0
      %911 = vmatpush1.bf16.xpose.msra.mxu0 0
      %912 = vmatprep.subr.bf16.mxu0 0
      %913 = vmatpush1.bf16.xpose.msra.mxu0 0
      %914 = vmatprep.mubr.bf16.mxu0 0
      %915 = vmatmul.mubr.bf16.gmra.mrb[0].mxu0 %v878
      %v916 = vpop.f32.mrb[0].mxu0
      %v917 = vadd.f32 0.0, %v916
      %v918 = vpop.f32.mrb[0].mxu0
      %v919 = vpop.f32.mrb[0].mxu0
      %v920 = vadd.f32 0.0, %v919
      %v921 = vpop.f32.mrb[0].mxu0
      %922 = vdwg.mxu0
      %v923 = vsel %vm832, %v622, 0
      %v925 = vsel %vm832, %v734, 0
      %927 = vmatprep.subr.bf16.mxu0 0
      %928 = vmatpush1.bf16.xpose.msra.mxu0 %v925
      %929 = vmatprep.subr.bf16.mxu0 0
      %930 = vmatpush1.bf16.xpose.msra.mxu0 0
      %931 = vmatprep.subr.bf16.mxu0 0
      %932 = vmatpush1.bf16.xpose.msra.mxu0 0
      %933 = vmatprep.subr.bf16.mxu0 0
      %934 = vmatpush1.bf16.xpose.msra.mxu0 0
      %935 = vmatprep.subr.bf16.mxu0 0
      %936 = vmatpush1.bf16.xpose.msra.mxu0 0
      %937 = vmatprep.subr.bf16.mxu0 0
      %938 = vmatpush1.bf16.xpose.msra.mxu0 0
      %939 = vmatprep.subr.bf16.mxu0 0
      %940 = vmatpush1.bf16.xpose.msra.mxu0 0
      %941 = vmatprep.subr.bf16.mxu0 0
      %942 = vmatpush1.bf16.xpose.msra.mxu0 0
      %943 = vmatprep.subr.bf16.mxu0 0
      %944 = vmatpush1.bf16.xpose.msra.mxu0 0
      %945 = vmatprep.subr.bf16.mxu0 0
      %946 = vmatpush1.bf16.xpose.msra.mxu0 0
      %947 = vmatprep.subr.bf16.mxu0 0
      %948 = vmatpush1.bf16.xpose.msra.mxu0 0
      %949 = vmatprep.subr.bf16.mxu0 0
      %950 = vmatpush1.bf16.xpose.msra.mxu0 0
      %951 = vmatprep.subr.bf16.mxu0 0
      %952 = vmatpush1.bf16.xpose.msra.mxu0 0
      %953 = vmatprep.subr.bf16.mxu0 0
      %954 = vmatpush1.bf16.xpose.msra.mxu0 0
      %955 = vmatprep.subr.bf16.mxu0 0
      %956 = vmatpush1.bf16.xpose.msra.mxu0 0
      %957 = vmatprep.subr.bf16.mxu0 0
      %958 = vmatpush1.bf16.xpose.msra.mxu0 0
      %959 = vmatprep.mubr.bf16.mxu0 0
      %960 = vmatmul.mubr.bf16.gmra.mrb[0].mxu0 %v923
      %v961 = vpop.f32.mrb[0].mxu0
      %v962 = vadd.f32 0.0, %v961
      %v963 = vpop.f32.mrb[0].mxu0
      %v964 = vpop.f32.mrb[0].mxu0
      %v965 = vadd.f32 0.0, %v964
      %v966 = vpop.f32.mrb[0].mxu0
      %967 = vdwg.mxu0
      %v968 = vsel %vm832, %v623, 0
      %v970 = vsel %vm832, %v784, 0
      %972 = vmatprep.subr.bf16.mxu0 0
      %973 = vmatpush1.bf16.xpose.msra.mxu0 %v970
      %974 = vmatprep.subr.bf16.mxu0 0
      %975 = vmatpush1.bf16.xpose.msra.mxu0 0
      %976 = vmatprep.subr.bf16.mxu0 0
      %977 = vmatpush1.bf16.xpose.msra.mxu0 0
      %978 = vmatprep.subr.bf16.mxu0 0
      %979 = vmatpush1.bf16.xpose.msra.mxu0 0
      %980 = vmatprep.subr.bf16.mxu0 0
      %981 = vmatpush1.bf16.xpose.msra.mxu0 0
      %982 = vmatprep.subr.bf16.mxu0 0
      %983 = vmatpush1.bf16.xpose.msra.mxu0 0
      %984 = vmatprep.subr.bf16.mxu0 0
      %985 = vmatpush1.bf16.xpose.msra.mxu0 0
      %986 = vmatprep.subr.bf16.mxu0 0
      %987 = vmatpush1.bf16.xpose.msra.mxu0 0
      %988 = vmatprep.subr.bf16.mxu0 0
      %989 = vmatpush1.bf16.xpose.msra.mxu0 0
      %990 = vmatprep.subr.bf16.mxu0 0
      %991 = vmatpush1.bf16.xpose.msra.mxu0 0
      %992 = vmatprep.subr.bf16.mxu0 0
      %993 = vmatpush1.bf16.xpose.msra.mxu0 0
      %994 = vmatprep.subr.bf16.mxu0 0
      %995 = vmatpush1.bf16.xpose.msra.mxu0 0
      %996 = vmatprep.subr.bf16.mxu0 0
      %997 = vmatpush1.bf16.xpose.msra.mxu0 0
      %998 = vmatprep.subr.bf16.mxu0 0
      %999 = vmatpush1.bf16.xpose.msra.mxu0 0
      %1000 = vmatprep.subr.bf16.mxu0 0
      %1001 = vmatpush1.bf16.xpose.msra.mxu0 0
      %1002 = vmatprep.subr.bf16.mxu0 0
      %1003 = vmatpush1.bf16.xpose.msra.mxu0 0
      %1004 = vmatprep.mubr.bf16.mxu0 0
      %1005 = vmatmul.mubr.bf16.gmra.mrb[0].mxu0 %v968
      %v1006 = vpop.f32.mrb[0].mxu0
      %v1007 = vadd.f32 0.0, %v1006
      %v1008 = vpop.f32.mrb[0].mxu0
      %v1009 = vpop.f32.mrb[0].mxu0
      %v1010 = vadd.f32 0.0, %v1009
      %v1011 = vpop.f32.mrb[0].mxu0
      %1012 = vdwg.mxu0
      %v1013 = vsub.f32 %v676, %v872
      %v1014 = vsub.f32 %v679, %v875
      %v1015 = vsub.f32 %v726, %v917
      %v1016 = vsub.f32 %v729, %v920
      %v1017 = vsub.f32 %v776, %v962
      %v1018 = vsub.f32 %v779, %v965
      %v1019 = vsub.f32 %v826, %v1007
      %v1020 = vsub.f32 %v829, %v1010
      %v1021 = vsel %vm454, %v676, -inf
      %1022 = vmax.xlane.f32.xlu0 %v1021
      %v1023 = vpop.xlane.xlu0 %1022
      %v1024 = vsel %vm454, %v679, -inf
      %1025 = vmax.xlane.f32.xlu0 %v1024
      %v1026 = vpop.xlane.xlu0 %1025
      %v1027 = vsel %vm454, %v726, -inf
      %1028 = vmax.xlane.f32.xlu0 %v1027
      %v1029 = vpop.xlane.xlu0 %1028
      %v1030 = vsel %vm454, %v729, -inf
      %1031 = vmax.xlane.f32.xlu0 %v1030
      %v1032 = vpop.xlane.xlu0 %1031
      %v1033 = vsel %vm454, %v776, -inf
      %1034 = vmax.xlane.f32.xlu0 %v1033
      %v1035 = vpop.xlane.xlu0 %1034
      %v1036 = vsel %vm454, %v779, -inf
      %1037 = vmax.xlane.f32.xlu0 %v1036
      %v1038 = vpop.xlane.xlu0 %1037
      %v1039 = vsel %vm454, %v826, -inf
      %1040 = vmax.xlane.f32.xlu0 %v1039
      %v1041 = vpop.xlane.xlu0 %1040
      %v1042 = vsel %vm454, %v829, -inf
      %1043 = vmax.xlane.f32.xlu0 %v1042
      %v1044 = vpop.xlane.xlu0 %1043
      %v1045 = vsub.f32 %v676, %v1023
      %v1046 = vsub.f32 %v679, %v1026
      %v1047 = vsub.f32 %v726, %v1029
      %v1048 = vsub.f32 %v729, %v1032
      %v1049 = vsub.f32 %v776, %v1035
      %v1050 = vsub.f32 %v779, %v1038
      %v1051 = vsub.f32 %v826, %v1041
      %v1052 = vsub.f32 %v829, %v1044
      %v1053 = vmul.f32 %v1045, 1.442695
      %v1054 = vpow.pop %v1053
      %v1055 = vmul.f32 %v1046, 1.442695
      %v1056 = vpow.pop %v1055
      %v1057 = vmul.f32 %v1047, 1.442695
      %v1058 = vpow.pop %v1057
      %v1059 = vmul.f32 %v1048, 1.442695
      %v1060 = vpow.pop %v1059
      %v1061 = vmul.f32 %v1049, 1.442695
      %v1062 = vpow.pop %v1061
      %v1063 = vmul.f32 %v1050, 1.442695
      %v1064 = vpow.pop %v1063
      %v1065 = vmul.f32 %v1051, 1.442695
      %v1066 = vpow.pop %v1065
      %v1067 = vmul.f32 %v1052, 1.442695
      %v1068 = vpow.pop %v1067
      %v1069 = vsel %vm454, %v1054, 0.0
      %1070 = vadd.xlane.f32.xlu0 %v1069
      %v1071 = vpop.xlane.xlu0 %1070
      %v1072 = vsel %vm454, %v1056, 0.0
      %1073 = vadd.xlane.f32.xlu0 %v1072
      %v1074 = vpop.xlane.xlu0 %1073
      %v1075 = vsel %vm454, %v1058, 0.0
      %1076 = vadd.xlane.f32.xlu0 %v1075
      %v1077 = vpop.xlane.xlu0 %1076
      %v1078 = vsel %vm454, %v1060, 0.0
      %1079 = vadd.xlane.f32.xlu0 %v1078
      %v1080 = vpop.xlane.xlu0 %1079
      %v1081 = vsel %vm454, %v1062, 0.0
      %1082 = vadd.xlane.f32.xlu0 %v1081
      %v1083 = vpop.xlane.xlu0 %1082
      %v1084 = vsel %vm454, %v1064, 0.0
      %1085 = vadd.xlane.f32.xlu0 %v1084
      %v1086 = vpop.xlane.xlu0 %1085
      %v1087 = vsel %vm454, %v1066, 0.0
      %1088 = vadd.xlane.f32.xlu0 %v1087
      %v1089 = vpop.xlane.xlu0 %1088
      %v1090 = vsel %vm454, %v1068, 0.0
      %1091 = vadd.xlane.f32.xlu0 %v1090
      %v1092 = vpop.xlane.xlu0 %1091
      %v1093 = vrcp.pop %v1071
      %v1094 = vmul.f32 %v1054, %v1093
      %v1095 = vrcp.pop %v1074
      %v1096 = vmul.f32 %v1056, %v1095
      %v1097 = vrcp.pop %v1077
      %v1098 = vmul.f32 %v1058, %v1097
      %v1099 = vrcp.pop %v1080
      %v1100 = vmul.f32 %v1060, %v1099
      %v1101 = vrcp.pop %v1083
      %v1102 = vmul.f32 %v1062, %v1101
      %v1103 = vrcp.pop %v1086
      %v1104 = vmul.f32 %v1064, %v1103
      %v1105 = vrcp.pop %v1089
      %v1106 = vmul.f32 %v1066, %v1105
      %v1107 = vrcp.pop %v1092
      %v1108 = vmul.f32 %v1068, %v1107
      %v1109 = vsel %vm454, %v1094, -inf
      %1110 = vmax.xlane.f32.xlu0 %v1109
      %v1111 = vpop.xlane.xlu0 %1110
      %v1112 = vsel %vm454, %v1096, -inf
      %1113 = vmax.xlane.f32.xlu0 %v1112
      %v1114 = vpop.xlane.xlu0 %1113
      %v1115 = vsel %vm454, %v1098, -inf
      %1116 = vmax.xlane.f32.xlu0 %v1115
      %v1117 = vpop.xlane.xlu0 %1116
      %v1118 = vsel %vm454, %v1100, -inf
      %1119 = vmax.xlane.f32.xlu0 %v1118
      %v1120 = vpop.xlane.xlu0 %1119
      %v1121 = vsel %vm454, %v1102, -inf
      %1122 = vmax.xlane.f32.xlu0 %v1121
      %v1123 = vpop.xlane.xlu0 %1122
      %v1124 = vsel %vm454, %v1104, -inf
      %1125 = vmax.xlane.f32.xlu0 %v1124
      %v1126 = vpop.xlane.xlu0 %1125
      %v1127 = vsel %vm454, %v1106, -inf
      %1128 = vmax.xlane.f32.xlu0 %v1127
      %v1129 = vpop.xlane.xlu0 %1128
      %v1130 = vsel %vm454, %v1108, -inf
      %1131 = vmax.xlane.f32.xlu0 %v1130
      %v1132 = vpop.xlane.xlu0 %1131
      %v1133 = vsub.f32 %v1094, %v1111
      %v1134 = vsub.f32 %v1096, %v1114
      %v1135 = vsub.f32 %v1098, %v1117
      %v1136 = vsub.f32 %v1100, %v1120
      %v1137 = vsub.f32 %v1102, %v1123
      %v1138 = vsub.f32 %v1104, %v1126
      %v1139 = vsub.f32 %v1106, %v1129
      %v1140 = vsub.f32 %v1108, %v1132
      %v1141 = vmul.f32 %v1133, 1.442695
      %v1142 = vpow.pop %v1141
      %v1143 = vmul.f32 %v1134, 1.442695
      %v1144 = vpow.pop %v1143
      %v1145 = vmul.f32 %v1135, 1.442695
      %v1146 = vpow.pop %v1145
      %v1147 = vmul.f32 %v1136, 1.442695
      %v1148 = vpow.pop %v1147
      %v1149 = vmul.f32 %v1137, 1.442695
      %v1150 = vpow.pop %v1149
      %v1151 = vmul.f32 %v1138, 1.442695
      %v1152 = vpow.pop %v1151
      %v1153 = vmul.f32 %v1139, 1.442695
      %v1154 = vpow.pop %v1153
      %v1155 = vmul.f32 %v1140, 1.442695
      %v1156 = vpow.pop %v1155
      %v1157 = vsel %vm454, %v1142, 0.0
      %1158 = vadd.xlane.f32.xlu0 %v1157
      %v1159 = vpop.xlane.xlu0 %1158
      %v1160 = vsel %vm454, %v1144, 0.0
      %1161 = vadd.xlane.f32.xlu0 %v1160
      %v1162 = vpop.xlane.xlu0 %1161
      %v1163 = vsel %vm454, %v1146, 0.0
      %1164 = vadd.xlane.f32.xlu0 %v1163
      %v1165 = vpop.xlane.xlu0 %1164
      %v1166 = vsel %vm454, %v1148, 0.0
      %1167 = vadd.xlane.f32.xlu0 %v1166
      %v1168 = vpop.xlane.xlu0 %1167
      %v1169 = vsel %vm454, %v1150, 0.0
      %1170 = vadd.xlane.f32.xlu0 %v1169
      %v1171 = vpop.xlane.xlu0 %1170
      %v1172 = vsel %vm454, %v1152, 0.0
      %1173 = vadd.xlane.f32.xlu0 %v1172
      %v1174 = vpop.xlane.xlu0 %1173
      %v1175 = vsel %vm454, %v1154, 0.0
      %1176 = vadd.xlane.f32.xlu0 %v1175
      %v1177 = vpop.xlane.xlu0 %1176
      %v1178 = vsel %vm454, %v1156, 0.0
      %1179 = vadd.xlane.f32.xlu0 %v1178
      %v1180 = vpop.xlane.xlu0 %1179
      %v1181 = vrcp.pop %v1159
      %v1182 = vmul.f32 %v1142, %v1181
      %v1183 = vrcp.pop %v1162
      %v1184 = vmul.f32 %v1144, %v1183
      %v1185 = vrcp.pop %v1165
      %v1186 = vmul.f32 %v1146, %v1185
      %v1187 = vrcp.pop %v1168
      %v1188 = vmul.f32 %v1148, %v1187
      %v1189 = vrcp.pop %v1171
      %v1190 = vmul.f32 %v1150, %v1189
      %v1191 = vrcp.pop %v1174
      %v1192 = vmul.f32 %v1152, %v1191
      %v1193 = vrcp.pop %v1177
      %v1194 = vmul.f32 %v1154, %v1193
      %v1195 = vrcp.pop %v1180
      %v1196 = vmul.f32 %v1156, %v1195
      %v1197 = vmax.f32 %v1109, %v1112
      %v1198 = vrot.slane %v1197, 4
      %v1199 = vmax.f32 %v1197, %v1198
      %v1200 = vrot.slane %v1199, 2
      %v1201 = vmax.f32 %v1199, %v1200
      %v1202 = vrot.slane %v1201, 1
      %v1203 = vmax.f32 %v1201, %v1202
      %v1204 = vmax.f32 %v1115, %v1118
      %v1205 = vrot.slane %v1204, 4
      %v1206 = vmax.f32 %v1204, %v1205
      %v1207 = vrot.slane %v1206, 2
      %v1208 = vmax.f32 %v1206, %v1207
      %v1209 = vrot.slane %v1208, 1
      %v1210 = vmax.f32 %v1208, %v1209
      %v1211 = vmax.f32 %v1121, %v1124
      %v1212 = vrot.slane %v1211, 4
      %v1213 = vmax.f32 %v1211, %v1212
      %v1214 = vrot.slane %v1213, 2
      %v1215 = vmax.f32 %v1213, %v1214
      %v1216 = vrot.slane %v1215, 1
      %v1217 = vmax.f32 %v1215, %v1216
      %v1218 = vmax.f32 %v1127, %v1130
      %v1219 = vrot.slane %v1218, 4
      %v1220 = vmax.f32 %v1218, %v1219
      %v1221 = vrot.slane %v1220, 2
      %v1222 = vmax.f32 %v1220, %v1221
      %v1223 = vrot.slane %v1222, 1
      %v1224 = vmax.f32 %v1222, %v1223
      %v1225 = vsub.f32 %v1094, %v1203
      %v1226 = vsub.f32 %v1096, %v1203
      %v1227 = vsub.f32 %v1098, %v1210
      %v1228 = vsub.f32 %v1100, %v1210
      %v1229 = vsub.f32 %v1102, %v1217
      %v1230 = vsub.f32 %v1104, %v1217
      %v1231 = vsub.f32 %v1106, %v1224
      %v1232 = vsub.f32 %v1108, %v1224
      %v1233 = vmul.f32 %v1225, 1.442695
      %v1234 = vpow.pop %v1233
      %v1235 = vmul.f32 %v1226, 1.442695
      %v1236 = vpow.pop %v1235
      %v1237 = vmul.f32 %v1227, 1.442695
      %v1238 = vpow.pop %v1237
      %v1239 = vmul.f32 %v1228, 1.442695
      %v1240 = vpow.pop %v1239
      %v1241 = vmul.f32 %v1229, 1.442695
      %v1242 = vpow.pop %v1241
      %v1243 = vmul.f32 %v1230, 1.442695
      %v1244 = vpow.pop %v1243
      %v1245 = vmul.f32 %v1231, 1.442695
      %v1246 = vpow.pop %v1245
      %v1247 = vmul.f32 %v1232, 1.442695
      %v1248 = vpow.pop %v1247
      %v1249 = vsel %vm454, %v1234, 0.0
      %v1250 = vsel %vm454, %v1236, 0.0
      %v1251 = vadd.f32 %v1249, %v1250
      %v1252 = vrot.slane %v1251, 4
      %v1253 = vadd.f32 %v1251, %v1252
      %v1254 = vrot.slane %v1253, 2
      %v1255 = vadd.f32 %v1253, %v1254
      %v1256 = vrot.slane %v1255, 1
      %v1257 = vadd.f32 %v1255, %v1256
      %v1258 = vsel %vm454, %v1238, 0.0
      %v1259 = vsel %vm454, %v1240, 0.0
      %v1260 = vadd.f32 %v1258, %v1259
      %v1261 = vrot.slane %v1260, 4
      %v1262 = vadd.f32 %v1260, %v1261
      %v1263 = vrot.slane %v1262, 2
      %v1264 = vadd.f32 %v1262, %v1263
      %v1265 = vrot.slane %v1264, 1
      %v1266 = vadd.f32 %v1264, %v1265
      %v1267 = vsel %vm454, %v1242, 0.0
      %v1268 = vsel %vm454, %v1244, 0.0
      %v1269 = vadd.f32 %v1267, %v1268
      %v1270 = vrot.slane %v1269, 4
      %v1271 = vadd.f32 %v1269, %v1270
      %v1272 = vrot.slane %v1271, 2
      %v1273 = vadd.f32 %v1271, %v1272
      %v1274 = vrot.slane %v1273, 1
      %v1275 = vadd.f32 %v1273, %v1274
      %v1276 = vsel %vm454, %v1246, 0.0
      %v1277 = vsel %vm454, %v1248, 0.0
      %v1278 = vadd.f32 %v1276, %v1277
      %v1279 = vrot.slane %v1278, 4
      %v1280 = vadd.f32 %v1278, %v1279
      %v1281 = vrot.slane %v1280, 2
      %v1282 = vadd.f32 %v1280, %v1281
      %v1283 = vrot.slane %v1282, 1
      %v1284 = vadd.f32 %v1282, %v1283
      %v1285 = vrcp.pop %v1257
      %v1286 = vmul.f32 %v1234, %v1285
      %v1287 = vmul.f32 %v1236, %v1285
      %v1288 = vrcp.pop %v1266
      %v1289 = vmul.f32 %v1238, %v1288
      %v1290 = vmul.f32 %v1240, %v1288
      %v1291 = vrcp.pop %v1275
      %v1292 = vmul.f32 %v1242, %v1291
      %v1293 = vmul.f32 %v1244, %v1291
      %v1294 = vrcp.pop %v1284
      %v1295 = vmul.f32 %v1246, %v1294
      %v1296 = vmul.f32 %v1248, %v1294
      %v1297 = vmul.f32 %v1182, %v1286
      %v1298 = vmul.f32 %v1184, %v1287
      %v1299 = vmul.f32 %v1186, %v1289
      %v1300 = vmul.f32 %v1188, %v1290
      %v1301 = vmul.f32 %v1190, %v1292
      %v1302 = vmul.f32 %v1192, %v1293
      %v1303 = vmul.f32 %v1194, %v1295
      %v1304 = vmul.f32 %v1196, %v1296
      %v1305 = vmul.f32 %v872, 0.35355338
      %v1306 = vmul.f32 %v875, 0.35355338
      %v1307 = vmul.f32 %v917, 0.35355338
      %v1308 = vmul.f32 %v920, 0.35355338
      %v1309 = vmul.f32 %v962, 0.35355338
      %v1310 = vmul.f32 %v965, 0.35355338
      %v1311 = vmul.f32 %v1007, 0.35355338
      %v1312 = vmul.f32 %v1010, 0.35355338
      %v1313 = vsel %vm454, %v1305, -inf
      %1314 = vmax.xlane.f32.xlu0 %v1313
      %v1315 = vpop.xlane.xlu0 %1314
      %v1316 = vsel %vm454, %v1306, -inf
      %1317 = vmax.xlane.f32.xlu0 %v1316
      %v1318 = vpop.xlane.xlu0 %1317
      %v1319 = vsel %vm454, %v1307, -inf
      %1320 = vmax.xlane.f32.xlu0 %v1319
      %v1321 = vpop.xlane.xlu0 %1320
      %v1322 = vsel %vm454, %v1308, -inf
      %1323 = vmax.xlane.f32.xlu0 %v1322
      %v1324 = vpop.xlane.xlu0 %1323
      %v1325 = vsel %vm454, %v1309, -inf
      %1326 = vmax.xlane.f32.xlu0 %v1325
      %v1327 = vpop.xlane.xlu0 %1326
      %v1328 = vsel %vm454, %v1310, -inf
      %1329 = vmax.xlane.f32.xlu0 %v1328
      %v1330 = vpop.xlane.xlu0 %1329
      %v1331 = vsel %vm454, %v1311, -inf
      %1332 = vmax.xlane.f32.xlu0 %v1331
      %v1333 = vpop.xlane.xlu0 %1332
      %v1334 = vsel %vm454, %v1312, -inf
      %1335 = vmax.xlane.f32.xlu0 %v1334
      %v1336 = vpop.xlane.xlu0 %1335
      %v1337 = vsub.f32 %v1305, %v1315
      %v1338 = vsub.f32 %v1306, %v1318
      %v1339 = vsub.f32 %v1307, %v1321
      %v1340 = vsub.f32 %v1308, %v1324
      %v1341 = vsub.f32 %v1309, %v1327
      %v1342 = vsub.f32 %v1310, %v1330
      %v1343 = vsub.f32 %v1311, %v1333
      %v1344 = vsub.f32 %v1312, %v1336
      %v1345 = vmul.f32 %v1337, 1.442695
      %v1346 = vpow.pop %v1345
      %v1347 = vmul.f32 %v1338, 1.442695
      %v1348 = vpow.pop %v1347
      %v1349 = vmul.f32 %v1339, 1.442695
      %v1350 = vpow.pop %v1349
      %v1351 = vmul.f32 %v1340, 1.442695
      %v1352 = vpow.pop %v1351
      %v1353 = vmul.f32 %v1341, 1.442695
      %v1354 = vpow.pop %v1353
      %v1355 = vmul.f32 %v1342, 1.442695
      %v1356 = vpow.pop %v1355
      %v1357 = vmul.f32 %v1343, 1.442695
      %v1358 = vpow.pop %v1357
      %v1359 = vmul.f32 %v1344, 1.442695
      %v1360 = vpow.pop %v1359
      %v1361 = vsel %vm454, %v1346, 0.0
      %1362 = vadd.xlane.f32.xlu0 %v1361
      %v1363 = vpop.xlane.xlu0 %1362
      %v1364 = vsel %vm454, %v1348, 0.0
      %1365 = vadd.xlane.f32.xlu0 %v1364
      %v1366 = vpop.xlane.xlu0 %1365
      %v1367 = vsel %vm454, %v1350, 0.0
      %1368 = vadd.xlane.f32.xlu0 %v1367
      %v1369 = vpop.xlane.xlu0 %1368
      %v1370 = vsel %vm454, %v1352, 0.0
      %1371 = vadd.xlane.f32.xlu0 %v1370
      %v1372 = vpop.xlane.xlu0 %1371
      %v1373 = vsel %vm454, %v1354, 0.0
      %1374 = vadd.xlane.f32.xlu0 %v1373
      %v1375 = vpop.xlane.xlu0 %1374
      %v1376 = vsel %vm454, %v1356, 0.0
      %1377 = vadd.xlane.f32.xlu0 %v1376
      %v1378 = vpop.xlane.xlu0 %1377
      %v1379 = vsel %vm454, %v1358, 0.0
      %1380 = vadd.xlane.f32.xlu0 %v1379
      %v1381 = vpop.xlane.xlu0 %1380
      %v1382 = vsel %vm454, %v1360, 0.0
      %1383 = vadd.xlane.f32.xlu0 %v1382
      %v1384 = vpop.xlane.xlu0 %1383
      %v1385 = vrcp.pop %v1363
      %v1386 = vrcp.pop %v1366
      %v1387 = vrcp.pop %v1369
      %v1388 = vrcp.pop %v1372
      %v1389 = vrcp.pop %v1375
      %v1390 = vrcp.pop %v1378
      %v1391 = vrcp.pop %v1381
      %v1392 = vrcp.pop %v1384
      %v1393 = vmul.f32 %v1346, %v1385
      %v1394 = vmul.f32 %v1348, %v1386
      %v1395 = vmul.f32 %v1350, %v1387
      %v1396 = vmul.f32 %v1352, %v1388
      %v1397 = vmul.f32 %v1354, %v1389
      %v1398 = vmul.f32 %v1356, %v1390
      %v1399 = vmul.f32 %v1358, %v1391
      %v1400 = vmul.f32 %v1360, %v1392
      %v1401 = vpack.c.bf16 %v1394, %v1393
      %v1402 = vpack.c.bf16 %v1396, %v1395
      %v1403 = vpack.c.bf16 %v1398, %v1397
      %v1404 = vpack.c.bf16 %v1400, %v1399
      %v1405 = vmul.f32 %v1013, 0.35355338
      %v1406 = vmul.f32 %v1014, 0.35355338
      %v1407 = vmul.f32 %v1015, 0.35355338
      %v1408 = vmul.f32 %v1016, 0.35355338
      %v1409 = vmul.f32 %v1017, 0.35355338
      %v1410 = vmul.f32 %v1018, 0.35355338
      %v1411 = vmul.f32 %v1019, 0.35355338
      %v1412 = vmul.f32 %v1020, 0.35355338
      %v1413 = vsel %vm454, %v1405, -inf
      %1414 = vmax.xlane.f32.xlu0 %v1413
      %v1415 = vpop.xlane.xlu0 %1414
      %v1416 = vsel %vm454, %v1406, -inf
      %1417 = vmax.xlane.f32.xlu0 %v1416
      %v1418 = vpop.xlane.xlu0 %1417
      %v1419 = vsel %vm454, %v1407, -inf
      %1420 = vmax.xlane.f32.xlu0 %v1419
      %v1421 = vpop.xlane.xlu0 %1420
      %v1422 = vsel %vm454, %v1408, -inf
      %1423 = vmax.xlane.f32.xlu0 %v1422
      %v1424 = vpop.xlane.xlu0 %1423
      %v1425 = vsel %vm454, %v1409, -inf
      %1426 = vmax.xlane.f32.xlu0 %v1425
      %v1427 = vpop.xlane.xlu0 %1426
      %v1428 = vsel %vm454, %v1410, -inf
      %1429 = vmax.xlane.f32.xlu0 %v1428
      %v1430 = vpop.xlane.xlu0 %1429
      %v1431 = vsel %vm454, %v1411, -inf
      %1432 = vmax.xlane.f32.xlu0 %v1431
      %v1433 = vpop.xlane.xlu0 %1432
      %v1434 = vsel %vm454, %v1412, -inf
      %1435 = vmax.xlane.f32.xlu0 %v1434
      %v1436 = vpop.xlane.xlu0 %1435
      %v1437 = vsub.f32 %v1405, %v1415
      %v1438 = vsub.f32 %v1406, %v1418
      %v1439 = vsub.f32 %v1407, %v1421
      %v1440 = vsub.f32 %v1408, %v1424
      %v1441 = vsub.f32 %v1409, %v1427
      %v1442 = vsub.f32 %v1410, %v1430
      %v1443 = vsub.f32 %v1411, %v1433
      %v1444 = vsub.f32 %v1412, %v1436
      %v1445 = vmul.f32 %v1437, 1.442695
      %v1446 = vpow.pop %v1445
      %v1447 = vmul.f32 %v1438, 1.442695
      %v1448 = vpow.pop %v1447
      %v1449 = vmul.f32 %v1439, 1.442695
      %v1450 = vpow.pop %v1449
      %v1451 = vmul.f32 %v1440, 1.442695
      %v1452 = vpow.pop %v1451
      %v1453 = vmul.f32 %v1441, 1.442695
      %v1454 = vpow.pop %v1453
      %v1455 = vmul.f32 %v1442, 1.442695
      %v1456 = vpow.pop %v1455
      %v1457 = vmul.f32 %v1443, 1.442695
      %v1458 = vpow.pop %v1457
      %v1459 = vmul.f32 %v1444, 1.442695
      %v1460 = vpow.pop %v1459
      %v1461 = vsel %vm454, %v1446, 0.0
      %1462 = vadd.xlane.f32.xlu0 %v1461
      %v1463 = vpop.xlane.xlu0 %1462
      %v1464 = vsel %vm454, %v1448, 0.0
      %1465 = vadd.xlane.f32.xlu0 %v1464
      %v1466 = vpop.xlane.xlu0 %1465
      %v1467 = vsel %vm454, %v1450, 0.0
      %1468 = vadd.xlane.f32.xlu0 %v1467
      %v1469 = vpop.xlane.xlu0 %1468
      %v1470 = vsel %vm454, %v1452, 0.0
      %1471 = vadd.xlane.f32.xlu0 %v1470
      %v1472 = vpop.xlane.xlu0 %1471
      %v1473 = vsel %vm454, %v1454, 0.0
      %1474 = vadd.xlane.f32.xlu0 %v1473
      %v1475 = vpop.xlane.xlu0 %1474
      %v1476 = vsel %vm454, %v1456, 0.0
      %1477 = vadd.xlane.f32.xlu0 %v1476
      %v1478 = vpop.xlane.xlu0 %1477
      %v1479 = vsel %vm454, %v1458, 0.0
      %1480 = vadd.xlane.f32.xlu0 %v1479
      %v1481 = vpop.xlane.xlu0 %1480
      %v1482 = vsel %vm454, %v1460, 0.0
      %1483 = vadd.xlane.f32.xlu0 %v1482
      %v1484 = vpop.xlane.xlu0 %1483
      %v1485 = vrcp.pop %v1463
      %v1486 = vrcp.pop %v1466
      %v1487 = vrcp.pop %v1469
      %v1488 = vrcp.pop %v1472
      %v1489 = vrcp.pop %v1475
      %v1490 = vrcp.pop %v1478
      %v1491 = vrcp.pop %v1481
      %v1492 = vrcp.pop %v1484
      %v1493 = vmul.f32 %v1446, %v1485
      %v1494 = vmul.f32 %v1448, %v1486
      %v1495 = vmul.f32 %v1450, %v1487
      %v1496 = vmul.f32 %v1452, %v1488
      %v1497 = vmul.f32 %v1454, %v1489
      %v1498 = vmul.f32 %v1456, %v1490
      %v1499 = vmul.f32 %v1458, %v1491
      %v1500 = vmul.f32 %v1460, %v1492
      %v1501 = vpack.c.bf16 %v1494, %v1493
      %v1502 = vpack.c.bf16 %v1496, %v1495
      %v1503 = vpack.c.bf16 %v1498, %v1497
      %v1504 = vpack.c.bf16 %v1500, %v1499
      %1506 = vrot.lane.b32.xlu0 %v628, 96
      %v1507 = vpop.permute.xlu0 %1506
      %v1510 = vsel %vm454, %v1401, 0
      %1512 = vmatprep.subr.bf16.mxu0 0
      %1513 = vmatpush1.bf16.msra.mxu0 %v1507
      %1514 = vmatprep.subr.bf16.mxu0 0
      %1515 = vmatpush1.bf16.msra.mxu0 0
      %1516 = vmatprep.subr.bf16.mxu0 0
      %1517 = vmatpush1.bf16.msra.mxu0 0
      %1518 = vmatprep.subr.bf16.mxu0 0
      %1519 = vmatpush1.bf16.msra.mxu0 0
      %1520 = vmatprep.subr.bf16.mxu0 0
      %1521 = vmatpush1.bf16.msra.mxu0 0
      %1522 = vmatprep.subr.bf16.mxu0 0
      %1523 = vmatpush1.bf16.msra.mxu0 0
      %1524 = vmatprep.subr.bf16.mxu0 0
      %1525 = vmatpush1.bf16.msra.mxu0 0
      %1526 = vmatprep.subr.bf16.mxu0 0
      %1527 = vmatpush1.bf16.msra.mxu0 0
      %1528 = vmatprep.subr.bf16.mxu0 0
      %1529 = vmatpush1.bf16.msra.mxu0 0
      %1530 = vmatprep.subr.bf16.mxu0 0
      %1531 = vmatpush1.bf16.msra.mxu0 0
      %1532 = vmatprep.subr.bf16.mxu0 0
      %1533 = vmatpush1.bf16.msra.mxu0 0
      %1534 = vmatprep.subr.bf16.mxu0 0
      %1535 = vmatpush1.bf16.msra.mxu0 0
      %1536 = vmatprep.subr.bf16.mxu0 0
      %1537 = vmatpush1.bf16.msra.mxu0 0
      %1538 = vmatprep.subr.bf16.mxu0 0
      %1539 = vmatpush1.bf16.msra.mxu0 0
      %1540 = vmatprep.subr.bf16.mxu0 0
      %1541 = vmatpush1.bf16.msra.mxu0 0
      %1542 = vmatprep.subr.bf16.mxu0 0
      %1543 = vmatpush1.bf16.msra.mxu0 0
      %1544 = vmatprep.mubr.bf16.mxu0 0
      %1545 = vmatmul.mubr.bf16.gmra.mrb[0].mxu0 %v1510
      %v1546 = vpop.f32.mrb[0].mxu0
      %v1547 = vadd.f32 0.0, %v1546
      %v1548 = vpop.f32.mrb[0].mxu0
      %v1549 = vpop.f32.mrb[0].mxu0
      %v1550 = vadd.f32 0.0, %v1549
      %v1551 = vpop.f32.mrb[0].mxu0
      %1552 = vdwg.mxu0
      %1554 = vrot.lane.b32.xlu0 %v629, 96
      %v1555 = vpop.permute.xlu0 %1554
      %v1558 = vsel %vm454, %v1402, 0
      %1560 = vmatprep.subr.bf16.mxu0 0
      %1561 = vmatpush1.bf16.msra.mxu0 %v1555
      %1562 = vmatprep.subr.bf16.mxu0 0
      %1563 = vmatpush1.bf16.msra.mxu0 0
      %1564 = vmatprep.subr.bf16.mxu0 0
      %1565 = vmatpush1.bf16.msra.mxu0 0
      %1566 = vmatprep.subr.bf16.mxu0 0
      %1567 = vmatpush1.bf16.msra.mxu0 0
      %1568 = vmatprep.subr.bf16.mxu0 0
      %1569 = vmatpush1.bf16.msra.mxu0 0
      %1570 = vmatprep.subr.bf16.mxu0 0
      %1571 = vmatpush1.bf16.msra.mxu0 0
      %1572 = vmatprep.subr.bf16.mxu0 0
      %1573 = vmatpush1.bf16.msra.mxu0 0
      %1574 = vmatprep.subr.bf16.mxu0 0
      %1575 = vmatpush1.bf16.msra.mxu0 0
      %1576 = vmatprep.subr.bf16.mxu0 0
      %1577 = vmatpush1.bf16.msra.mxu0 0
      %1578 = vmatprep.subr.bf16.mxu0 0
      %1579 = vmatpush1.bf16.msra.mxu0 0
      %1580 = vmatprep.subr.bf16.mxu0 0
      %1581 = vmatpush1.bf16.msra.mxu0 0
      %1582 = vmatprep.subr.bf16.mxu0 0
      %1583 = vmatpush1.bf16.msra.mxu0 0
      %1584 = vmatprep.subr.bf16.mxu0 0
      %1585 = vmatpush1.bf16.msra.mxu0 0
      %1586 = vmatprep.subr.bf16.mxu0 0
      %1587 = vmatpush1.bf16.msra.mxu0 0
      %1588 = vmatprep.subr.bf16.mxu0 0
      %1589 = vmatpush1.bf16.msra.mxu0 0
      %1590 = vmatprep.subr.bf16.mxu0 0
      %1591 = vmatpush1.bf16.msra.mxu0 0
      %1592 = vmatprep.mubr.bf16.mxu0 0
      %1593 = vmatmul.mubr.bf16.gmra.mrb[0].mxu0 %v1558
      %v1594 = vpop.f32.mrb[0].mxu0
      %v1595 = vadd.f32 0.0, %v1594
      %v1596 = vpop.f32.mrb[0].mxu0
      %v1597 = vpop.f32.mrb[0].mxu0
      %v1598 = vadd.f32 0.0, %v1597
      %v1599 = vpop.f32.mrb[0].mxu0
      %1600 = vdwg.mxu0
      %1602 = vrot.lane.b32.xlu0 %v630, 96
      %v1603 = vpop.permute.xlu0 %1602
      %v1606 = vsel %vm454, %v1403, 0
      %1608 = vmatprep.subr.bf16.mxu0 0
      %1609 = vmatpush1.bf16.msra.mxu0 %v1603
      %1610 = vmatprep.subr.bf16.mxu0 0
      %1611 = vmatpush1.bf16.msra.mxu0 0
      %1612 = vmatprep.subr.bf16.mxu0 0
      %1613 = vmatpush1.bf16.msra.mxu0 0
      %1614 = vmatprep.subr.bf16.mxu0 0
      %1615 = vmatpush1.bf16.msra.mxu0 0
      %1616 = vmatprep.subr.bf16.mxu0 0
      %1617 = vmatpush1.bf16.msra.mxu0 0
      %1618 = vmatprep.subr.bf16.mxu0 0
      %1619 = vmatpush1.bf16.msra.mxu0 0
      %1620 = vmatprep.subr.bf16.mxu0 0
      %1621 = vmatpush1.bf16.msra.mxu0 0
      %1622 = vmatprep.subr.bf16.mxu0 0
      %1623 = vmatpush1.bf16.msra.mxu0 0
      %1624 = vmatprep.subr.bf16.mxu0 0
      %1625 = vmatpush1.bf16.msra.mxu0 0
      %1626 = vmatprep.subr.bf16.mxu0 0
      %1627 = vmatpush1.bf16.msra.mxu0 0
      %1628 = vmatprep.subr.bf16.mxu0 0
      %1629 = vmatpush1.bf16.msra.mxu0 0
      %1630 = vmatprep.subr.bf16.mxu0 0
      %1631 = vmatpush1.bf16.msra.mxu0 0
      %1632 = vmatprep.subr.bf16.mxu0 0
      %1633 = vmatpush1.bf16.msra.mxu0 0
      %1634 = vmatprep.subr.bf16.mxu0 0
      %1635 = vmatpush1.bf16.msra.mxu0 0
      %1636 = vmatprep.subr.bf16.mxu0 0
      %1637 = vmatpush1.bf16.msra.mxu0 0
      %1638 = vmatprep.subr.bf16.mxu0 0
      %1639 = vmatpush1.bf16.msra.mxu0 0
      %1640 = vmatprep.mubr.bf16.mxu0 0
      %1641 = vmatmul.mubr.bf16.gmra.mrb[0].mxu0 %v1606
      %v1642 = vpop.f32.mrb[0].mxu0
      %v1643 = vadd.f32 0.0, %v1642
      %v1644 = vpop.f32.mrb[0].mxu0
      %v1645 = vpop.f32.mrb[0].mxu0
      %v1646 = vadd.f32 0.0, %v1645
      %v1647 = vpop.f32.mrb[0].mxu0
      %1648 = vdwg.mxu0
      %1650 = vrot.lane.b32.xlu0 %v631, 96
      %v1651 = vpop.permute.xlu0 %1650
      %v1654 = vsel %vm454, %v1404, 0
      %1656 = vmatprep.subr.bf16.mxu0 0
      %1657 = vmatpush1.bf16.msra.mxu0 %v1651
      %1658 = vmatprep.subr.bf16.mxu0 0
      %1659 = vmatpush1.bf16.msra.mxu0 0
      %1660 = vmatprep.subr.bf16.mxu0 0
      %1661 = vmatpush1.bf16.msra.mxu0 0
      %1662 = vmatprep.subr.bf16.mxu0 0
      %1663 = vmatpush1.bf16.msra.mxu0 0
      %1664 = vmatprep.subr.bf16.mxu0 0
      %1665 = vmatpush1.bf16.msra.mxu0 0
      %1666 = vmatprep.subr.bf16.mxu0 0
      %1667 = vmatpush1.bf16.msra.mxu0 0
      %1668 = vmatprep.subr.bf16.mxu0 0
      %1669 = vmatpush1.bf16.msra.mxu0 0
      %1670 = vmatprep.subr.bf16.mxu0 0
      %1671 = vmatpush1.bf16.msra.mxu0 0
      %1672 = vmatprep.subr.bf16.mxu0 0
      %1673 = vmatpush1.bf16.msra.mxu0 0
      %1674 = vmatprep.subr.bf16.mxu0 0
      %1675 = vmatpush1.bf16.msra.mxu0 0
      %1676 = vmatprep.subr.bf16.mxu0 0
      %1677 = vmatpush1.bf16.msra.mxu0 0
      %1678 = vmatprep.subr.bf16.mxu0 0
      %1679 = vmatpush1.bf16.msra.mxu0 0
      %1680 = vmatprep.subr.bf16.mxu0 0
      %1681 = vmatpush1.bf16.msra.mxu0 0
      %1682 = vmatprep.subr.bf16.mxu0 0
      %1683 = vmatpush1.bf16.msra.mxu0 0
      %1684 = vmatprep.subr.bf16.mxu0 0
      %1685 = vmatpush1.bf16.msra.mxu0 0
      %1686 = vmatprep.subr.bf16.mxu0 0
      %1687 = vmatpush1.bf16.msra.mxu0 0
      %1688 = vmatprep.mubr.bf16.mxu0 0
      %1689 = vmatmul.mubr.bf16.gmra.mrb[0].mxu0 %v1654
      %v1690 = vpop.f32.mrb[0].mxu0
      %v1691 = vadd.f32 0.0, %v1690
      %v1692 = vpop.f32.mrb[0].mxu0
      %v1693 = vpop.f32.mrb[0].mxu0
      %v1694 = vadd.f32 0.0, %v1693
      %v1695 = vpop.f32.mrb[0].mxu0
      %1696 = vdwg.mxu0
      %1697 = vrot.lane.b32.xlu0 %v628, 88
      %v1698 = vpop.permute.xlu0 %1697
      %v1701 = vsel %vm454, %v1501, 0
      %1703 = vmatprep.subr.bf16.mxu0 0
      %1704 = vmatpush1.bf16.msra.mxu0 %v1698
      %1705 = vmatprep.subr.bf16.mxu0 0
      %1706 = vmatpush1.bf16.msra.mxu0 0
      %1707 = vmatprep.subr.bf16.mxu0 0
      %1708 = vmatpush1.bf16.msra.mxu0 0
      %1709 = vmatprep.subr.bf16.mxu0 0
      %1710 = vmatpush1.bf16.msra.mxu0 0
      %1711 = vmatprep.subr.bf16.mxu0 0
      %1712 = vmatpush1.bf16.msra.mxu0 0
      %1713 = vmatprep.subr.bf16.mxu0 0
      %1714 = vmatpush1.bf16.msra.mxu0 0
      %1715 = vmatprep.subr.bf16.mxu0 0
      %1716 = vmatpush1.bf16.msra.mxu0 0
      %1717 = vmatprep.subr.bf16.mxu0 0
      %1718 = vmatpush1.bf16.msra.mxu0 0
      %1719 = vmatprep.subr.bf16.mxu0 0
      %1720 = vmatpush1.bf16.msra.mxu0 0
      %1721 = vmatprep.subr.bf16.mxu0 0
      %1722 = vmatpush1.bf16.msra.mxu0 0
      %1723 = vmatprep.subr.bf16.mxu0 0
      %1724 = vmatpush1.bf16.msra.mxu0 0
      %1725 = vmatprep.subr.bf16.mxu0 0
      %1726 = vmatpush1.bf16.msra.mxu0 0
      %1727 = vmatprep.subr.bf16.mxu0 0
      %1728 = vmatpush1.bf16.msra.mxu0 0
      %1729 = vmatprep.subr.bf16.mxu0 0
      %1730 = vmatpush1.bf16.msra.mxu0 0
      %1731 = vmatprep.subr.bf16.mxu0 0
      %1732 = vmatpush1.bf16.msra.mxu0 0
      %1733 = vmatprep.subr.bf16.mxu0 0
      %1734 = vmatpush1.bf16.msra.mxu0 0
      %1735 = vmatprep.mubr.bf16.mxu0 0
      %1736 = vmatmul.mubr.bf16.gmra.mrb[0].mxu0 %v1701
      %v1737 = vpop.f32.mrb[0].mxu0
      %v1738 = vadd.f32 0.0, %v1737
      %v1739 = vpop.f32.mrb[0].mxu0
      %v1740 = vpop.f32.mrb[0].mxu0
      %v1741 = vadd.f32 0.0, %v1740
      %v1742 = vpop.f32.mrb[0].mxu0
      %1743 = vdwg.mxu0
      %1744 = vrot.lane.b32.xlu0 %v629, 88
      %v1745 = vpop.permute.xlu0 %1744
      %v1748 = vsel %vm454, %v1502, 0
      %1750 = vmatprep.subr.bf16.mxu0 0
      %1751 = vmatpush1.bf16.msra.mxu0 %v1745
      %1752 = vmatprep.subr.bf16.mxu0 0
      %1753 = vmatpush1.bf16.msra.mxu0 0
      %1754 = vmatprep.subr.bf16.mxu0 0
      %1755 = vmatpush1.bf16.msra.mxu0 0
      %1756 = vmatprep.subr.bf16.mxu0 0
      %1757 = vmatpush1.bf16.msra.mxu0 0
      %1758 = vmatprep.subr.bf16.mxu0 0
      %1759 = vmatpush1.bf16.msra.mxu0 0
      %1760 = vmatprep.subr.bf16.mxu0 0
      %1761 = vmatpush1.bf16.msra.mxu0 0
      %1762 = vmatprep.subr.bf16.mxu0 0
      %1763 = vmatpush1.bf16.msra.mxu0 0
      %1764 = vmatprep.subr.bf16.mxu0 0
      %1765 = vmatpush1.bf16.msra.mxu0 0
      %1766 = vmatprep.subr.bf16.mxu0 0
      %1767 = vmatpush1.bf16.msra.mxu0 0
      %1768 = vmatprep.subr.bf16.mxu0 0
      %1769 = vmatpush1.bf16.msra.mxu0 0
      %1770 = vmatprep.subr.bf16.mxu0 0
      %1771 = vmatpush1.bf16.msra.mxu0 0
      %1772 = vmatprep.subr.bf16.mxu0 0
      %1773 = vmatpush1.bf16.msra.mxu0 0
      %1774 = vmatprep.subr.bf16.mxu0 0
      %1775 = vmatpush1.bf16.msra.mxu0 0
      %1776 = vmatprep.subr.bf16.mxu0 0
      %1777 = vmatpush1.bf16.msra.mxu0 0
      %1778 = vmatprep.subr.bf16.mxu0 0
      %1779 = vmatpush1.bf16.msra.mxu0 0
      %1780 = vmatprep.subr.bf16.mxu0 0
      %1781 = vmatpush1.bf16.msra.mxu0 0
      %1782 = vmatprep.mubr.bf16.mxu0 0
      %1783 = vmatmul.mubr.bf16.gmra.mrb[0].mxu0 %v1748
      %v1784 = vpop.f32.mrb[0].mxu0
      %v1785 = vadd.f32 0.0, %v1784
      %v1786 = vpop.f32.mrb[0].mxu0
      %v1787 = vpop.f32.mrb[0].mxu0
      %v1788 = vadd.f32 0.0, %v1787
      %v1789 = vpop.f32.mrb[0].mxu0
      %1790 = vdwg.mxu0
      %1791 = vrot.lane.b32.xlu0 %v630, 88
      %v1792 = vpop.permute.xlu0 %1791
      %v1795 = vsel %vm454, %v1503, 0
      %1797 = vmatprep.subr.bf16.mxu0 0
      %1798 = vmatpush1.bf16.msra.mxu0 %v1792
      %1799 = vmatprep.subr.bf16.mxu0 0
      %1800 = vmatpush1.bf16.msra.mxu0 0
      %1801 = vmatprep.subr.bf16.mxu0 0
      %1802 = vmatpush1.bf16.msra.mxu0 0
      %1803 = vmatprep.subr.bf16.mxu0 0
      %1804 = vmatpush1.bf16.msra.mxu0 0
      %1805 = vmatprep.subr.bf16.mxu0 0
      %1806 = vmatpush1.bf16.msra.mxu0 0
      %1807 = vmatprep.subr.bf16.mxu0 0
      %1808 = vmatpush1.bf16.msra.mxu0 0
      %1809 = vmatprep.subr.bf16.mxu0 0
      %1810 = vmatpush1.bf16.msra.mxu0 0
      %1811 = vmatprep.subr.bf16.mxu0 0
      %1812 = vmatpush1.bf16.msra.mxu0 0
      %1813 = vmatprep.subr.bf16.mxu0 0
      %1814 = vmatpush1.bf16.msra.mxu0 0
      %1815 = vmatprep.subr.bf16.mxu0 0
      %1816 = vmatpush1.bf16.msra.mxu0 0
      %1817 = vmatprep.subr.bf16.mxu0 0
      %1818 = vmatpush1.bf16.msra.mxu0 0
      %1819 = vmatprep.subr.bf16.mxu0 0
      %1820 = vmatpush1.bf16.msra.mxu0 0
      %1821 = vmatprep.subr.bf16.mxu0 0
      %1822 = vmatpush1.bf16.msra.mxu0 0
      %1823 = vmatprep.subr.bf16.mxu0 0
      %1824 = vmatpush1.bf16.msra.mxu0 0
      %1825 = vmatprep.subr.bf16.mxu0 0
      %1826 = vmatpush1.bf16.msra.mxu0 0
      %1827 = vmatprep.subr.bf16.mxu0 0
      %1828 = vmatpush1.bf16.msra.mxu0 0
      %1829 = vmatprep.mubr.bf16.mxu0 0
      %1830 = vmatmul.mubr.bf16.gmra.mrb[0].mxu0 %v1795
      %v1831 = vpop.f32.mrb[0].mxu0
      %v1832 = vadd.f32 0.0, %v1831
      %v1833 = vpop.f32.mrb[0].mxu0
      %v1834 = vpop.f32.mrb[0].mxu0
      %v1835 = vadd.f32 0.0, %v1834
      %v1836 = vpop.f32.mrb[0].mxu0
      %1837 = vdwg.mxu0
      %1838 = vrot.lane.b32.xlu0 %v631, 88
      %v1839 = vpop.permute.xlu0 %1838
      %v1842 = vsel %vm454, %v1504, 0
      %1844 = vmatprep.subr.bf16.mxu0 0
      %1845 = vmatpush1.bf16.msra.mxu0 %v1839
      %1846 = vmatprep.subr.bf16.mxu0 0
      %1847 = vmatpush1.bf16.msra.mxu0 0
      %1848 = vmatprep.subr.bf16.mxu0 0
      %1849 = vmatpush1.bf16.msra.mxu0 0
      %1850 = vmatprep.subr.bf16.mxu0 0
      %1851 = vmatpush1.bf16.msra.mxu0 0
      %1852 = vmatprep.subr.bf16.mxu0 0
      %1853 = vmatpush1.bf16.msra.mxu0 0
      %1854 = vmatprep.subr.bf16.mxu0 0
      %1855 = vmatpush1.bf16.msra.mxu0 0
      %1856 = vmatprep.subr.bf16.mxu0 0
      %1857 = vmatpush1.bf16.msra.mxu0 0
      %1858 = vmatprep.subr.bf16.mxu0 0
      %1859 = vmatpush1.bf16.msra.mxu0 0
      %1860 = vmatprep.subr.bf16.mxu0 0
      %1861 = vmatpush1.bf16.msra.mxu0 0
      %1862 = vmatprep.subr.bf16.mxu0 0
      %1863 = vmatpush1.bf16.msra.mxu0 0
      %1864 = vmatprep.subr.bf16.mxu0 0
      %1865 = vmatpush1.bf16.msra.mxu0 0
      %1866 = vmatprep.subr.bf16.mxu0 0
      %1867 = vmatpush1.bf16.msra.mxu0 0
      %1868 = vmatprep.subr.bf16.mxu0 0
      %1869 = vmatpush1.bf16.msra.mxu0 0
      %1870 = vmatprep.subr.bf16.mxu0 0
      %1871 = vmatpush1.bf16.msra.mxu0 0
      %1872 = vmatprep.subr.bf16.mxu0 0
      %1873 = vmatpush1.bf16.msra.mxu0 0
      %1874 = vmatprep.subr.bf16.mxu0 0
      %1875 = vmatpush1.bf16.msra.mxu0 0
      %1876 = vmatprep.mubr.bf16.mxu0 0
      %1877 = vmatmul.mubr.bf16.gmra.mrb[0].mxu0 %v1842
      %v1878 = vpop.f32.mrb[0].mxu0
      %v1879 = vadd.f32 0.0, %v1878
      %v1880 = vpop.f32.mrb[0].mxu0
      %v1881 = vpop.f32.mrb[0].mxu0
      %v1882 = vadd.f32 0.0, %v1881
      %v1883 = vpop.f32.mrb[0].mxu0
      %1884 = vdwg.mxu0
      %v1885 = vpack.c.bf16 %v1550, %v1547
      %v1886 = vpack.c.bf16 %v1741, %v1738
      %v1887 = vpack.c.bf16 %v1598, %v1595
      %v1888 = vpack.c.bf16 %v1788, %v1785
      %v1889 = vpack.c.bf16 %v1646, %v1643
      %v1890 = vpack.c.bf16 %v1835, %v1832
      %v1891 = vpack.c.bf16 %v1694, %v1691
      %v1892 = vpack.c.bf16 %v1882, %v1879
      %v1893 = vld [vmem:[%s2] sm:$0xf]
      %v1894 = vld [vmem:[%s2 + $0x4] sm:$0xf]
      %v1895 = vld [vmem:[%s2 + $0x8] sm:$0xf]
      %v1896 = vld [vmem:[%s2 + $0xc] sm:$0xf]
      %v1897 = vld [vmem:[%s2 + $0x10] sm:$0xf]
      %v1898 = vld [vmem:[%s2 + $0x14] sm:$0xf]
      %v1899 = vld [vmem:[%s2 + $0x18] sm:$0xf]
      %v1900 = vld [vmem:[%s2 + $0x1c] sm:$0xf]
      %v1909 = vunpack.c.l.b16 %v1893
      %v1910 = vunpack.c.l.b16 %v1894
      %v1911 = vunpack.c.l.b16 %v1895
      %v1912 = vunpack.c.l.b16 %v1896
      %v1913 = vunpack.c.l.b16 %v1897
      %v1914 = vunpack.c.l.b16 %v1898
      %v1915 = vunpack.c.l.b16 %v1899
      %v1916 = vunpack.c.l.b16 %v1900
      %v1917 = vpack.c.b16 %v1910, %v1909
      %v1918 = vpack.c.b16 %v1912, %v1911
      %v1919 = vpack.c.b16 %v1914, %v1913
      %v1920 = vpack.c.b16 %v1916, %v1915
      %1925 = vmatprep.subr.bf16.mxu0 0
      %1926 = vmatpush1.bf16.msra.mxu0 %v1885
      %1927 = vmatprep.subr.bf16.mxu0 0
      %1928 = vmatpush1.bf16.msra.mxu0 %v1886
      %1929 = vmatprep.subr.bf16.mxu0 0
      %1930 = vmatpush1.bf16.msra.mxu0 %v1887
      %1931 = vmatprep.subr.bf16.mxu0 0
      %1932 = vmatpush1.bf16.msra.mxu0 %v1888
      %1933 = vmatprep.subr.bf16.mxu0 0
      %1934 = vmatpush1.bf16.msra.mxu0 %v1889
      %1935 = vmatprep.subr.bf16.mxu0 0
      %1936 = vmatpush1.bf16.msra.mxu0 %v1890
      %1937 = vmatprep.subr.bf16.mxu0 0
      %1938 = vmatpush1.bf16.msra.mxu0 %v1891
      %1939 = vmatprep.subr.bf16.mxu0 0
      %1940 = vmatpush1.bf16.msra.mxu0 %v1892
      %1941 = vmatprep.subr.bf16.mxu0 0
      %1942 = vmatpush1.bf16.msra.mxu0 0
      %1943 = vmatprep.subr.bf16.mxu0 0
      %1944 = vmatpush1.bf16.msra.mxu0 0
      %1945 = vmatprep.subr.bf16.mxu0 0
      %1946 = vmatpush1.bf16.msra.mxu0 0
      %1947 = vmatprep.subr.bf16.mxu0 0
      %1948 = vmatpush1.bf16.msra.mxu0 0
      %1949 = vmatprep.subr.bf16.mxu0 0
      %1950 = vmatpush1.bf16.msra.mxu0 0
      %1951 = vmatprep.subr.bf16.mxu0 0
      %1952 = vmatpush1.bf16.msra.mxu0 0
      %1953 = vmatprep.subr.bf16.mxu0 0
      %1954 = vmatpush1.bf16.msra.mxu0 0
      %1955 = vmatprep.subr.bf16.mxu0 0
      %1956 = vmatpush1.bf16.msra.mxu0 0
      %1957 = vmatprep.mubr.bf16.mxu0 0
      %1958 = vmatmul.mubr.bf16.gmra.mrb[0].mxu0 %v1917
      %v1959 = vpop.f32.mrb[0].mxu0
      %v1960 = vadd.f32 0.0, %v1959
      %v1961 = vpop.f32.mrb[0].mxu0
      %v1962 = vpop.f32.mrb[0].mxu0
      %v1963 = vadd.f32 0.0, %v1962
      %v1964 = vpop.f32.mrb[0].mxu0
      %1965 = vmatprep.mubr.bf16.mxu0 0
      %1966 = vmatmul.mubr.bf16.gmra.mrb[0].mxu0 %v1918
      %v1967 = vpop.f32.mrb[0].mxu0
      %v1968 = vadd.f32 0.0, %v1967
      %v1969 = vpop.f32.mrb[0].mxu0
      %v1970 = vpop.f32.mrb[0].mxu0
      %v1971 = vadd.f32 0.0, %v1970
      %v1972 = vpop.f32.mrb[0].mxu0
      %1973 = vmatprep.mubr.bf16.mxu0 0
      %1974 = vmatmul.mubr.bf16.gmra.mrb[0].mxu0 %v1919
      %v1975 = vpop.f32.mrb[0].mxu0
      %v1976 = vadd.f32 0.0, %v1975
      %v1977 = vpop.f32.mrb[0].mxu0
      %v1978 = vpop.f32.mrb[0].mxu0
      %v1979 = vadd.f32 0.0, %v1978
      %v1980 = vpop.f32.mrb[0].mxu0
      %1981 = vmatprep.mubr.bf16.mxu0 0
      %1982 = vmatmul.mubr.bf16.gmra.mrb[0].mxu0 %v1920
      %v1983 = vpop.f32.mrb[0].mxu0
      %v1984 = vadd.f32 0.0, %v1983
      %v1985 = vpop.f32.mrb[0].mxu0
      %v1986 = vpop.f32.mrb[0].mxu0
      %v1987 = vadd.f32 0.0, %v1986
      %v1988 = vpop.f32.mrb[0].mxu0
      %1989 = vdwg.mxu0
      %s1990 = scalar_lea.vmem %s2, 32
      %v1991 = vld [vmem:[%s1990] sm:$0xf]
      %v1992 = vld [vmem:[%s1990 + $0x4] sm:$0xf]
      %v1993 = vld [vmem:[%s1990 + $0x8] sm:$0xf]
      %v1994 = vld [vmem:[%s1990 + $0xc] sm:$0xf]
      %v1995 = vld [vmem:[%s1990 + $0x10] sm:$0xf]
      %v1996 = vld [vmem:[%s1990 + $0x14] sm:$0xf]
      %v1997 = vld [vmem:[%s1990 + $0x18] sm:$0xf]
      %v1998 = vld [vmem:[%s1990 + $0x1c] sm:$0xf]
      %v2007 = vunpack.c.l.b16 %v1991
      %v2008 = vunpack.c.l.b16 %v1992
      %v2009 = vunpack.c.l.b16 %v1993
      %v2010 = vunpack.c.l.b16 %v1994
      %v2011 = vunpack.c.l.b16 %v1995
      %v2012 = vunpack.c.l.b16 %v1996
      %v2013 = vunpack.c.l.b16 %v1997
      %v2014 = vunpack.c.l.b16 %v1998
      %v2015 = vpack.c.b16 %v2008, %v2007
      %v2016 = vpack.c.b16 %v2010, %v2009
      %v2017 = vpack.c.b16 %v2012, %v2011
      %v2018 = vpack.c.b16 %v2014, %v2013
      %2023 = vmatprep.subr.bf16.mxu0 0
      %2024 = vmatpush1.bf16.msra.mxu0 %v1885
      %2025 = vmatprep.subr.bf16.mxu0 0
      %2026 = vmatpush1.bf16.msra.mxu0 %v1886
      %2027 = vmatprep.subr.bf16.mxu0 0
      %2028 = vmatpush1.bf16.msra.mxu0 %v1887
      %2029 = vmatprep.subr.bf16.mxu0 0
      %2030 = vmatpush1.bf16.msra.mxu0 %v1888
      %2031 = vmatprep.subr.bf16.mxu0 0
      %2032 = vmatpush1.bf16.msra.mxu0 %v1889
      %2033 = vmatprep.subr.bf16.mxu0 0
      %2034 = vmatpush1.bf16.msra.mxu0 %v1890
      %2035 = vmatprep.subr.bf16.mxu0 0
      %2036 = vmatpush1.bf16.msra.mxu0 %v1891
      %2037 = vmatprep.subr.bf16.mxu0 0
      %2038 = vmatpush1.bf16.msra.mxu0 %v1892
      %2039 = vmatprep.subr.bf16.mxu0 0
      %2040 = vmatpush1.bf16.msra.mxu0 0
      %2041 = vmatprep.subr.bf16.mxu0 0
      %2042 = vmatpush1.bf16.msra.mxu0 0
      %2043 = vmatprep.subr.bf16.mxu0 0
      %2044 = vmatpush1.bf16.msra.mxu0 0
      %2045 = vmatprep.subr.bf16.mxu0 0
      %2046 = vmatpush1.bf16.msra.mxu0 0
      %2047 = vmatprep.subr.bf16.mxu0 0
      %2048 = vmatpush1.bf16.msra.mxu0 0
      %2049 = vmatprep.subr.bf16.mxu0 0
      %2050 = vmatpush1.bf16.msra.mxu0 0
      %2051 = vmatprep.subr.bf16.mxu0 0
      %2052 = vmatpush1.bf16.msra.mxu0 0
      %2053 = vmatprep.subr.bf16.mxu0 0
      %2054 = vmatpush1.bf16.msra.mxu0 0
      %2055 = vmatprep.mubr.bf16.mxu0 0
      %2056 = vmatmul.mubr.bf16.gmra.mrb[0].mxu0 %v2015
      %v2057 = vpop.f32.mrb[0].mxu0
      %v2058 = vadd.f32 0.0, %v2057
      %v2059 = vpop.f32.mrb[0].mxu0
      %v2060 = vpop.f32.mrb[0].mxu0
      %v2061 = vadd.f32 0.0, %v2060
      %v2062 = vpop.f32.mrb[0].mxu0
      %2063 = vmatprep.mubr.bf16.mxu0 0
      %2064 = vmatmul.mubr.bf16.gmra.mrb[0].mxu0 %v2016
      %v2065 = vpop.f32.mrb[0].mxu0
      %v2066 = vadd.f32 0.0, %v2065
      %v2067 = vpop.f32.mrb[0].mxu0
      %v2068 = vpop.f32.mrb[0].mxu0
      %v2069 = vadd.f32 0.0, %v2068
      %v2070 = vpop.f32.mrb[0].mxu0
      %2071 = vmatprep.mubr.bf16.mxu0 0
      %2072 = vmatmul.mubr.bf16.gmra.mrb[0].mxu0 %v2017
      %v2073 = vpop.f32.mrb[0].mxu0
      %v2074 = vadd.f32 0.0, %v2073
      %v2075 = vpop.f32.mrb[0].mxu0
      %v2076 = vpop.f32.mrb[0].mxu0
      %v2077 = vadd.f32 0.0, %v2076
      %v2078 = vpop.f32.mrb[0].mxu0
      %2079 = vmatprep.mubr.bf16.mxu0 0
      %2080 = vmatmul.mubr.bf16.gmra.mrb[0].mxu0 %v2018
      %v2081 = vpop.f32.mrb[0].mxu0
      %v2082 = vadd.f32 0.0, %v2081
      %v2083 = vpop.f32.mrb[0].mxu0
      %v2084 = vpop.f32.mrb[0].mxu0
      %v2085 = vadd.f32 0.0, %v2084
      %v2086 = vpop.f32.mrb[0].mxu0
      %2087 = vdwg.mxu0
      %2096 = vrot.lane.b32.xlu0 %v2058, 8
      %v2097 = vpop.permute.xlu0 %2096
      %2098 = vrot.lane.b32.xlu0 %v2061, 8
      %v2099 = vpop.permute.xlu0 %2098
      %2100 = vrot.lane.b32.xlu0 %v2066, 8
      %v2101 = vpop.permute.xlu0 %2100
      %2102 = vrot.lane.b32.xlu0 %v2069, 8
      %v2103 = vpop.permute.xlu0 %2102
      %2104 = vrot.lane.b32.xlu0 %v2074, 8
      %v2105 = vpop.permute.xlu0 %2104
      %2106 = vrot.lane.b32.xlu0 %v2077, 8
      %v2107 = vpop.permute.xlu0 %2106
      %2108 = vrot.lane.b32.xlu0 %v2082, 8
      %v2109 = vpop.permute.xlu0 %2108
      %2110 = vrot.lane.b32.xlu0 %v2085, 8
      %v2111 = vpop.permute.xlu0 %2110
      %v2120 = vsel %vm832, %v1960, %v2097
      %v2121 = vsel %vm832, %v1963, %v2099
      %v2122 = vsel %vm832, %v1968, %v2101
      %v2123 = vsel %vm832, %v1971, %v2103
      %v2124 = vsel %vm832, %v1976, %v2105
      %v2125 = vsel %vm832, %v1979, %v2107
      %v2126 = vsel %vm832, %v1984, %v2109
      %v2127 = vsel %vm832, %v1987, %v2111
      %v2128 = vpack.c.bf16 %v2121, %v2120
      %v2129 = vpack.c.bf16 %v2123, %v2122
      %v2130 = vpack.c.bf16 %v2125, %v2124
      %v2131 = vpack.c.bf16 %v2127, %v2126
      %v2132 = vld [vmem:[%s3] sm:$0xf]
      %v2133 = vld [vmem:[%s3 + $0x4] sm:$0xf]
      %v2136 = vunpack.c.l.b16 %v2132
      %v2137 = vunpack.c.l.b16 %v2133
      %v2138 = vpack.c.b16 %v2137, %v2136
      %v2141 = vsel %vm454, %v2128, 0
      %v2144 = vsel %vm454, %v2129, 0
      %v2147 = vsel %vm454, %v2130, 0
      %v2150 = vsel %vm454, %v2131, 0
      %2152 = vmatprep.subr.bf16.mxu0 0
      %2153 = vmatpush1.bf16.msra.mxu0 %v2138
      %2154 = vmatprep.subr.bf16.mxu0 0
      %2155 = vmatpush1.bf16.msra.mxu0 0
      %2156 = vmatprep.subr.bf16.mxu0 0
      %2157 = vmatpush1.bf16.msra.mxu0 0
      %2158 = vmatprep.subr.bf16.mxu0 0
      %2159 = vmatpush1.bf16.msra.mxu0 0
      %2160 = vmatprep.subr.bf16.mxu0 0
      %2161 = vmatpush1.bf16.msra.mxu0 0
      %2162 = vmatprep.subr.bf16.mxu0 0
      %2163 = vmatpush1.bf16.msra.mxu0 0
      %2164 = vmatprep.subr.bf16.mxu0 0
      %2165 = vmatpush1.bf16.msra.mxu0 0
      %2166 = vmatprep.subr.bf16.mxu0 0
      %2167 = vmatpush1.bf16.msra.mxu0 0
      %2168 = vmatprep.subr.bf16.mxu0 0
      %2169 = vmatpush1.bf16.msra.mxu0 0
      %2170 = vmatprep.subr.bf16.mxu0 0
      %2171 = vmatpush1.bf16.msra.mxu0 0
      %2172 = vmatprep.subr.bf16.mxu0 0
      %2173 = vmatpush1.bf16.msra.mxu0 0
      %2174 = vmatprep.subr.bf16.mxu0 0
      %2175 = vmatpush1.bf16.msra.mxu0 0
      %2176 = vmatprep.subr.bf16.mxu0 0
      %2177 = vmatpush1.bf16.msra.mxu0 0
      %2178 = vmatprep.subr.bf16.mxu0 0
      %2179 = vmatpush1.bf16.msra.mxu0 0
      %2180 = vmatprep.subr.bf16.mxu0 0
      %2181 = vmatpush1.bf16.msra.mxu0 0
      %2182 = vmatprep.subr.bf16.mxu0 0
      %2183 = vmatpush1.bf16.msra.mxu0 0
      %2184 = vmatprep.mubr.bf16.mxu0 0
      %2185 = vmatmul.mubr.bf16.gmra.mrb[0].mxu0 %v2141
      %v2186 = vpop.f32.mrb[0].mxu0
      %v2187 = vadd.f32 0.0, %v2186
      %v2188 = vpop.f32.mrb[0].mxu0
      %v2189 = vpop.f32.mrb[0].mxu0
      %v2190 = vadd.f32 0.0, %v2189
      %v2191 = vpop.f32.mrb[0].mxu0
      %2192 = vmatprep.mubr.bf16.mxu0 0
      %2193 = vmatmul.mubr.bf16.gmra.mrb[0].mxu0 %v2144
      %v2194 = vpop.f32.mrb[0].mxu0
      %v2195 = vadd.f32 0.0, %v2194
      %v2196 = vpop.f32.mrb[0].mxu0
      %v2197 = vpop.f32.mrb[0].mxu0
      %v2198 = vadd.f32 0.0, %v2197
      %v2199 = vpop.f32.mrb[0].mxu0
      %2200 = vmatprep.mubr.bf16.mxu0 0
      %2201 = vmatmul.mubr.bf16.gmra.mrb[0].mxu0 %v2147
      %v2202 = vpop.f32.mrb[0].mxu0
      %v2203 = vadd.f32 0.0, %v2202
      %v2204 = vpop.f32.mrb[0].mxu0
      %v2205 = vpop.f32.mrb[0].mxu0
      %v2206 = vadd.f32 0.0, %v2205
      %v2207 = vpop.f32.mrb[0].mxu0
      %2208 = vmatprep.mubr.bf16.mxu0 0
      %2209 = vmatmul.mubr.bf16.gmra.mrb[0].mxu0 %v2150
      %v2210 = vpop.f32.mrb[0].mxu0
      %v2211 = vadd.f32 0.0, %v2210
      %v2212 = vpop.f32.mrb[0].mxu0
      %v2213 = vpop.f32.mrb[0].mxu0
      %v2214 = vadd.f32 0.0, %v2213
      %v2215 = vpop.f32.mrb[0].mxu0
      %2216 = vdwg.mxu0
      %v2217 = vsel %vm454, %v2187, 0.0
      %2218 = vadd.xlane.f32.xlu0 %v2217
      %v2219 = vpop.xlane.xlu0 %2218
      %v2220 = vsel %vm454, %v2190, 0.0
      %2221 = vadd.xlane.f32.xlu0 %v2220
      %v2222 = vpop.xlane.xlu0 %2221
      %v2223 = vsel %vm454, %v2195, 0.0
      %2224 = vadd.xlane.f32.xlu0 %v2223
      %v2225 = vpop.xlane.xlu0 %2224
      %v2226 = vsel %vm454, %v2198, 0.0
      %2227 = vadd.xlane.f32.xlu0 %v2226
      %v2228 = vpop.xlane.xlu0 %2227
      %v2229 = vsel %vm454, %v2203, 0.0
      %2230 = vadd.xlane.f32.xlu0 %v2229
      %v2231 = vpop.xlane.xlu0 %2230
      %v2232 = vsel %vm454, %v2206, 0.0
      %2233 = vadd.xlane.f32.xlu0 %v2232
      %v2234 = vpop.xlane.xlu0 %2233
      %v2235 = vsel %vm454, %v2211, 0.0
      %2236 = vadd.xlane.f32.xlu0 %v2235
      %v2237 = vpop.xlane.xlu0 %2236
      %v2238 = vsel %vm454, %v2214, 0.0
      %2239 = vadd.xlane.f32.xlu0 %v2238
      %v2240 = vpop.xlane.xlu0 %2239
      %v2241 = vrcp.pop 16.0
      %v2242 = vmul.f32 %v2219, %v2241
      %v2243 = vmul.f32 %v2222, %v2241
      %v2244 = vmul.f32 %v2225, %v2241
      %v2245 = vmul.f32 %v2228, %v2241
      %v2246 = vmul.f32 %v2231, %v2241
      %v2247 = vmul.f32 %v2234, %v2241
      %v2248 = vmul.f32 %v2237, %v2241
      %v2249 = vmul.f32 %v2240, %v2241
      %v2250 = vsub.f32 %v2187, %v2242
      %v2251 = vsub.f32 %v2190, %v2243
      %v2252 = vsub.f32 %v2195, %v2244
      %v2253 = vsub.f32 %v2198, %v2245
      %v2254 = vsub.f32 %v2203, %v2246
      %v2255 = vsub.f32 %v2206, %v2247
      %v2256 = vsub.f32 %v2211, %v2248
      %v2257 = vsub.f32 %v2214, %v2249
      %v2258 = vmul.f32 %v2250, %v2250
      %v2259 = vmul.f32 %v2251, %v2251
      %v2260 = vmul.f32 %v2252, %v2252
      %v2261 = vmul.f32 %v2253, %v2253
      %v2262 = vmul.f32 %v2254, %v2254
      %v2263 = vmul.f32 %v2255, %v2255
      %v2264 = vmul.f32 %v2256, %v2256
      %v2265 = vmul.f32 %v2257, %v2257
      %v2266 = vsel %vm454, %v2258, 0.0
      %2267 = vadd.xlane.f32.xlu0 %v2266
      %v2268 = vpop.xlane.xlu0 %2267
      %v2269 = vsel %vm454, %v2259, 0.0
      %2270 = vadd.xlane.f32.xlu0 %v2269
      %v2271 = vpop.xlane.xlu0 %2270
      %v2272 = vsel %vm454, %v2260, 0.0
      %2273 = vadd.xlane.f32.xlu0 %v2272
      %v2274 = vpop.xlane.xlu0 %2273
      %v2275 = vsel %vm454, %v2261, 0.0
      %2276 = vadd.xlane.f32.xlu0 %v2275
      %v2277 = vpop.xlane.xlu0 %2276
      %v2278 = vsel %vm454, %v2262, 0.0
      %2279 = vadd.xlane.f32.xlu0 %v2278
      %v2280 = vpop.xlane.xlu0 %2279
      %v2281 = vsel %vm454, %v2263, 0.0
      %2282 = vadd.xlane.f32.xlu0 %v2281
      %v2283 = vpop.xlane.xlu0 %2282
      %v2284 = vsel %vm454, %v2264, 0.0
      %2285 = vadd.xlane.f32.xlu0 %v2284
      %v2286 = vpop.xlane.xlu0 %2285
      %v2287 = vsel %vm454, %v2265, 0.0
      %2288 = vadd.xlane.f32.xlu0 %v2287
      %v2289 = vpop.xlane.xlu0 %2288
      %v2290 = vmul.f32 %v2268, %v2241
      %v2291 = vmul.f32 %v2271, %v2241
      %v2292 = vmul.f32 %v2274, %v2241
      %v2293 = vmul.f32 %v2277, %v2241
      %v2294 = vmul.f32 %v2280, %v2241
      %v2295 = vmul.f32 %v2283, %v2241
      %v2296 = vmul.f32 %v2286, %v2241
      %v2297 = vmul.f32 %v2289, %v2241
      %v2298 = vadd.f32 %v2290, 1e-05
      %v2299 = vadd.f32 %v2291, 1e-05
      %v2300 = vadd.f32 %v2292, 1e-05
      %v2301 = vadd.f32 %v2293, 1e-05
      %v2302 = vadd.f32 %v2294, 1e-05
      %v2303 = vadd.f32 %v2295, 1e-05
      %v2304 = vadd.f32 %v2296, 1e-05
      %v2305 = vadd.f32 %v2297, 1e-05
      %v2306 = vrsqrt.pop %v2298
      %v2307 = vrsqrt.pop %v2299
      %v2308 = vrsqrt.pop %v2300
      %v2309 = vrsqrt.pop %v2301
      %v2310 = vrsqrt.pop %v2302
      %v2311 = vrsqrt.pop %v2303
      %v2312 = vrsqrt.pop %v2304
      %v2313 = vrsqrt.pop %v2305
      %v2314 = vmul.f32 %v2250, %v2306
      %v2315 = vmul.f32 %v2251, %v2307
      %v2316 = vmul.f32 %v2252, %v2308
      %v2317 = vmul.f32 %v2253, %v2309
      %v2318 = vmul.f32 %v2254, %v2310
      %v2319 = vmul.f32 %v2255, %v2311
      %v2320 = vmul.f32 %v2256, %v2312
      %v2321 = vmul.f32 %v2257, %v2313
      %v2322 = vlaneseq
      %v2323 = vshrl.u32 %v2322, 7
      %v2324 = vsub.s32 0, %v2323
      %v2325 = vrot.slane %v442, %v2324
      %v2326 = vmul.f32 %v2314, %v2325
      %v2327 = vmul.f32 %v2315, %v2325
      %v2328 = vmul.f32 %v2316, %v2325
      %v2329 = vmul.f32 %v2317, %v2325
      %v2330 = vmul.f32 %v2318, %v2325
      %v2331 = vmul.f32 %v2319, %v2325
      %v2332 = vmul.f32 %v2320, %v2325
      %v2333 = vmul.f32 %v2321, %v2325
      %v2334 = vlaneseq
      %v2335 = vshrl.u32 %v2334, 7
      %v2336 = vsub.s32 0, %v2335
      %v2337 = vrot.slane %v443, %v2336
      %v2338 = vadd.f32 %v2326, %v2337
      %v2339 = vadd.f32 %v2327, %v2337
      %v2340 = vadd.f32 %v2328, %v2337
      %v2341 = vadd.f32 %v2329, %v2337
      %v2342 = vadd.f32 %v2330, %v2337
      %v2343 = vadd.f32 %v2331, %v2337
      %v2344 = vadd.f32 %v2332, %v2337
      %v2345 = vadd.f32 %v2333, %v2337
      %v2346 = vld [vmem:[%s4] sm:$0xf]
      %v2347 = vld [vmem:[%s4 + $0x4] sm:$0xf]
      %v2348 = vpack.c.bf16 %v2339, %v2338
      %v2349 = vpack.c.bf16 %v2341, %v2340
      %v2350 = vpack.c.bf16 %v2343, %v2342
      %v2351 = vpack.c.bf16 %v2345, %v2344
      %s2352 = scalar_lea.vmem %s4, 8
      %v2353 = vld [vmem:[%s2352] sm:$0xf]
      %v2354 = vld [vmem:[%s2352 + $0x4] sm:$0xf]
      %v2357 = vunpack.c.l.b16 %v2353
      %v2358 = vunpack.c.l.b16 %v2354
      %v2359 = vpack.c.b16 %v2358, %v2357
      %v2362 = vsel %vm454, %v2348, 0
      %v2365 = vsel %vm454, %v2349, 0
      %v2368 = vsel %vm454, %v2350, 0
      %v2371 = vsel %vm454, %v2351, 0
      %2373 = vmatprep.subr.bf16.mxu0 0
      %2374 = vmatpush1.bf16.msra.mxu0 %v2359
      %2375 = vmatprep.subr.bf16.mxu0 0
      %2376 = vmatpush1.bf16.msra.mxu0 0
      %2377 = vmatprep.subr.bf16.mxu0 0
      %2378 = vmatpush1.bf16.msra.mxu0 0
      %2379 = vmatprep.subr.bf16.mxu0 0
      %2380 = vmatpush1.bf16.msra.mxu0 0
      %2381 = vmatprep.subr.bf16.mxu0 0
      %2382 = vmatpush1.bf16.msra.mxu0 0
      %2383 = vmatprep.subr.bf16.mxu0 0
      %2384 = vmatpush1.bf16.msra.mxu0 0
      %2385 = vmatprep.subr.bf16.mxu0 0
      %2386 = vmatpush1.bf16.msra.mxu0 0
      %2387 = vmatprep.subr.bf16.mxu0 0
      %2388 = vmatpush1.bf16.msra.mxu0 0
      %2389 = vmatprep.subr.bf16.mxu0 0
      %2390 = vmatpush1.bf16.msra.mxu0 0
      %2391 = vmatprep.subr.bf16.mxu0 0
      %2392 = vmatpush1.bf16.msra.mxu0 0
      %2393 = vmatprep.subr.bf16.mxu0 0
      %2394 = vmatpush1.bf16.msra.mxu0 0
      %2395 = vmatprep.subr.bf16.mxu0 0
      %2396 = vmatpush1.bf16.msra.mxu0 0
      %2397 = vmatprep.subr.bf16.mxu0 0
      %2398 = vmatpush1.bf16.msra.mxu0 0
      %2399 = vmatprep.subr.bf16.mxu0 0
      %2400 = vmatpush1.bf16.msra.mxu0 0
      %2401 = vmatprep.subr.bf16.mxu0 0
      %2402 = vmatpush1.bf16.msra.mxu0 0
      %2403 = vmatprep.subr.bf16.mxu0 0
      %2404 = vmatpush1.bf16.msra.mxu0 0
      %2405 = vmatprep.mubr.bf16.mxu0 0
      %2406 = vmatmul.mubr.bf16.gmra.mrb[0].mxu0 %v2362
      %v2407 = vpop.f32.mrb[0].mxu0
      %v2408 = vadd.f32 0.0, %v2407
      %v2409 = vpop.f32.mrb[0].mxu0
      %v2410 = vpop.f32.mrb[0].mxu0
      %v2411 = vadd.f32 0.0, %v2410
      %v2412 = vpop.f32.mrb[0].mxu0
      %2413 = vmatprep.mubr.bf16.mxu0 0
      %2414 = vmatmul.mubr.bf16.gmra.mrb[0].mxu0 %v2365
      %v2415 = vpop.f32.mrb[0].mxu0
      %v2416 = vadd.f32 0.0, %v2415
      %v2417 = vpop.f32.mrb[0].mxu0
      %v2418 = vpop.f32.mrb[0].mxu0
      %v2419 = vadd.f32 0.0, %v2418
      %v2420 = vpop.f32.mrb[0].mxu0
      %2421 = vmatprep.mubr.bf16.mxu0 0
      %2422 = vmatmul.mubr.bf16.gmra.mrb[0].mxu0 %v2368
      %v2423 = vpop.f32.mrb[0].mxu0
      %v2424 = vadd.f32 0.0, %v2423
      %v2425 = vpop.f32.mrb[0].mxu0
      %v2426 = vpop.f32.mrb[0].mxu0
      %v2427 = vadd.f32 0.0, %v2426
      %v2428 = vpop.f32.mrb[0].mxu0
      %2429 = vmatprep.mubr.bf16.mxu0 0
      %2430 = vmatmul.mubr.bf16.gmra.mrb[0].mxu0 %v2371
      %v2431 = vpop.f32.mrb[0].mxu0
      %v2432 = vadd.f32 0.0, %v2431
      %v2433 = vpop.f32.mrb[0].mxu0
      %v2434 = vpop.f32.mrb[0].mxu0
      %v2435 = vadd.f32 0.0, %v2434
      %v2436 = vpop.f32.mrb[0].mxu0
      %2437 = vdwg.mxu0
      %v2440 = vunpack.c.l.b16 %v2346
      %v2441 = vunpack.c.l.b16 %v2347
      %v2442 = vpack.c.b16 %v2441, %v2440
      %2444 = vmatprep.subr.bf16.mxu0 0
      %2445 = vmatpush1.bf16.msra.mxu0 %v2442
      %2446 = vmatprep.subr.bf16.mxu0 0
      %2447 = vmatpush1.bf16.msra.mxu0 0
      %2448 = vmatprep.subr.bf16.mxu0 0
      %2449 = vmatpush1.bf16.msra.mxu0 0
      %2450 = vmatprep.subr.bf16.mxu0 0
      %2451 = vmatpush1.bf16.msra.mxu0 0
      %2452 = vmatprep.subr.bf16.mxu0 0
      %2453 = vmatpush1.bf16.msra.mxu0 0
      %2454 = vmatprep.subr.bf16.mxu0 0
      %2455 = vmatpush1.bf16.msra.mxu0 0
      %2456 = vmatprep.subr.bf16.mxu0 0
      %2457 = vmatpush1.bf16.msra.mxu0 0
      %2458 = vmatprep.subr.bf16.mxu0 0
      %2459 = vmatpush1.bf16.msra.mxu0 0
      %2460 = vmatprep.subr.bf16.mxu0 0
      %2461 = vmatpush1.bf16.msra.mxu0 0
      %2462 = vmatprep.subr.bf16.mxu0 0
      %2463 = vmatpush1.bf16.msra.mxu0 0
      %2464 = vmatprep.subr.bf16.mxu0 0
      %2465 = vmatpush1.bf16.msra.mxu0 0
      %2466 = vmatprep.subr.bf16.mxu0 0
      %2467 = vmatpush1.bf16.msra.mxu0 0
      %2468 = vmatprep.subr.bf16.mxu0 0
      %2469 = vmatpush1.bf16.msra.mxu0 0
      %2470 = vmatprep.subr.bf16.mxu0 0
      %2471 = vmatpush1.bf16.msra.mxu0 0
      %2472 = vmatprep.subr.bf16.mxu0 0
      %2473 = vmatpush1.bf16.msra.mxu0 0
      %2474 = vmatprep.subr.bf16.mxu0 0
      %2475 = vmatpush1.bf16.msra.mxu0 0
      %2476 = vmatprep.mubr.bf16.mxu0 0
      %2477 = vmatmul.mubr.bf16.gmra.mrb[0].mxu0 %v456
      %v2478 = vpop.f32.mrb[0].mxu0
      %v2479 = vadd.f32 %v2408, %v2478
      %v2480 = vpop.f32.mrb[0].mxu0
      %v2481 = vpop.f32.mrb[0].mxu0
      %v2482 = vadd.f32 %v2411, %v2481
      %v2483 = vpop.f32.mrb[0].mxu0
      %2484 = vmatprep.mubr.bf16.mxu0 0
      %2485 = vmatmul.mubr.bf16.gmra.mrb[0].mxu0 %v459
      %v2486 = vpop.f32.mrb[0].mxu0
      %v2487 = vadd.f32 %v2416, %v2486
      %v2488 = vpop.f32.mrb[0].mxu0
      %v2489 = vpop.f32.mrb[0].mxu0
      %v2490 = vadd.f32 %v2419, %v2489
      %v2491 = vpop.f32.mrb[0].mxu0
      %2492 = vmatprep.mubr.bf16.mxu0 0
      %2493 = vmatmul.mubr.bf16.gmra.mrb[0].mxu0 %v462
      %v2494 = vpop.f32.mrb[0].mxu0
      %v2495 = vadd.f32 %v2424, %v2494
      %v2496 = vpop.f32.mrb[0].mxu0
      %v2497 = vpop.f32.mrb[0].mxu0
      %v2498 = vadd.f32 %v2427, %v2497
      %v2499 = vpop.f32.mrb[0].mxu0
      %2500 = vmatprep.mubr.bf16.mxu0 0
      %2501 = vmatmul.mubr.bf16.gmra.mrb[0].mxu0 %v465
      %v2502 = vpop.f32.mrb[0].mxu0
      %v2503 = vadd.f32 %v2432, %v2502
      %v2504 = vpop.f32.mrb[0].mxu0
      %v2505 = vpop.f32.mrb[0].mxu0
      %v2506 = vadd.f32 %v2435, %v2505
      %v2507 = vpop.f32.mrb[0].mxu0
      %2508 = vdwg.mxu0
      %v2509 = vmax.f32 %v2479, 0.0
      %v2510 = vmax.f32 %v2482, 0.0
      %v2511 = vmax.f32 %v2487, 0.0
      %v2512 = vmax.f32 %v2490, 0.0
      %v2513 = vmax.f32 %v2495, 0.0
      %v2514 = vmax.f32 %v2498, 0.0
      %v2515 = vmax.f32 %v2503, 0.0
      %v2516 = vmax.f32 %v2506, 0.0
      %v2517 = vpack.c.bf16 %v2510, %v2509
      %v2518 = vpack.c.bf16 %v2512, %v2511
      %v2519 = vpack.c.bf16 %v2514, %v2513
      %v2520 = vpack.c.bf16 %v2516, %v2515
      %v2521 = vld [vmem:[%s5] sm:$0xf]
      %v2522 = vld [vmem:[%s5 + $0x4] sm:$0xf]
      %v2523 = vld [vmem:[%s5 + $0x8] sm:$0xf]
      %v2524 = vld [vmem:[%s5 + $0xc] sm:$0xf]
      %v2529 = vunpack.c.l.b16 %v2521
      %v2530 = vunpack.c.l.b16 %v2522
      %v2531 = vunpack.c.l.b16 %v2523
      %v2532 = vunpack.c.l.b16 %v2524
      %v2533 = vpack.c.b16 %v2530, %v2529
      %v2534 = vpack.c.b16 %v2532, %v2531
      %vm2537 = vcmask 261120
      %v2539 = vsel %vm2537, %v2517, 0
      %v2542 = vsel %vm2537, %v2518, 0
      %v2545 = vsel %vm2537, %v2519, 0
      %v2548 = vsel %vm2537, %v2520, 0
      %2550 = vmatprep.subr.bf16.mxu0 0
      %2551 = vmatpush1.bf16.msra.mxu0 %v2533
      %2552 = vmatprep.subr.bf16.mxu0 0
      %2553 = vmatpush1.bf16.msra.mxu0 %v2534
      %2554 = vmatprep.subr.bf16.mxu0 0
      %2555 = vmatpush1.bf16.msra.mxu0 0
      %2556 = vmatprep.subr.bf16.mxu0 0
      %2557 = vmatpush1.bf16.msra.mxu0 0
      %2558 = vmatprep.subr.bf16.mxu0 0
      %2559 = vmatpush1.bf16.msra.mxu0 0
      %2560 = vmatprep.subr.bf16.mxu0 0
      %2561 = vmatpush1.bf16.msra.mxu0 0
      %2562 = vmatprep.subr.bf16.mxu0 0
      %2563 = vmatpush1.bf16.msra.mxu0 0
      %2564 = vmatprep.subr.bf16.mxu0 0
      %2565 = vmatpush1.bf16.msra.mxu0 0
      %2566 = vmatprep.subr.bf16.mxu0 0
      %2567 = vmatpush1.bf16.msra.mxu0 0
      %2568 = vmatprep.subr.bf16.mxu0 0
      %2569 = vmatpush1.bf16.msra.mxu0 0
      %2570 = vmatprep.subr.bf16.mxu0 0
      %2571 = vmatpush1.bf16.msra.mxu0 0
      %2572 = vmatprep.subr.bf16.mxu0 0
      %2573 = vmatpush1.bf16.msra.mxu0 0
      %2574 = vmatprep.subr.bf16.mxu0 0
      %2575 = vmatpush1.bf16.msra.mxu0 0
      %2576 = vmatprep.subr.bf16.mxu0 0
      %2577 = vmatpush1.bf16.msra.mxu0 0
      %2578 = vmatprep.subr.bf16.mxu0 0
      %2579 = vmatpush1.bf16.msra.mxu0 0
      %2580 = vmatprep.subr.bf16.mxu0 0
      %2581 = vmatpush1.bf16.msra.mxu0 0
      %2582 = vmatprep.mubr.bf16.mxu0 0
      %2583 = vmatmul.mubr.bf16.gmra.mrb[0].mxu0 %v2539
      %v2584 = vpop.f32.mrb[0].mxu0
      %v2585 = vadd.f32 0.0, %v2584
      %v2586 = vpop.f32.mrb[0].mxu0
      %v2587 = vpop.f32.mrb[0].mxu0
      %v2588 = vadd.f32 0.0, %v2587
      %v2589 = vpop.f32.mrb[0].mxu0
      %2590 = vmatprep.mubr.bf16.mxu0 0
      %2591 = vmatmul.mubr.bf16.gmra.mrb[0].mxu0 %v2542
      %v2592 = vpop.f32.mrb[0].mxu0
      %v2593 = vadd.f32 0.0, %v2592
      %v2594 = vpop.f32.mrb[0].mxu0
      %v2595 = vpop.f32.mrb[0].mxu0
      %v2596 = vadd.f32 0.0, %v2595
      %v2597 = vpop.f32.mrb[0].mxu0
      %2598 = vmatprep.mubr.bf16.mxu0 0
      %2599 = vmatmul.mubr.bf16.gmra.mrb[0].mxu0 %v2545
      %v2600 = vpop.f32.mrb[0].mxu0
      %v2601 = vadd.f32 0.0, %v2600
      %v2602 = vpop.f32.mrb[0].mxu0
      %v2603 = vpop.f32.mrb[0].mxu0
      %v2604 = vadd.f32 0.0, %v2603
      %v2605 = vpop.f32.mrb[0].mxu0
      %2606 = vmatprep.mubr.bf16.mxu0 0
      %2607 = vmatmul.mubr.bf16.gmra.mrb[0].mxu0 %v2548
      %v2608 = vpop.f32.mrb[0].mxu0
      %v2609 = vadd.f32 0.0, %v2608
      %v2610 = vpop.f32.mrb[0].mxu0
      %v2611 = vpop.f32.mrb[0].mxu0
      %v2612 = vadd.f32 0.0, %v2611
      %v2613 = vpop.f32.mrb[0].mxu0
      %2614 = vdwg.mxu0
      %v2615 = vsel %vm454, %v2585, 0.0
      %2616 = vadd.xlane.f32.xlu0 %v2615
      %v2617 = vpop.xlane.xlu0 %2616
      %v2618 = vsel %vm454, %v2588, 0.0
      %2619 = vadd.xlane.f32.xlu0 %v2618
      %v2620 = vpop.xlane.xlu0 %2619
      %v2621 = vsel %vm454, %v2593, 0.0
      %2622 = vadd.xlane.f32.xlu0 %v2621
      %v2623 = vpop.xlane.xlu0 %2622
      %v2624 = vsel %vm454, %v2596, 0.0
      %2625 = vadd.xlane.f32.xlu0 %v2624
      %v2626 = vpop.xlane.xlu0 %2625
      %v2627 = vsel %vm454, %v2601, 0.0
      %2628 = vadd.xlane.f32.xlu0 %v2627
      %v2629 = vpop.xlane.xlu0 %2628
      %v2630 = vsel %vm454, %v2604, 0.0
      %2631 = vadd.xlane.f32.xlu0 %v2630
      %v2632 = vpop.xlane.xlu0 %2631
      %v2633 = vsel %vm454, %v2609, 0.0
      %2634 = vadd.xlane.f32.xlu0 %v2633
      %v2635 = vpop.xlane.xlu0 %2634
      %v2636 = vsel %vm454, %v2612, 0.0
      %2637 = vadd.xlane.f32.xlu0 %v2636
      %v2638 = vpop.xlane.xlu0 %2637
      %v2639 = vmul.f32 %v2617, %v2241
      %v2640 = vmul.f32 %v2620, %v2241
      %v2641 = vmul.f32 %v2623, %v2241
      %v2642 = vmul.f32 %v2626, %v2241
      %v2643 = vmul.f32 %v2629, %v2241
      %v2644 = vmul.f32 %v2632, %v2241
      %v2645 = vmul.f32 %v2635, %v2241
      %v2646 = vmul.f32 %v2638, %v2241
      %v2647 = vsub.f32 %v2585, %v2639
      %v2648 = vsub.f32 %v2588, %v2640
      %v2649 = vsub.f32 %v2593, %v2641
      %v2650 = vsub.f32 %v2596, %v2642
      %v2651 = vsub.f32 %v2601, %v2643
      %v2652 = vsub.f32 %v2604, %v2644
      %v2653 = vsub.f32 %v2609, %v2645
      %v2654 = vsub.f32 %v2612, %v2646
      %v2655 = vmul.f32 %v2647, %v2647
      %v2656 = vmul.f32 %v2648, %v2648
      %v2657 = vmul.f32 %v2649, %v2649
      %v2658 = vmul.f32 %v2650, %v2650
      %v2659 = vmul.f32 %v2651, %v2651
      %v2660 = vmul.f32 %v2652, %v2652
      %v2661 = vmul.f32 %v2653, %v2653
      %v2662 = vmul.f32 %v2654, %v2654
      %v2663 = vsel %vm454, %v2655, 0.0
      %2664 = vadd.xlane.f32.xlu0 %v2663
      %v2665 = vpop.xlane.xlu0 %2664
      %v2666 = vsel %vm454, %v2656, 0.0
      %2667 = vadd.xlane.f32.xlu0 %v2666
      %v2668 = vpop.xlane.xlu0 %2667
      %v2669 = vsel %vm454, %v2657, 0.0
      %2670 = vadd.xlane.f32.xlu0 %v2669
      %v2671 = vpop.xlane.xlu0 %2670
      %v2672 = vsel %vm454, %v2658, 0.0
      %2673 = vadd.xlane.f32.xlu0 %v2672
      %v2674 = vpop.xlane.xlu0 %2673
      %v2675 = vsel %vm454, %v2659, 0.0
      %2676 = vadd.xlane.f32.xlu0 %v2675
      %v2677 = vpop.xlane.xlu0 %2676
      %v2678 = vsel %vm454, %v2660, 0.0
      %2679 = vadd.xlane.f32.xlu0 %v2678
      %v2680 = vpop.xlane.xlu0 %2679
      %v2681 = vsel %vm454, %v2661, 0.0
      %2682 = vadd.xlane.f32.xlu0 %v2681
      %v2683 = vpop.xlane.xlu0 %2682
      %v2684 = vsel %vm454, %v2662, 0.0
      %2685 = vadd.xlane.f32.xlu0 %v2684
      %v2686 = vpop.xlane.xlu0 %2685
      %v2687 = vmul.f32 %v2665, %v2241
      %v2688 = vmul.f32 %v2668, %v2241
      %v2689 = vmul.f32 %v2671, %v2241
      %v2690 = vmul.f32 %v2674, %v2241
      %v2691 = vmul.f32 %v2677, %v2241
      %v2692 = vmul.f32 %v2680, %v2241
      %v2693 = vmul.f32 %v2683, %v2241
      %v2694 = vmul.f32 %v2686, %v2241
      %v2695 = vadd.f32 %v2687, 1e-05
      %v2696 = vadd.f32 %v2688, 1e-05
      %v2697 = vadd.f32 %v2689, 1e-05
      %v2698 = vadd.f32 %v2690, 1e-05
      %v2699 = vadd.f32 %v2691, 1e-05
      %v2700 = vadd.f32 %v2692, 1e-05
      %v2701 = vadd.f32 %v2693, 1e-05
      %v2702 = vadd.f32 %v2694, 1e-05
      %v2703 = vrsqrt.pop %v2695
      %v2704 = vrsqrt.pop %v2696
      %v2705 = vrsqrt.pop %v2697
      %v2706 = vrsqrt.pop %v2698
      %v2707 = vrsqrt.pop %v2699
      %v2708 = vrsqrt.pop %v2700
      %v2709 = vrsqrt.pop %v2701
      %v2710 = vrsqrt.pop %v2702
      %v2711 = vmul.f32 %v2647, %v2703
      %v2712 = vmul.f32 %v2648, %v2704
      %v2713 = vmul.f32 %v2649, %v2705
      %v2714 = vmul.f32 %v2650, %v2706
      %v2715 = vmul.f32 %v2651, %v2707
      %v2716 = vmul.f32 %v2652, %v2708
      %v2717 = vmul.f32 %v2653, %v2709
      %v2718 = vmul.f32 %v2654, %v2710
      %v2719 = vlaneseq
      %v2720 = vshrl.u32 %v2719, 7
      %v2721 = vsub.s32 0, %v2720
      %v2722 = vrot.slane %v444, %v2721
      %v2723 = vmul.f32 %v2711, %v2722
      %v2724 = vmul.f32 %v2712, %v2722
      %v2725 = vmul.f32 %v2713, %v2722
      %v2726 = vmul.f32 %v2714, %v2722
      %v2727 = vmul.f32 %v2715, %v2722
      %v2728 = vmul.f32 %v2716, %v2722
      %v2729 = vmul.f32 %v2717, %v2722
      %v2730 = vmul.f32 %v2718, %v2722
      %v2731 = vlaneseq
      %v2732 = vshrl.u32 %v2731, 7
      %v2733 = vsub.s32 0, %v2732
      %v2734 = vrot.slane %v445, %v2733
      %v2735 = vadd.f32 %v2723, %v2734
      %v2736 = vadd.f32 %v2724, %v2734
      %v2737 = vadd.f32 %v2725, %v2734
      %v2738 = vadd.f32 %v2726, %v2734
      %v2739 = vadd.f32 %v2727, %v2734
      %v2740 = vadd.f32 %v2728, %v2734
      %v2741 = vadd.f32 %v2729, %v2734
      %v2742 = vadd.f32 %v2730, %v2734
      %v2743 = vadd.f32 %v415, %v2735
      %v2744 = vadd.f32 %v416, %v2736
      %v2745 = vadd.f32 %v417, %v2737
      %v2746 = vadd.f32 %v418, %v2738
      %v2747 = vadd.f32 %v419, %v2739
      %v2748 = vadd.f32 %v420, %v2740
      %v2749 = vadd.f32 %v421, %v2741
      %v2750 = vadd.f32 %v422, %v2742
      %v2751 = vlaneseq
      %v2752 = vshrl.u32 %v2751, 7
      %v2753 = vadd.s32 %v2752, 8
      %v2754 = vcvt.s32.f32 %v2752
      %v2755 = vcvt.s32.f32 %v2753
      %v2756 = vsel %vm454, %v1297, -inf
      %v2757 = vsel %vm454, %v1298, -inf
      %v2758 = vmax.f32 %v2756, %v2757
      %v2759 = vrot.slane %v2758, 4
      %v2760 = vmax.f32 %v2758, %v2759
      %v2761 = vrot.slane %v2760, 2
      %v2762 = vmax.f32 %v2760, %v2761
      %v2763 = vrot.slane %v2762, 1
      %v2764 = vmax.f32 %v2762, %v2763
      %v2765 = vsel %vm454, %v1299, -inf
      %v2766 = vsel %vm454, %v1300, -inf
      %v2767 = vmax.f32 %v2765, %v2766
      %v2768 = vrot.slane %v2767, 4
      %v2769 = vmax.f32 %v2767, %v2768
      %v2770 = vrot.slane %v2769, 2
      %v2771 = vmax.f32 %v2769, %v2770
      %v2772 = vrot.slane %v2771, 1
      %v2773 = vmax.f32 %v2771, %v2772
      %v2774 = vsel %vm454, %v1301, -inf
      %v2775 = vsel %vm454, %v1302, -inf
      %v2776 = vmax.f32 %v2774, %v2775
      %v2777 = vrot.slane %v2776, 4
      %v2778 = vmax.f32 %v2776, %v2777
      %v2779 = vrot.slane %v2778, 2
      %v2780 = vmax.f32 %v2778, %v2779
      %v2781 = vrot.slane %v2780, 1
      %v2782 = vmax.f32 %v2780, %v2781
      %v2783 = vsel %vm454, %v1303, -inf
      %v2784 = vsel %vm454, %v1304, -inf
      %v2785 = vmax.f32 %v2783, %v2784
      %v2786 = vrot.slane %v2785, 4
      %v2787 = vmax.f32 %v2785, %v2786
      %v2788 = vrot.slane %v2787, 2
      %v2789 = vmax.f32 %v2787, %v2788
      %v2790 = vrot.slane %v2789, 1
      %v2791 = vmax.f32 %v2789, %v2790
      %vm2792 = vcmp.eq.f32.partialorder %v1297, %v2764
      %vm2793 = vcmp.eq.f32.partialorder %v1298, %v2764
      %vm2794 = vcmp.eq.f32.partialorder %v1299, %v2773
      %vm2795 = vcmp.eq.f32.partialorder %v1300, %v2773
      %vm2796 = vcmp.eq.f32.partialorder %v1301, %v2782
      %vm2797 = vcmp.eq.f32.partialorder %v1302, %v2782
      %vm2798 = vcmp.eq.f32.partialorder %v1303, %v2791
      %vm2799 = vcmp.eq.f32.partialorder %v1304, %v2791
      %v2800 = vsel %vm2792, %v2754, 16.0
      %v2801 = vsel %vm2793, %v2755, 16.0
      %v2802 = vsel %vm2794, %v2754, 16.0
      %v2803 = vsel %vm2795, %v2755, 16.0
      %v2804 = vsel %vm2796, %v2754, 16.0
      %v2805 = vsel %vm2797, %v2755, 16.0
      %v2806 = vsel %vm2798, %v2754, 16.0
      %v2807 = vsel %vm2799, %v2755, 16.0
      %v2808 = vsel %vm454, %v2800, inf
      %v2809 = vsel %vm454, %v2801, inf
      %v2810 = vmin.f32 %v2808, %v2809
      %v2811 = vrot.slane %v2810, 4
      %v2812 = vmin.f32 %v2810, %v2811
      %v2813 = vrot.slane %v2812, 2
      %v2814 = vmin.f32 %v2812, %v2813
      %v2815 = vrot.slane %v2814, 1
      %v2816 = vmin.f32 %v2814, %v2815
      %v2817 = vsel %vm454, %v2802, inf
      %v2818 = vsel %vm454, %v2803, inf
      %v2819 = vmin.f32 %v2817, %v2818
      %v2820 = vrot.slane %v2819, 4
      %v2821 = vmin.f32 %v2819, %v2820
      %v2822 = vrot.slane %v2821, 2
      %v2823 = vmin.f32 %v2821, %v2822
      %v2824 = vrot.slane %v2823, 1
      %v2825 = vmin.f32 %v2823, %v2824
      %v2826 = vsel %vm454, %v2804, inf
      %v2827 = vsel %vm454, %v2805, inf
      %v2828 = vmin.f32 %v2826, %v2827
      %v2829 = vrot.slane %v2828, 4
      %v2830 = vmin.f32 %v2828, %v2829
      %v2831 = vrot.slane %v2830, 2
      %v2832 = vmin.f32 %v2830, %v2831
      %v2833 = vrot.slane %v2832, 1
      %v2834 = vmin.f32 %v2832, %v2833
      %v2835 = vsel %vm454, %v2806, inf
      %v2836 = vsel %vm454, %v2807, inf
      %v2837 = vmin.f32 %v2835, %v2836
      %v2838 = vrot.slane %v2837, 4
      %v2839 = vmin.f32 %v2837, %v2838
      %v2840 = vrot.slane %v2839, 2
      %v2841 = vmin.f32 %v2839, %v2840
      %v2842 = vrot.slane %v2841, 1
      %v2843 = vmin.f32 %v2841, %v2842
      %vm2844 = vcmp.eq.f32.partialorder %v2754, %v2816
      %vm2845 = vcmp.eq.f32.partialorder %v2755, %v2816
      %vm2846 = vcmp.eq.f32.partialorder %v2754, %v2825
      %vm2847 = vcmp.eq.f32.partialorder %v2755, %v2825
      %vm2848 = vcmp.eq.f32.partialorder %v2754, %v2834
      %vm2849 = vcmp.eq.f32.partialorder %v2755, %v2834
      %vm2850 = vcmp.eq.f32.partialorder %v2754, %v2843
      %vm2851 = vcmp.eq.f32.partialorder %v2755, %v2843
      %v2852 = vsel %vm2844, -1e+30, %v1297
      %v2853 = vsel %vm2845, -1e+30, %v1298
      %v2854 = vsel %vm2846, -1e+30, %v1299
      %v2855 = vsel %vm2847, -1e+30, %v1300
      %v2856 = vsel %vm2848, -1e+30, %v1301
      %v2857 = vsel %vm2849, -1e+30, %v1302
      %v2858 = vsel %vm2850, -1e+30, %v1303
      %v2859 = vsel %vm2851, -1e+30, %v1304
      %v2860 = vsel %vm454, %v2852, -inf
      %v2861 = vsel %vm454, %v2853, -inf
      %v2862 = vmax.f32 %v2860, %v2861
      %v2863 = vrot.slane %v2862, 4
      %v2864 = vmax.f32 %v2862, %v2863
      %v2865 = vrot.slane %v2864, 2
      %v2866 = vmax.f32 %v2864, %v2865
      %v2867 = vrot.slane %v2866, 1
      %v2868 = vmax.f32 %v2866, %v2867
      %v2869 = vsel %vm454, %v2854, -inf
      %v2870 = vsel %vm454, %v2855, -inf
      %v2871 = vmax.f32 %v2869, %v2870
      %v2872 = vrot.slane %v2871, 4
      %v2873 = vmax.f32 %v2871, %v2872
      %v2874 = vrot.slane %v2873, 2
      %v2875 = vmax.f32 %v2873, %v2874
      %v2876 = vrot.slane %v2875, 1
      %v2877 = vmax.f32 %v2875, %v2876
      %v2878 = vsel %vm454, %v2856, -inf
      %v2879 = vsel %vm454, %v2857, -inf
      %v2880 = vmax.f32 %v2878, %v2879
      %v2881 = vrot.slane %v2880, 4
      %v2882 = vmax.f32 %v2880, %v2881
      %v2883 = vrot.slane %v2882, 2
      %v2884 = vmax.f32 %v2882, %v2883
      %v2885 = vrot.slane %v2884, 1
      %v2886 = vmax.f32 %v2884, %v2885
      %v2887 = vsel %vm454, %v2858, -inf
      %v2888 = vsel %vm454, %v2859, -inf
      %v2889 = vmax.f32 %v2887, %v2888
      %v2890 = vrot.slane %v2889, 4
      %v2891 = vmax.f32 %v2889, %v2890
      %v2892 = vrot.slane %v2891, 2
      %v2893 = vmax.f32 %v2891, %v2892
      %v2894 = vrot.slane %v2893, 1
      %v2895 = vmax.f32 %v2893, %v2894
      %vm2896 = vcmp.eq.f32.partialorder %v2852, %v2868
      %vm2897 = vcmp.eq.f32.partialorder %v2853, %v2868
      %vm2898 = vcmp.eq.f32.partialorder %v2854, %v2877
      %vm2899 = vcmp.eq.f32.partialorder %v2855, %v2877
      %vm2900 = vcmp.eq.f32.partialorder %v2856, %v2886
      %vm2901 = vcmp.eq.f32.partialorder %v2857, %v2886
      %vm2902 = vcmp.eq.f32.partialorder %v2858, %v2895
      %vm2903 = vcmp.eq.f32.partialorder %v2859, %v2895
      %v2904 = vsel %vm2896, %v2754, 16.0
      %v2905 = vsel %vm2897, %v2755, 16.0
      %v2906 = vsel %vm2898, %v2754, 16.0
      %v2907 = vsel %vm2899, %v2755, 16.0
      %v2908 = vsel %vm2900, %v2754, 16.0
      %v2909 = vsel %vm2901, %v2755, 16.0
      %v2910 = vsel %vm2902, %v2754, 16.0
      %v2911 = vsel %vm2903, %v2755, 16.0
      %v2912 = vsel %vm454, %v2904, inf
      %v2913 = vsel %vm454, %v2905, inf
      %v2914 = vmin.f32 %v2912, %v2913
      %v2915 = vrot.slane %v2914, 4
      %v2916 = vmin.f32 %v2914, %v2915
      %v2917 = vrot.slane %v2916, 2
      %v2918 = vmin.f32 %v2916, %v2917
      %v2919 = vrot.slane %v2918, 1
      %v2920 = vmin.f32 %v2918, %v2919
      %v2921 = vsel %vm454, %v2906, inf
      %v2922 = vsel %vm454, %v2907, inf
      %v2923 = vmin.f32 %v2921, %v2922
      %v2924 = vrot.slane %v2923, 4
      %v2925 = vmin.f32 %v2923, %v2924
      %v2926 = vrot.slane %v2925, 2
      %v2927 = vmin.f32 %v2925, %v2926
      %v2928 = vrot.slane %v2927, 1
      %v2929 = vmin.f32 %v2927, %v2928
      %v2930 = vsel %vm454, %v2908, inf
      %v2931 = vsel %vm454, %v2909, inf
      %v2932 = vmin.f32 %v2930, %v2931
      %v2933 = vrot.slane %v2932, 4
      %v2934 = vmin.f32 %v2932, %v2933
      %v2935 = vrot.slane %v2934, 2
      %v2936 = vmin.f32 %v2934, %v2935
      %v2937 = vrot.slane %v2936, 1
      %v2938 = vmin.f32 %v2936, %v2937
      %v2939 = vsel %vm454, %v2910, inf
      %v2940 = vsel %vm454, %v2911, inf
      %v2941 = vmin.f32 %v2939, %v2940
      %v2942 = vrot.slane %v2941, 4
      %v2943 = vmin.f32 %v2941, %v2942
      %v2944 = vrot.slane %v2943, 2
      %v2945 = vmin.f32 %v2943, %v2944
      %v2946 = vrot.slane %v2945, 1
      %v2947 = vmin.f32 %v2945, %v2946
      %vm2948 = vcmp.eq.f32.partialorder %v2754, %v2920
      %vm2949 = vcmp.eq.f32.partialorder %v2755, %v2920
      %vm2950 = vcmp.eq.f32.partialorder %v2754, %v2929
      %vm2951 = vcmp.eq.f32.partialorder %v2755, %v2929
      %vm2952 = vcmp.eq.f32.partialorder %v2754, %v2938
      %vm2953 = vcmp.eq.f32.partialorder %v2755, %v2938
      %vm2954 = vcmp.eq.f32.partialorder %v2754, %v2947
      %vm2955 = vcmp.eq.f32.partialorder %v2755, %v2947
      %v2956 = vsel %vm2948, -1e+30, %v2852
      %v2957 = vsel %vm2949, -1e+30, %v2853
      %v2958 = vsel %vm2950, -1e+30, %v2854
      %v2959 = vsel %vm2951, -1e+30, %v2855
      %v2960 = vsel %vm2952, -1e+30, %v2856
      %v2961 = vsel %vm2953, -1e+30, %v2857
      %v2962 = vsel %vm2954, -1e+30, %v2858
      %v2963 = vsel %vm2955, -1e+30, %v2859
      %v2964 = vsel %vm454, %v2956, -inf
      %v2965 = vsel %vm454, %v2957, -inf
      %v2966 = vmax.f32 %v2964, %v2965
      %v2967 = vrot.slane %v2966, 4
      %v2968 = vmax.f32 %v2966, %v2967
      %v2969 = vrot.slane %v2968, 2
      %v2970 = vmax.f32 %v2968, %v2969
      %v2971 = vrot.slane %v2970, 1
      %v2972 = vmax.f32 %v2970, %v2971
      %v2973 = vsel %vm454, %v2958, -inf
      %v2974 = vsel %vm454, %v2959, -inf
      %v2975 = vmax.f32 %v2973, %v2974
      %v2976 = vrot.slane %v2975, 4
      %v2977 = vmax.f32 %v2975, %v2976
      %v2978 = vrot.slane %v2977, 2
      %v2979 = vmax.f32 %v2977, %v2978
      %v2980 = vrot.slane %v2979, 1
      %v2981 = vmax.f32 %v2979, %v2980
      %v2982 = vsel %vm454, %v2960, -inf
      %v2983 = vsel %vm454, %v2961, -inf
      %v2984 = vmax.f32 %v2982, %v2983
      %v2985 = vrot.slane %v2984, 4
      %v2986 = vmax.f32 %v2984, %v2985
      %v2987 = vrot.slane %v2986, 2
      %v2988 = vmax.f32 %v2986, %v2987
      %v2989 = vrot.slane %v2988, 1
      %v2990 = vmax.f32 %v2988, %v2989
      %v2991 = vsel %vm454, %v2962, -inf
      %v2992 = vsel %vm454, %v2963, -inf
      %v2993 = vmax.f32 %v2991, %v2992
      %v2994 = vrot.slane %v2993, 4
      %v2995 = vmax.f32 %v2993, %v2994
      %v2996 = vrot.slane %v2995, 2
      %v2997 = vmax.f32 %v2995, %v2996
      %v2998 = vrot.slane %v2997, 1
      %v2999 = vmax.f32 %v2997, %v2998
      %vm3000 = vcmp.eq.f32.partialorder %v2956, %v2972
      %vm3001 = vcmp.eq.f32.partialorder %v2957, %v2972
      %vm3002 = vcmp.eq.f32.partialorder %v2958, %v2981
      %vm3003 = vcmp.eq.f32.partialorder %v2959, %v2981
      %vm3004 = vcmp.eq.f32.partialorder %v2960, %v2990
      %vm3005 = vcmp.eq.f32.partialorder %v2961, %v2990
      %vm3006 = vcmp.eq.f32.partialorder %v2962, %v2999
      %vm3007 = vcmp.eq.f32.partialorder %v2963, %v2999
      %v3008 = vsel %vm3000, %v2754, 16.0
      %v3009 = vsel %vm3001, %v2755, 16.0
      %v3010 = vsel %vm3002, %v2754, 16.0
      %v3011 = vsel %vm3003, %v2755, 16.0
      %v3012 = vsel %vm3004, %v2754, 16.0
      %v3013 = vsel %vm3005, %v2755, 16.0
      %v3014 = vsel %vm3006, %v2754, 16.0
      %v3015 = vsel %vm3007, %v2755, 16.0
      %v3016 = vsel %vm454, %v3008, inf
      %v3017 = vsel %vm454, %v3009, inf
      %v3018 = vmin.f32 %v3016, %v3017
      %v3019 = vrot.slane %v3018, 4
      %v3020 = vmin.f32 %v3018, %v3019
      %v3021 = vrot.slane %v3020, 2
      %v3022 = vmin.f32 %v3020, %v3021
      %v3023 = vrot.slane %v3022, 1
      %v3024 = vmin.f32 %v3022, %v3023
      %v3025 = vsel %vm454, %v3010, inf
      %v3026 = vsel %vm454, %v3011, inf
      %v3027 = vmin.f32 %v3025, %v3026
      %v3028 = vrot.slane %v3027, 4
      %v3029 = vmin.f32 %v3027, %v3028
      %v3030 = vrot.slane %v3029, 2
      %v3031 = vmin.f32 %v3029, %v3030
      %v3032 = vrot.slane %v3031, 1
      %v3033 = vmin.f32 %v3031, %v3032
      %v3034 = vsel %vm454, %v3012, inf
      %v3035 = vsel %vm454, %v3013, inf
      %v3036 = vmin.f32 %v3034, %v3035
      %v3037 = vrot.slane %v3036, 4
      %v3038 = vmin.f32 %v3036, %v3037
      %v3039 = vrot.slane %v3038, 2
      %v3040 = vmin.f32 %v3038, %v3039
      %v3041 = vrot.slane %v3040, 1
      %v3042 = vmin.f32 %v3040, %v3041
      %v3043 = vsel %vm454, %v3014, inf
      %v3044 = vsel %vm454, %v3015, inf
      %v3045 = vmin.f32 %v3043, %v3044
      %v3046 = vrot.slane %v3045, 4
      %v3047 = vmin.f32 %v3045, %v3046
      %v3048 = vrot.slane %v3047, 2
      %v3049 = vmin.f32 %v3047, %v3048
      %v3050 = vrot.slane %v3049, 1
      %v3051 = vmin.f32 %v3049, %v3050
      %vm3052 = vcmp.eq.f32.partialorder %v2754, %v3024
      %vm3053 = vcmp.eq.f32.partialorder %v2755, %v3024
      %vm3054 = vcmp.eq.f32.partialorder %v2754, %v3033
      %vm3055 = vcmp.eq.f32.partialorder %v2755, %v3033
      %vm3056 = vcmp.eq.f32.partialorder %v2754, %v3042
      %vm3057 = vcmp.eq.f32.partialorder %v2755, %v3042
      %vm3058 = vcmp.eq.f32.partialorder %v2754, %v3051
      %vm3059 = vcmp.eq.f32.partialorder %v2755, %v3051
      %v3060 = vsel %vm3052, -1e+30, %v2956
      %v3061 = vsel %vm3053, -1e+30, %v2957
      %v3062 = vsel %vm3054, -1e+30, %v2958
      %v3063 = vsel %vm3055, -1e+30, %v2959
      %v3064 = vsel %vm3056, -1e+30, %v2960
      %v3065 = vsel %vm3057, -1e+30, %v2961
      %v3066 = vsel %vm3058, -1e+30, %v2962
      %v3067 = vsel %vm3059, -1e+30, %v2963
      %v3068 = vsel %vm454, %v3060, -inf
      %v3069 = vsel %vm454, %v3061, -inf
      %v3070 = vmax.f32 %v3068, %v3069
      %v3071 = vrot.slane %v3070, 4
      %v3072 = vmax.f32 %v3070, %v3071
      %v3073 = vrot.slane %v3072, 2
      %v3074 = vmax.f32 %v3072, %v3073
      %v3075 = vrot.slane %v3074, 1
      %v3076 = vmax.f32 %v3074, %v3075
      %v3077 = vsel %vm454, %v3062, -inf
      %v3078 = vsel %vm454, %v3063, -inf
      %v3079 = vmax.f32 %v3077, %v3078
      %v3080 = vrot.slane %v3079, 4
      %v3081 = vmax.f32 %v3079, %v3080
      %v3082 = vrot.slane %v3081, 2
      %v3083 = vmax.f32 %v3081, %v3082
      %v3084 = vrot.slane %v3083, 1
      %v3085 = vmax.f32 %v3083, %v3084
      %v3086 = vsel %vm454, %v3064, -inf
      %v3087 = vsel %vm454, %v3065, -inf
      %v3088 = vmax.f32 %v3086, %v3087
      %v3089 = vrot.slane %v3088, 4
      %v3090 = vmax.f32 %v3088, %v3089
      %v3091 = vrot.slane %v3090, 2
      %v3092 = vmax.f32 %v3090, %v3091
      %v3093 = vrot.slane %v3092, 1
      %v3094 = vmax.f32 %v3092, %v3093
      %v3095 = vsel %vm454, %v3066, -inf
      %v3096 = vsel %vm454, %v3067, -inf
      %v3097 = vmax.f32 %v3095, %v3096
      %v3098 = vrot.slane %v3097, 4
      %v3099 = vmax.f32 %v3097, %v3098
      %v3100 = vrot.slane %v3099, 2
      %v3101 = vmax.f32 %v3099, %v3100
      %v3102 = vrot.slane %v3101, 1
      %v3103 = vmax.f32 %v3101, %v3102
      %vm3104 = vcmp.eq.f32.partialorder %v3060, %v3076
      %vm3105 = vcmp.eq.f32.partialorder %v3061, %v3076
      %vm3106 = vcmp.eq.f32.partialorder %v3062, %v3085
      %vm3107 = vcmp.eq.f32.partialorder %v3063, %v3085
      %vm3108 = vcmp.eq.f32.partialorder %v3064, %v3094
      %vm3109 = vcmp.eq.f32.partialorder %v3065, %v3094
      %vm3110 = vcmp.eq.f32.partialorder %v3066, %v3103
      %vm3111 = vcmp.eq.f32.partialorder %v3067, %v3103
      %v3112 = vsel %vm3104, %v2754, 16.0
      %v3113 = vsel %vm3105, %v2755, 16.0
      %v3114 = vsel %vm3106, %v2754, 16.0
      %v3115 = vsel %vm3107, %v2755, 16.0
      %v3116 = vsel %vm3108, %v2754, 16.0
      %v3117 = vsel %vm3109, %v2755, 16.0
      %v3118 = vsel %vm3110, %v2754, 16.0
      %v3119 = vsel %vm3111, %v2755, 16.0
      %v3120 = vsel %vm454, %v3112, inf
      %v3121 = vsel %vm454, %v3113, inf
      %v3122 = vmin.f32 %v3120, %v3121
      %v3123 = vrot.slane %v3122, 4
      %v3124 = vmin.f32 %v3122, %v3123
      %v3125 = vrot.slane %v3124, 2
      %v3126 = vmin.f32 %v3124, %v3125
      %v3127 = vrot.slane %v3126, 1
      %v3128 = vmin.f32 %v3126, %v3127
      %v3129 = vsel %vm454, %v3114, inf
      %v3130 = vsel %vm454, %v3115, inf
      %v3131 = vmin.f32 %v3129, %v3130
      %v3132 = vrot.slane %v3131, 4
      %v3133 = vmin.f32 %v3131, %v3132
      %v3134 = vrot.slane %v3133, 2
      %v3135 = vmin.f32 %v3133, %v3134
      %v3136 = vrot.slane %v3135, 1
      %v3137 = vmin.f32 %v3135, %v3136
      %v3138 = vsel %vm454, %v3116, inf
      %v3139 = vsel %vm454, %v3117, inf
      %v3140 = vmin.f32 %v3138, %v3139
      %v3141 = vrot.slane %v3140, 4
      %v3142 = vmin.f32 %v3140, %v3141
      %v3143 = vrot.slane %v3142, 2
      %v3144 = vmin.f32 %v3142, %v3143
      %v3145 = vrot.slane %v3144, 1
      %v3146 = vmin.f32 %v3144, %v3145
      %v3147 = vsel %vm454, %v3118, inf
      %v3148 = vsel %vm454, %v3119, inf
      %v3149 = vmin.f32 %v3147, %v3148
      %v3150 = vrot.slane %v3149, 4
      %v3151 = vmin.f32 %v3149, %v3150
      %v3152 = vrot.slane %v3151, 2
      %v3153 = vmin.f32 %v3151, %v3152
      %v3154 = vrot.slane %v3153, 1
      %v3155 = vmin.f32 %v3153, %v3154
      %vm3156 = vcmask 1040384
      %v3157 = vsel %vm3156, %v2816, %v2920
      %v3158 = vsel %vm3156, %v2825, %v2929
      %v3159 = vsel %vm3156, %v2834, %v2938
      %v3160 = vsel %vm3156, %v2843, %v2947
      %vm3161 = vcmask 1041408
      %v3162 = vsel %vm3161, %v3157, %v3024
      %v3163 = vsel %vm3161, %v3158, %v3033
      %v3164 = vsel %vm3161, %v3159, %v3042
      %v3165 = vsel %vm3161, %v3160, %v3051
      %vm3166 = vcmask 1042432
      %v3167 = vsel %vm3166, %v3162, %v3128
      %v3168 = vsel %vm3166, %v3163, %v3137
      %v3169 = vsel %vm3166, %v3164, %v3146
      %v3170 = vsel %vm3166, %v3165, %v3155
      %vm3171 = vcmp.eq.f32.partialorder %v3167, 0.0
      %vm3172 = vcmp.eq.f32.partialorder %v3168, 0.0
      %vm3173 = vcmp.eq.f32.partialorder %v3169, 0.0
      %vm3174 = vcmp.eq.f32.partialorder %v3170, 0.0
      %3176 = vset.pattern.permute.xlu0 0
      %3177 = vperm.xlu0 %3176, %v2743
      %v3178 = vpop.permute.xlu0 %3177
      %3181 = vset.pattern.permute.xlu0 0
      %3182 = vperm.xlu0 %3181, %v2745
      %v3183 = vpop.permute.xlu0 %3182
      %3186 = vset.pattern.permute.xlu0 0
      %3187 = vperm.xlu0 %3186, %v2747
      %v3188 = vpop.permute.xlu0 %3187
      %3191 = vset.pattern.permute.xlu0 0
      %3192 = vperm.xlu0 %3191, %v2749
      %v3193 = vpop.permute.xlu0 %3192
      %v3195 = vsel %vm3171, %v3178, 0.0
      %v3196 = vsel %vm3172, %v3183, 0.0
      %v3197 = vsel %vm3173, %v3188, 0.0
      %v3198 = vsel %vm3174, %v3193, 0.0
      %v3199 = vadd.f32 %v3195, 0.0
      %v3200 = vadd.f32 %v3196, 0.0
      %v3201 = vadd.f32 %v3197, 0.0
      %v3202 = vadd.f32 %v3198, 0.0
      %vm3203 = vcmp.eq.f32.partialorder %v3167, 1.0
      %vm3204 = vcmp.eq.f32.partialorder %v3168, 1.0
      %vm3205 = vcmp.eq.f32.partialorder %v3169, 1.0
      %vm3206 = vcmp.eq.f32.partialorder %v3170, 1.0
      %3207 = vset.pattern.permute.xlu0 1
      %3208 = vperm.xlu0 %3207, %v2743
      %v3209 = vpop.permute.xlu0 %3208
      %3211 = vset.pattern.permute.xlu0 1
      %3212 = vperm.xlu0 %3211, %v2745
      %v3213 = vpop.permute.xlu0 %3212
      %3215 = vset.pattern.permute.xlu0 1
      %3216 = vperm.xlu0 %3215, %v2747
      %v3217 = vpop.permute.xlu0 %3216
      %3219 = vset.pattern.permute.xlu0 1
      %3220 = vperm.xlu0 %3219, %v2749
      %v3221 = vpop.permute.xlu0 %3220
      %v3223 = vsel %vm3203, %v3209, 0.0
      %v3224 = vsel %vm3204, %v3213, 0.0
      %v3225 = vsel %vm3205, %v3217, 0.0
      %v3226 = vsel %vm3206, %v3221, 0.0
      %v3227 = vadd.f32 %v3199, %v3223
      %v3228 = vadd.f32 %v3200, %v3224
      %v3229 = vadd.f32 %v3201, %v3225
      %v3230 = vadd.f32 %v3202, %v3226
      %vm3231 = vcmp.eq.f32.partialorder %v3167, 2.0
      %vm3232 = vcmp.eq.f32.partialorder %v3168, 2.0
      %vm3233 = vcmp.eq.f32.partialorder %v3169, 2.0
      %vm3234 = vcmp.eq.f32.partialorder %v3170, 2.0
      %3235 = vset.pattern.permute.xlu0 2
      %3236 = vperm.xlu0 %3235, %v2743
      %v3237 = vpop.permute.xlu0 %3236
      %3239 = vset.pattern.permute.xlu0 2
      %3240 = vperm.xlu0 %3239, %v2745
      %v3241 = vpop.permute.xlu0 %3240
      %3243 = vset.pattern.permute.xlu0 2
      %3244 = vperm.xlu0 %3243, %v2747
      %v3245 = vpop.permute.xlu0 %3244
      %3247 = vset.pattern.permute.xlu0 2
      %3248 = vperm.xlu0 %3247, %v2749
      %v3249 = vpop.permute.xlu0 %3248
      %v3251 = vsel %vm3231, %v3237, 0.0
      %v3252 = vsel %vm3232, %v3241, 0.0
      %v3253 = vsel %vm3233, %v3245, 0.0
      %v3254 = vsel %vm3234, %v3249, 0.0
      %v3255 = vadd.f32 %v3227, %v3251
      %v3256 = vadd.f32 %v3228, %v3252
      %v3257 = vadd.f32 %v3229, %v3253
      %v3258 = vadd.f32 %v3230, %v3254
      %vm3259 = vcmp.eq.f32.partialorder %v3167, 3.0
      %vm3260 = vcmp.eq.f32.partialorder %v3168, 3.0
      %vm3261 = vcmp.eq.f32.partialorder %v3169, 3.0
      %vm3262 = vcmp.eq.f32.partialorder %v3170, 3.0
      %3263 = vset.pattern.permute.xlu0 3
      %3264 = vperm.xlu0 %3263, %v2743
      %v3265 = vpop.permute.xlu0 %3264
      %3267 = vset.pattern.permute.xlu0 3
      %3268 = vperm.xlu0 %3267, %v2745
      %v3269 = vpop.permute.xlu0 %3268
      %3271 = vset.pattern.permute.xlu0 3
      %3272 = vperm.xlu0 %3271, %v2747
      %v3273 = vpop.permute.xlu0 %3272
      %3275 = vset.pattern.permute.xlu0 3
      %3276 = vperm.xlu0 %3275, %v2749
      %v3277 = vpop.permute.xlu0 %3276
      %v3279 = vsel %vm3259, %v3265, 0.0
      %v3280 = vsel %vm3260, %v3269, 0.0
      %v3281 = vsel %vm3261, %v3273, 0.0
      %v3282 = vsel %vm3262, %v3277, 0.0
      %v3283 = vadd.f32 %v3255, %v3279
      %v3284 = vadd.f32 %v3256, %v3280
      %v3285 = vadd.f32 %v3257, %v3281
      %v3286 = vadd.f32 %v3258, %v3282
      %vm3287 = vcmp.eq.f32.partialorder %v3167, 4.0
      %vm3288 = vcmp.eq.f32.partialorder %v3168, 4.0
      %vm3289 = vcmp.eq.f32.partialorder %v3169, 4.0
      %vm3290 = vcmp.eq.f32.partialorder %v3170, 4.0
      %3291 = vset.pattern.permute.xlu0 4
      %3292 = vperm.xlu0 %3291, %v2743
      %v3293 = vpop.permute.xlu0 %3292
      %3295 = vset.pattern.permute.xlu0 4
      %3296 = vperm.xlu0 %3295, %v2745
      %v3297 = vpop.permute.xlu0 %3296
      %3299 = vset.pattern.permute.xlu0 4
      %3300 = vperm.xlu0 %3299, %v2747
      %v3301 = vpop.permute.xlu0 %3300
      %3303 = vset.pattern.permute.xlu0 4
      %3304 = vperm.xlu0 %3303, %v2749
      %v3305 = vpop.permute.xlu0 %3304
      %v3307 = vsel %vm3287, %v3293, 0.0
      %v3308 = vsel %vm3288, %v3297, 0.0
      %v3309 = vsel %vm3289, %v3301, 0.0
      %v3310 = vsel %vm3290, %v3305, 0.0
      %v3311 = vadd.f32 %v3283, %v3307
      %v3312 = vadd.f32 %v3284, %v3308
      %v3313 = vadd.f32 %v3285, %v3309
      %v3314 = vadd.f32 %v3286, %v3310
      %vm3315 = vcmp.eq.f32.partialorder %v3167, 5.0
      %vm3316 = vcmp.eq.f32.partialorder %v3168, 5.0
      %vm3317 = vcmp.eq.f32.partialorder %v3169, 5.0
      %vm3318 = vcmp.eq.f32.partialorder %v3170, 5.0
      %3319 = vset.pattern.permute.xlu0 5
      %3320 = vperm.xlu0 %3319, %v2743
      %v3321 = vpop.permute.xlu0 %3320
      %3323 = vset.pattern.permute.xlu0 5
      %3324 = vperm.xlu0 %3323, %v2745
      %v3325 = vpop.permute.xlu0 %3324
      %3327 = vset.pattern.permute.xlu0 5
      %3328 = vperm.xlu0 %3327, %v2747
      %v3329 = vpop.permute.xlu0 %3328
      %3331 = vset.pattern.permute.xlu0 5
      %3332 = vperm.xlu0 %3331, %v2749
      %v3333 = vpop.permute.xlu0 %3332
      %v3335 = vsel %vm3315, %v3321, 0.0
      %v3336 = vsel %vm3316, %v3325, 0.0
      %v3337 = vsel %vm3317, %v3329, 0.0
      %v3338 = vsel %vm3318, %v3333, 0.0
      %v3339 = vadd.f32 %v3311, %v3335
      %v3340 = vadd.f32 %v3312, %v3336
      %v3341 = vadd.f32 %v3313, %v3337
      %v3342 = vadd.f32 %v3314, %v3338
      %vm3343 = vcmp.eq.f32.partialorder %v3167, 6.0
      %vm3344 = vcmp.eq.f32.partialorder %v3168, 6.0
      %vm3345 = vcmp.eq.f32.partialorder %v3169, 6.0
      %vm3346 = vcmp.eq.f32.partialorder %v3170, 6.0
      %3347 = vset.pattern.permute.xlu0 6
      %3348 = vperm.xlu0 %3347, %v2743
      %v3349 = vpop.permute.xlu0 %3348
      %3351 = vset.pattern.permute.xlu0 6
      %3352 = vperm.xlu0 %3351, %v2745
      %v3353 = vpop.permute.xlu0 %3352
      %3355 = vset.pattern.permute.xlu0 6
      %3356 = vperm.xlu0 %3355, %v2747
      %v3357 = vpop.permute.xlu0 %3356
      %3359 = vset.pattern.permute.xlu0 6
      %3360 = vperm.xlu0 %3359, %v2749
      %v3361 = vpop.permute.xlu0 %3360
      %v3363 = vsel %vm3343, %v3349, 0.0
      %v3364 = vsel %vm3344, %v3353, 0.0
      %v3365 = vsel %vm3345, %v3357, 0.0
      %v3366 = vsel %vm3346, %v3361, 0.0
      %v3367 = vadd.f32 %v3339, %v3363
      %v3368 = vadd.f32 %v3340, %v3364
      %v3369 = vadd.f32 %v3341, %v3365
      %v3370 = vadd.f32 %v3342, %v3366
      %vm3371 = vcmp.eq.f32.partialorder %v3167, 7.0
      %vm3372 = vcmp.eq.f32.partialorder %v3168, 7.0
      %vm3373 = vcmp.eq.f32.partialorder %v3169, 7.0
      %vm3374 = vcmp.eq.f32.partialorder %v3170, 7.0
      %3375 = vset.pattern.permute.xlu0 7
      %3376 = vperm.xlu0 %3375, %v2743
      %v3377 = vpop.permute.xlu0 %3376
      %3379 = vset.pattern.permute.xlu0 7
      %3380 = vperm.xlu0 %3379, %v2745
      %v3381 = vpop.permute.xlu0 %3380
      %3383 = vset.pattern.permute.xlu0 7
      %3384 = vperm.xlu0 %3383, %v2747
      %v3385 = vpop.permute.xlu0 %3384
      %3387 = vset.pattern.permute.xlu0 7
      %3388 = vperm.xlu0 %3387, %v2749
      %v3389 = vpop.permute.xlu0 %3388
      %v3391 = vsel %vm3371, %v3377, 0.0
      %v3392 = vsel %vm3372, %v3381, 0.0
      %v3393 = vsel %vm3373, %v3385, 0.0
      %v3394 = vsel %vm3374, %v3389, 0.0
      %v3395 = vadd.f32 %v3367, %v3391
      %v3396 = vadd.f32 %v3368, %v3392
      %v3397 = vadd.f32 %v3369, %v3393
      %v3398 = vadd.f32 %v3370, %v3394
      %vm3399 = vcmp.eq.f32.partialorder %v3167, 8.0
      %vm3400 = vcmp.eq.f32.partialorder %v3168, 8.0
      %vm3401 = vcmp.eq.f32.partialorder %v3169, 8.0
      %vm3402 = vcmp.eq.f32.partialorder %v3170, 8.0
      %3403 = vset.pattern.permute.xlu0 8
      %3404 = vperm.xlu0 %3403, %v2743
      %v3405 = vpop.permute.xlu0 %3404
      %3407 = vset.pattern.permute.xlu0 8
      %3408 = vperm.xlu0 %3407, %v2745
      %v3409 = vpop.permute.xlu0 %3408
      %3411 = vset.pattern.permute.xlu0 8
      %3412 = vperm.xlu0 %3411, %v2747
      %v3413 = vpop.permute.xlu0 %3412
      %3415 = vset.pattern.permute.xlu0 8
      %3416 = vperm.xlu0 %3415, %v2749
      %v3417 = vpop.permute.xlu0 %3416
      %v3419 = vsel %vm3399, %v3405, 0.0
      %v3420 = vsel %vm3400, %v3409, 0.0
      %v3421 = vsel %vm3401, %v3413, 0.0
      %v3422 = vsel %vm3402, %v3417, 0.0
      %v3423 = vadd.f32 %v3395, %v3419
      %v3424 = vadd.f32 %v3396, %v3420
      %v3425 = vadd.f32 %v3397, %v3421
      %v3426 = vadd.f32 %v3398, %v3422
      %vm3427 = vcmp.eq.f32.partialorder %v3167, 9.0
      %vm3428 = vcmp.eq.f32.partialorder %v3168, 9.0
      %vm3429 = vcmp.eq.f32.partialorder %v3169, 9.0
      %vm3430 = vcmp.eq.f32.partialorder %v3170, 9.0
      %3431 = vset.pattern.permute.xlu0 9
      %3432 = vperm.xlu0 %3431, %v2743
      %v3433 = vpop.permute.xlu0 %3432
      %3435 = vset.pattern.permute.xlu0 9
      %3436 = vperm.xlu0 %3435, %v2745
      %v3437 = vpop.permute.xlu0 %3436
      %3439 = vset.pattern.permute.xlu0 9
      %3440 = vperm.xlu0 %3439, %v2747
      %v3441 = vpop.permute.xlu0 %3440
      %3443 = vset.pattern.permute.xlu0 9
      %3444 = vperm.xlu0 %3443, %v2749
      %v3445 = vpop.permute.xlu0 %3444
      %v3447 = vsel %vm3427, %v3433, 0.0
      %v3448 = vsel %vm3428, %v3437, 0.0
      %v3449 = vsel %vm3429, %v3441, 0.0
      %v3450 = vsel %vm3430, %v3445, 0.0
      %v3451 = vadd.f32 %v3423, %v3447
      %v3452 = vadd.f32 %v3424, %v3448
      %v3453 = vadd.f32 %v3425, %v3449
      %v3454 = vadd.f32 %v3426, %v3450
      %vm3455 = vcmp.eq.f32.partialorder %v3167, 10.0
      %vm3456 = vcmp.eq.f32.partialorder %v3168, 10.0
      %vm3457 = vcmp.eq.f32.partialorder %v3169, 10.0
      %vm3458 = vcmp.eq.f32.partialorder %v3170, 10.0
      %3459 = vset.pattern.permute.xlu0 10
      %3460 = vperm.xlu0 %3459, %v2743
      %v3461 = vpop.permute.xlu0 %3460
      %3463 = vset.pattern.permute.xlu0 10
      %3464 = vperm.xlu0 %3463, %v2745
      %v3465 = vpop.permute.xlu0 %3464
      %3467 = vset.pattern.permute.xlu0 10
      %3468 = vperm.xlu0 %3467, %v2747
      %v3469 = vpop.permute.xlu0 %3468
      %3471 = vset.pattern.permute.xlu0 10
      %3472 = vperm.xlu0 %3471, %v2749
      %v3473 = vpop.permute.xlu0 %3472
      %v3475 = vsel %vm3455, %v3461, 0.0
      %v3476 = vsel %vm3456, %v3465, 0.0
      %v3477 = vsel %vm3457, %v3469, 0.0
      %v3478 = vsel %vm3458, %v3473, 0.0
      %v3479 = vadd.f32 %v3451, %v3475
      %v3480 = vadd.f32 %v3452, %v3476
      %v3481 = vadd.f32 %v3453, %v3477
      %v3482 = vadd.f32 %v3454, %v3478
      %vm3483 = vcmp.eq.f32.partialorder %v3167, 11.0
      %vm3484 = vcmp.eq.f32.partialorder %v3168, 11.0
      %vm3485 = vcmp.eq.f32.partialorder %v3169, 11.0
      %vm3486 = vcmp.eq.f32.partialorder %v3170, 11.0
      %3487 = vset.pattern.permute.xlu0 11
      %3488 = vperm.xlu0 %3487, %v2743
      %v3489 = vpop.permute.xlu0 %3488
      %3491 = vset.pattern.permute.xlu0 11
      %3492 = vperm.xlu0 %3491, %v2745
      %v3493 = vpop.permute.xlu0 %3492
      %3495 = vset.pattern.permute.xlu0 11
      %3496 = vperm.xlu0 %3495, %v2747
      %v3497 = vpop.permute.xlu0 %3496
      %3499 = vset.pattern.permute.xlu0 11
      %3500 = vperm.xlu0 %3499, %v2749
      %v3501 = vpop.permute.xlu0 %3500
      %v3503 = vsel %vm3483, %v3489, 0.0
      %v3504 = vsel %vm3484, %v3493, 0.0
      %v3505 = vsel %vm3485, %v3497, 0.0
      %v3506 = vsel %vm3486, %v3501, 0.0
      %v3507 = vadd.f32 %v3479, %v3503
      %v3508 = vadd.f32 %v3480, %v3504
      %v3509 = vadd.f32 %v3481, %v3505
      %v3510 = vadd.f32 %v3482, %v3506
      %vm3511 = vcmp.eq.f32.partialorder %v3167, 12.0
      %vm3512 = vcmp.eq.f32.partialorder %v3168, 12.0
      %vm3513 = vcmp.eq.f32.partialorder %v3169, 12.0
      %vm3514 = vcmp.eq.f32.partialorder %v3170, 12.0
      %3515 = vset.pattern.permute.xlu0 12
      %3516 = vperm.xlu0 %3515, %v2743
      %v3517 = vpop.permute.xlu0 %3516
      %3519 = vset.pattern.permute.xlu0 12
      %3520 = vperm.xlu0 %3519, %v2745
      %v3521 = vpop.permute.xlu0 %3520
      %3523 = vset.pattern.permute.xlu0 12
      %3524 = vperm.xlu0 %3523, %v2747
      %v3525 = vpop.permute.xlu0 %3524
      %3527 = vset.pattern.permute.xlu0 12
      %3528 = vperm.xlu0 %3527, %v2749
      %v3529 = vpop.permute.xlu0 %3528
      %v3531 = vsel %vm3511, %v3517, 0.0
      %v3532 = vsel %vm3512, %v3521, 0.0
      %v3533 = vsel %vm3513, %v3525, 0.0
      %v3534 = vsel %vm3514, %v3529, 0.0
      %v3535 = vadd.f32 %v3507, %v3531
      %v3536 = vadd.f32 %v3508, %v3532
      %v3537 = vadd.f32 %v3509, %v3533
      %v3538 = vadd.f32 %v3510, %v3534
      %vm3539 = vcmp.eq.f32.partialorder %v3167, 13.0
      %vm3540 = vcmp.eq.f32.partialorder %v3168, 13.0
      %vm3541 = vcmp.eq.f32.partialorder %v3169, 13.0
      %vm3542 = vcmp.eq.f32.partialorder %v3170, 13.0
      %3543 = vset.pattern.permute.xlu0 13
      %3544 = vperm.xlu0 %3543, %v2743
      %v3545 = vpop.permute.xlu0 %3544
      %3547 = vset.pattern.permute.xlu0 13
      %3548 = vperm.xlu0 %3547, %v2745
      %v3549 = vpop.permute.xlu0 %3548
      %3551 = vset.pattern.permute.xlu0 13
      %3552 = vperm.xlu0 %3551, %v2747
      %v3553 = vpop.permute.xlu0 %3552
      %3555 = vset.pattern.permute.xlu0 13
      %3556 = vperm.xlu0 %3555, %v2749
      %v3557 = vpop.permute.xlu0 %3556
      %v3559 = vsel %vm3539, %v3545, 0.0
      %v3560 = vsel %vm3540, %v3549, 0.0
      %v3561 = vsel %vm3541, %v3553, 0.0
      %v3562 = vsel %vm3542, %v3557, 0.0
      %v3563 = vadd.f32 %v3535, %v3559
      %v3564 = vadd.f32 %v3536, %v3560
      %v3565 = vadd.f32 %v3537, %v3561
      %v3566 = vadd.f32 %v3538, %v3562
      %vm3567 = vcmp.eq.f32.partialorder %v3167, 14.0
      %vm3568 = vcmp.eq.f32.partialorder %v3168, 14.0
      %vm3569 = vcmp.eq.f32.partialorder %v3169, 14.0
      %vm3570 = vcmp.eq.f32.partialorder %v3170, 14.0
      %3571 = vset.pattern.permute.xlu0 14
      %3572 = vperm.xlu0 %3571, %v2743
      %v3573 = vpop.permute.xlu0 %3572
      %3575 = vset.pattern.permute.xlu0 14
      %3576 = vperm.xlu0 %3575, %v2745
      %v3577 = vpop.permute.xlu0 %3576
      %3579 = vset.pattern.permute.xlu0 14
      %3580 = vperm.xlu0 %3579, %v2747
      %v3581 = vpop.permute.xlu0 %3580
      %3583 = vset.pattern.permute.xlu0 14
      %3584 = vperm.xlu0 %3583, %v2749
      %v3585 = vpop.permute.xlu0 %3584
      %v3587 = vsel %vm3567, %v3573, 0.0
      %v3588 = vsel %vm3568, %v3577, 0.0
      %v3589 = vsel %vm3569, %v3581, 0.0
      %v3590 = vsel %vm3570, %v3585, 0.0
      %v3591 = vadd.f32 %v3563, %v3587
      %v3592 = vadd.f32 %v3564, %v3588
      %v3593 = vadd.f32 %v3565, %v3589
      %v3594 = vadd.f32 %v3566, %v3590
      %vm3595 = vcmp.eq.f32.partialorder %v3167, 15.0
      %vm3596 = vcmp.eq.f32.partialorder %v3168, 15.0
      %vm3597 = vcmp.eq.f32.partialorder %v3169, 15.0
      %vm3598 = vcmp.eq.f32.partialorder %v3170, 15.0
      %3599 = vset.pattern.permute.xlu0 15
      %3600 = vperm.xlu0 %3599, %v2743
      %v3601 = vpop.permute.xlu0 %3600
      %3603 = vset.pattern.permute.xlu0 15
      %3604 = vperm.xlu0 %3603, %v2745
      %v3605 = vpop.permute.xlu0 %3604
      %3607 = vset.pattern.permute.xlu0 15
      %3608 = vperm.xlu0 %3607, %v2747
      %v3609 = vpop.permute.xlu0 %3608
      %3611 = vset.pattern.permute.xlu0 15
      %3612 = vperm.xlu0 %3611, %v2749
      %v3613 = vpop.permute.xlu0 %3612
      %v3615 = vsel %vm3595, %v3601, 0.0
      %v3616 = vsel %vm3596, %v3605, 0.0
      %v3617 = vsel %vm3597, %v3609, 0.0
      %v3618 = vsel %vm3598, %v3613, 0.0
      %v3619 = vadd.f32 %v3591, %v3615
      %v3620 = vadd.f32 %v3592, %v3616
      %v3621 = vadd.f32 %v3593, %v3617
      %v3622 = vadd.f32 %v3594, %v3618
      %v3623 = vld [vmem:[%s11] sm:$0x1]
      %v3624 = vld [vmem:[%s11 + $0x1] sm:$0x1]
      %v3625 = vld [vmem:[%s11 + $0x2] sm:$0x1]
      %v3626 = vld [vmem:[%s11 + $0x3] sm:$0x1]
      %v3631 = vcombine.low %v3619, %v3620
      %v3632 = vcombine.low %v3621, %v3622
      %v3635 = vpack.c.bf16 %v3632, %v3631
      %v3636 = vld [vmem:[%s7] sm:$0xf]
      %v3637 = vld [vmem:[%s7 + $0x4] sm:$0xf]
      %v3640 = vunpack.c.l.b16 %v3636
      %v3641 = vunpack.c.l.b16 %v3637
      %v3642 = vpack.c.b16 %v3641, %v3640
      %v3645 = vsel %vm454, %v3635, 0
      %3647 = vmatprep.subr.bf16.mxu0 0
      %3648 = vmatpush1.bf16.msra.mxu0 %v3642
      %3649 = vmatprep.subr.bf16.mxu0 0
      %3650 = vmatpush1.bf16.msra.mxu0 0
      %3651 = vmatprep.subr.bf16.mxu0 0
      %3652 = vmatpush1.bf16.msra.mxu0 0
      %3653 = vmatprep.subr.bf16.mxu0 0
      %3654 = vmatpush1.bf16.msra.mxu0 0
      %3655 = vmatprep.subr.bf16.mxu0 0
      %3656 = vmatpush1.bf16.msra.mxu0 0
      %3657 = vmatprep.subr.bf16.mxu0 0
      %3658 = vmatpush1.bf16.msra.mxu0 0
      %3659 = vmatprep.subr.bf16.mxu0 0
      %3660 = vmatpush1.bf16.msra.mxu0 0
      %3661 = vmatprep.subr.bf16.mxu0 0
      %3662 = vmatpush1.bf16.msra.mxu0 0
      %3663 = vmatprep.subr.bf16.mxu0 0
      %3664 = vmatpush1.bf16.msra.mxu0 0
      %3665 = vmatprep.subr.bf16.mxu0 0
      %3666 = vmatpush1.bf16.msra.mxu0 0
      %3667 = vmatprep.subr.bf16.mxu0 0
      %3668 = vmatpush1.bf16.msra.mxu0 0
      %3669 = vmatprep.subr.bf16.mxu0 0
      %3670 = vmatpush1.bf16.msra.mxu0 0
      %3671 = vmatprep.subr.bf16.mxu0 0
      %3672 = vmatpush1.bf16.msra.mxu0 0
      %3673 = vmatprep.subr.bf16.mxu0 0
      %3674 = vmatpush1.bf16.msra.mxu0 0
      %3675 = vmatprep.subr.bf16.mxu0 0
      %3676 = vmatpush1.bf16.msra.mxu0 0
      %3677 = vmatprep.subr.bf16.mxu0 0
      %3678 = vmatpush1.bf16.msra.mxu0 0
      %3679 = vmatprep.mubr.bf16.mxu0 0
      %3680 = vmatmul.mubr.bf16.gmra.mrb[0].mxu0 %v3645
      %v3681 = vpop.f32.mrb[0].mxu0
      %v3682 = vadd.f32 0.0, %v3681
      %v3683 = vpop.f32.mrb[0].mxu0
      %v3684 = vpop.f32.mrb[0].mxu0
      %v3685 = vadd.f32 0.0, %v3684
      %v3686 = vpop.f32.mrb[0].mxu0
      %3687 = vdwg.mxu0
      %vm3688 = vcmp.gt.f32.partialorder %v3682, 0.0
      %vm3689 = vcmp.gt.f32.partialorder %v3685, 0.0
      %v3690 = vmin.f32 %v3682, 0.0
      %v3691 = vmin.f32 %v3685, 0.0
      %v3692 = vmul.f32 %v3690, 1.442695
      %v3693 = vpow.pop %v3692
      %v3694 = vmul.f32 %v3691, 1.442695
      %v3695 = vpow.pop %v3694
      %v3696 = vsub.f32 %v3693, 1.0
      %v3697 = vsub.f32 %v3695, 1.0
      %v3698 = vsel %vm3688, %v3682, %v3696
      %v3699 = vsel %vm3689, %v3685, %v3697
      %v3700 = vadd.f32 %v3698, 1.0
      %v3701 = vadd.f32 %v3699, 1.0
      %v3702 = vmul.f32 %v3682, 0.0625
      %v3703 = vmul.f32 %v3685, 0.0625
      %v3704 = vpack.c.bf16 %v3701, %v3700
      %v3705 = vpack.c.bf16 %v3703, %v3702
      %3707 = vrot.lane.b32.xlu0 %v3704, 112
      %v3708 = vpop.permute.xlu0 %3707
      %3710 = vxpose.xlu0.c.b16.start [1/8] %v3708, 128
      %3711 = vxpose.xlu0.c.b16.cont [2/8] 0, 128
      %3712 = vxpose.xlu0.c.b16.cont [3/8] 0, 128
      %3713 = vxpose.xlu0.c.b16.cont [4/8] 0, 128
      %3714 = vxpose.xlu0.c.b16.cont [5/8] 0, 128
      %3715 = vxpose.xlu0.c.b16.cont [6/8] 0, 128
      %3716 = vxpose.xlu0.c.b16.cont [7/8] 0, 128
      %3717 = vxpose.xlu0.c.b16.end [8/8] 0, 128
      %v3718 = vpop.trf.xlu0
      %v3719 = vpop.trf.xlu0
      %v3720 = vpop.trf.xlu0
      %v3721 = vpop.trf.xlu0
      %v3722 = vpop.trf.xlu0
      %v3723 = vpop.trf.xlu0
      %v3724 = vpop.trf.xlu0
      %v3725 = vpop.trf.xlu0
      %3727 = vrot.lane.b32.xlu0 %v3705, 96
      %v3728 = vpop.permute.xlu0 %3727
      %v3731 = vsel %vm454, %v3718, 0
      %3733 = vmatprep.subr.bf16.mxu0 0
      %3734 = vmatpush1.bf16.msra.mxu0 %v3728
      %3735 = vmatprep.subr.bf16.mxu0 0
      %3736 = vmatpush1.bf16.msra.mxu0 0
      %3737 = vmatprep.subr.bf16.mxu0 0
      %3738 = vmatpush1.bf16.msra.mxu0 0
      %3739 = vmatprep.subr.bf16.mxu0 0
      %3740 = vmatpush1.bf16.msra.mxu0 0
      %3741 = vmatprep.subr.bf16.mxu0 0
      %3742 = vmatpush1.bf16.msra.mxu0 0
      %3743 = vmatprep.subr.bf16.mxu0 0
      %3744 = vmatpush1.bf16.msra.mxu0 0
      %3745 = vmatprep.subr.bf16.mxu0 0
      %3746 = vmatpush1.bf16.msra.mxu0 0
      %3747 = vmatprep.subr.bf16.mxu0 0
      %3748 = vmatpush1.bf16.msra.mxu0 0
      %3749 = vmatprep.subr.bf16.mxu0 0
      %3750 = vmatpush1.bf16.msra.mxu0 0
      %3751 = vmatprep.subr.bf16.mxu0 0
      %3752 = vmatpush1.bf16.msra.mxu0 0
      %3753 = vmatprep.subr.bf16.mxu0 0
      %3754 = vmatpush1.bf16.msra.mxu0 0
      %3755 = vmatprep.subr.bf16.mxu0 0
      %3756 = vmatpush1.bf16.msra.mxu0 0
      %3757 = vmatprep.subr.bf16.mxu0 0
      %3758 = vmatpush1.bf16.msra.mxu0 0
      %3759 = vmatprep.subr.bf16.mxu0 0
      %3760 = vmatpush1.bf16.msra.mxu0 0
      %3761 = vmatprep.subr.bf16.mxu0 0
      %3762 = vmatpush1.bf16.msra.mxu0 0
      %3763 = vmatprep.subr.bf16.mxu0 0
      %3764 = vmatpush1.bf16.msra.mxu0 0
      %3765 = vmatprep.mubr.bf16.mxu0 0
      %3766 = vmatmul.mubr.bf16.gmra.mrb[0].mxu0 %v3731
      %v3767 = vpop.f32.mrb[0].mxu0
      %v3768 = vadd.f32 0.0, %v3767
      %v3769 = vpop.f32.mrb[0].mxu0
      %v3770 = vpop.f32.mrb[0].mxu0
      %v3771 = vpop.f32.mrb[0].mxu0
      %3772 = vdwg.mxu0
      %vm3773 = vcmask 195712
      %v3774 = vsel %vm3773, %v3700, 0.0
      %v3775 = vsel %vm3773, %v3701, 0.0
      %v3776 = vadd.f32 %v3774, %v3775
      %v3777 = vrot.slane %v3776, 4
      %v3778 = vadd.f32 %v3776, %v3777
      %v3779 = vrot.slane %v3778, 2
      %v3780 = vadd.f32 %v3778, %v3779
      %v3781 = vrot.slane %v3780, 1
      %v3782 = vadd.f32 %v3780, %v3781
      %3784 = vrot.lane.b32.xlu0 %v3782, 112
      %v3785 = vpop.permute.xlu0 %3784
      %v3787 = vmul.f32 %v3700, %v3785
      %v3788 = vmul.f32 %v3701, %v3785
      %v3789 = vsel %vm832, %v3787, 0.0
      %3790 = vadd.xlane.f32.xlu0 %v3789
      %v3791 = vpop.xlane.xlu0 %3790
      %v3792 = vsel %vm832, %v3788, 0.0
      %3793 = vadd.xlane.f32.xlu0 %v3792
      %v3794 = vpop.xlane.xlu0 %3793
      %v3795 = vadd.f32 %v3791, 1e-06
      %v3796 = vadd.f32 %v3794, 1e-06
      %v3797 = vrcp.pop %v3795
      %v3798 = vrcp.pop %v3796
      %v3799 = vpack.c.bf16 %v3768, %v3768
      %v3801 = vsel %vm832, %v3704, 0
      %vm3803 = vcmask 1043456
      %v3805 = vsel %vm3803, %v3799, 0
      %3807 = vmatprep.subr.bf16.mxu0 0
      %3808 = vmatpush1.bf16.msra.mxu0 %v3805
      %3809 = vmatprep.subr.bf16.mxu0 0
      %3810 = vmatpush1.bf16.msra.mxu0 0
      %3811 = vmatprep.subr.bf16.mxu0 0
      %3812 = vmatpush1.bf16.msra.mxu0 0
      %3813 = vmatprep.subr.bf16.mxu0 0
      %3814 = vmatpush1.bf16.msra.mxu0 0
      %3815 = vmatprep.subr.bf16.mxu0 0
      %3816 = vmatpush1.bf16.msra.mxu0 0
      %3817 = vmatprep.subr.bf16.mxu0 0
      %3818 = vmatpush1.bf16.msra.mxu0 0
      %3819 = vmatprep.subr.bf16.mxu0 0
      %3820 = vmatpush1.bf16.msra.mxu0 0
      %3821 = vmatprep.subr.bf16.mxu0 0
      %3822 = vmatpush1.bf16.msra.mxu0 0
      %3823 = vmatprep.subr.bf16.mxu0 0
      %3824 = vmatpush1.bf16.msra.mxu0 0
      %3825 = vmatprep.subr.bf16.mxu0 0
      %3826 = vmatpush1.bf16.msra.mxu0 0
      %3827 = vmatprep.subr.bf16.mxu0 0
      %3828 = vmatpush1.bf16.msra.mxu0 0
      %3829 = vmatprep.subr.bf16.mxu0 0
      %3830 = vmatpush1.bf16.msra.mxu0 0
      %3831 = vmatprep.subr.bf16.mxu0 0
      %3832 = vmatpush1.bf16.msra.mxu0 0
      %3833 = vmatprep.subr.bf16.mxu0 0
      %3834 = vmatpush1.bf16.msra.mxu0 0
      %3835 = vmatprep.subr.bf16.mxu0 0
      %3836 = vmatpush1.bf16.msra.mxu0 0
      %3837 = vmatprep.subr.bf16.mxu0 0
      %3838 = vmatpush1.bf16.msra.mxu0 0
      %3839 = vmatprep.mubr.bf16.mxu0 0
      %3840 = vmatmul.mubr.bf16.gmra.mrb[0].mxu0 %v3801
      %v3841 = vpop.f32.mrb[0].mxu0
      %v3842 = vadd.f32 0.0, %v3841
      %v3843 = vpop.f32.mrb[0].mxu0
      %v3844 = vpop.f32.mrb[0].mxu0
      %v3845 = vadd.f32 0.0, %v3844
      %v3846 = vpop.f32.mrb[0].mxu0
      %3847 = vdwg.mxu0
      %v3848 = vmul.f32 %v3842, %v3797
      %v3849 = vmul.f32 %v3845, %v3798
      %v3850 = vmul.f32 %v3848, 16.0
      %v3851 = vmul.f32 %v3849, 16.0
      %3852 = vrot.lane.b32.xlu0 %v3704, 104
      %v3853 = vpop.permute.xlu0 %3852
      %3855 = vxpose.xlu0.c.b16.start [1/8] %v3853, 128
      %3856 = vxpose.xlu0.c.b16.cont [2/8] 0, 128
      %3857 = vxpose.xlu0.c.b16.cont [3/8] 0, 128
      %3858 = vxpose.xlu0.c.b16.cont [4/8] 0, 128
      %3859 = vxpose.xlu0.c.b16.cont [5/8] 0, 128
      %3860 = vxpose.xlu0.c.b16.cont [6/8] 0, 128
      %3861 = vxpose.xlu0.c.b16.cont [7/8] 0, 128
      %3862 = vxpose.xlu0.c.b16.end [8/8] 0, 128
      %v3863 = vpop.trf.xlu0
      %v3864 = vpop.trf.xlu0
      %v3865 = vpop.trf.xlu0
      %v3866 = vpop.trf.xlu0
      %v3867 = vpop.trf.xlu0
      %v3868 = vpop.trf.xlu0
      %v3869 = vpop.trf.xlu0
      %v3870 = vpop.trf.xlu0
      %3871 = vrot.lane.b32.xlu0 %v3705, 88
      %v3872 = vpop.permute.xlu0 %3871
      %v3875 = vsel %vm454, %v3863, 0
      %3877 = vmatprep.subr.bf16.mxu0 0
      %3878 = vmatpush1.bf16.msra.mxu0 %v3872
      %3879 = vmatprep.subr.bf16.mxu0 0
      %3880 = vmatpush1.bf16.msra.mxu0 0
      %3881 = vmatprep.subr.bf16.mxu0 0
      %3882 = vmatpush1.bf16.msra.mxu0 0
      %3883 = vmatprep.subr.bf16.mxu0 0
      %3884 = vmatpush1.bf16.msra.mxu0 0
      %3885 = vmatprep.subr.bf16.mxu0 0
      %3886 = vmatpush1.bf16.msra.mxu0 0
      %3887 = vmatprep.subr.bf16.mxu0 0
      %3888 = vmatpush1.bf16.msra.mxu0 0
      %3889 = vmatprep.subr.bf16.mxu0 0
      %3890 = vmatpush1.bf16.msra.mxu0 0
      %3891 = vmatprep.subr.bf16.mxu0 0
      %3892 = vmatpush1.bf16.msra.mxu0 0
      %3893 = vmatprep.subr.bf16.mxu0 0
      %3894 = vmatpush1.bf16.msra.mxu0 0
      %3895 = vmatprep.subr.bf16.mxu0 0
      %3896 = vmatpush1.bf16.msra.mxu0 0
      %3897 = vmatprep.subr.bf16.mxu0 0
      %3898 = vmatpush1.bf16.msra.mxu0 0
      %3899 = vmatprep.subr.bf16.mxu0 0
      %3900 = vmatpush1.bf16.msra.mxu0 0
      %3901 = vmatprep.subr.bf16.mxu0 0
      %3902 = vmatpush1.bf16.msra.mxu0 0
      %3903 = vmatprep.subr.bf16.mxu0 0
      %3904 = vmatpush1.bf16.msra.mxu0 0
      %3905 = vmatprep.subr.bf16.mxu0 0
      %3906 = vmatpush1.bf16.msra.mxu0 0
      %3907 = vmatprep.subr.bf16.mxu0 0
      %3908 = vmatpush1.bf16.msra.mxu0 0
      %3909 = vmatprep.mubr.bf16.mxu0 0
      %3910 = vmatmul.mubr.bf16.gmra.mrb[0].mxu0 %v3875
      %v3911 = vpop.f32.mrb[0].mxu0
      %v3912 = vadd.f32 0.0, %v3911
      %v3913 = vpop.f32.mrb[0].mxu0
      %v3914 = vpop.f32.mrb[0].mxu0
      %v3915 = vpop.f32.mrb[0].mxu0
      %3916 = vdwg.mxu0
      %vm3917 = vcmask 261312
      %v3918 = vsel %vm3917, %v3700, 0.0
      %v3919 = vsel %vm3917, %v3701, 0.0
      %v3920 = vadd.f32 %v3918, %v3919
      %v3921 = vrot.slane %v3920, 4
      %v3922 = vadd.f32 %v3920, %v3921
      %v3923 = vrot.slane %v3922, 2
      %v3924 = vadd.f32 %v3922, %v3923
      %v3925 = vrot.slane %v3924, 1
      %v3926 = vadd.f32 %v3924, %v3925
      %3928 = vrot.lane.b32.xlu0 %v3926, 112
      %v3929 = vpop.permute.xlu0 %3928
      %v3931 = vmul.f32 %v3700, %v3929
      %v3932 = vmul.f32 %v3701, %v3929
      %3935 = vrot.lane.b32.xlu0 %v3931, 120
      %v3936 = vpop.permute.xlu0 %3935
      %3937 = vrot.lane.b32.xlu0 %v3932, 120
      %v3938 = vpop.permute.xlu0 %3937
      %v3941 = vsel %vm832, %v3936, 0.0
      %3942 = vadd.xlane.f32.xlu0 %v3941
      %v3943 = vpop.xlane.xlu0 %3942
      %v3944 = vsel %vm832, %v3938, 0.0
      %3945 = vadd.xlane.f32.xlu0 %v3944
      %v3946 = vpop.xlane.xlu0 %3945
      %v3947 = vadd.f32 %v3943, 1e-06
      %v3948 = vadd.f32 %v3946, 1e-06
      %v3949 = vrcp.pop %v3947
      %v3950 = vrcp.pop %v3948
      %v3951 = vpack.c.bf16 %v3912, %v3912
      %3952 = vrot.lane.b32.xlu0 %v3704, 120
      %v3953 = vpop.permute.xlu0 %3952
      %v3955 = vsel %vm832, %v3953, 0
      %v3958 = vsel %vm3803, %v3951, 0
      %3960 = vmatprep.subr.bf16.mxu0 0
      %3961 = vmatpush1.bf16.msra.mxu0 %v3958
      %3962 = vmatprep.subr.bf16.mxu0 0
      %3963 = vmatpush1.bf16.msra.mxu0 0
      %3964 = vmatprep.subr.bf16.mxu0 0
      %3965 = vmatpush1.bf16.msra.mxu0 0
      %3966 = vmatprep.subr.bf16.mxu0 0
      %3967 = vmatpush1.bf16.msra.mxu0 0
      %3968 = vmatprep.subr.bf16.mxu0 0
      %3969 = vmatpush1.bf16.msra.mxu0 0
      %3970 = vmatprep.subr.bf16.mxu0 0
      %3971 = vmatpush1.bf16.msra.mxu0 0
      %3972 = vmatprep.subr.bf16.mxu0 0
      %3973 = vmatpush1.bf16.msra.mxu0 0
      %3974 = vmatprep.subr.bf16.mxu0 0
      %3975 = vmatpush1.bf16.msra.mxu0 0
      %3976 = vmatprep.subr.bf16.mxu0 0
      %3977 = vmatpush1.bf16.msra.mxu0 0
      %3978 = vmatprep.subr.bf16.mxu0 0
      %3979 = vmatpush1.bf16.msra.mxu0 0
      %3980 = vmatprep.subr.bf16.mxu0 0
      %3981 = vmatpush1.bf16.msra.mxu0 0
      %3982 = vmatprep.subr.bf16.mxu0 0
      %3983 = vmatpush1.bf16.msra.mxu0 0
      %3984 = vmatprep.subr.bf16.mxu0 0
      %3985 = vmatpush1.bf16.msra.mxu0 0
      %3986 = vmatprep.subr.bf16.mxu0 0
      %3987 = vmatpush1.bf16.msra.mxu0 0
      %3988 = vmatprep.subr.bf16.mxu0 0
      %3989 = vmatpush1.bf16.msra.mxu0 0
      %3990 = vmatprep.subr.bf16.mxu0 0
      %3991 = vmatpush1.bf16.msra.mxu0 0
      %3992 = vmatprep.mubr.bf16.mxu0 0
      %3993 = vmatmul.mubr.bf16.gmra.mrb[0].mxu0 %v3955
      %v3994 = vpop.f32.mrb[0].mxu0
      %v3995 = vadd.f32 0.0, %v3994
      %v3996 = vpop.f32.mrb[0].mxu0
      %v3997 = vpop.f32.mrb[0].mxu0
      %v3998 = vadd.f32 0.0, %v3997
      %v3999 = vpop.f32.mrb[0].mxu0
      %4000 = vdwg.mxu0
      %v4001 = vmul.f32 %v3995, %v3949
      %v4002 = vmul.f32 %v3998, %v3950
      %v4003 = vmul.f32 %v4001, 16.0
      %v4004 = vmul.f32 %v4002, 16.0
      %4007 = vrot.lane.b32.xlu0 %v4003, 8
      %v4008 = vpop.permute.xlu0 %4007
      %4009 = vrot.lane.b32.xlu0 %v4004, 8
      %v4010 = vpop.permute.xlu0 %4009
      %v4013 = vsel %vm832, %v3850, %v4008
      %v4014 = vsel %vm832, %v3851, %v4010
      %v4015 = vpack.c.bf16 %v4014, %v4013
      %v4016 = vld [vmem:[%s8] sm:$0xf]
      %v4017 = vld [vmem:[%s8 + $0x4] sm:$0xf]
      %v4020 = vunpack.c.l.b16 %v4016
      %v4021 = vunpack.c.l.b16 %v4017
      %v4022 = vpack.c.b16 %v4021, %v4020
      %v4025 = vsel %vm454, %v4015, 0
      %4027 = vmatprep.subr.bf16.mxu0 0
      %4028 = vmatpush1.bf16.msra.mxu0 %v4022
      %4029 = vmatprep.subr.bf16.mxu0 0
      %4030 = vmatpush1.bf16.msra.mxu0 0
      %4031 = vmatprep.subr.bf16.mxu0 0
      %4032 = vmatpush1.bf16.msra.mxu0 0
      %4033 = vmatprep.subr.bf16.mxu0 0
      %4034 = vmatpush1.bf16.msra.mxu0 0
      %4035 = vmatprep.subr.bf16.mxu0 0
      %4036 = vmatpush1.bf16.msra.mxu0 0
      %4037 = vmatprep.subr.bf16.mxu0 0
      %4038 = vmatpush1.bf16.msra.mxu0 0
      %4039 = vmatprep.subr.bf16.mxu0 0
      %4040 = vmatpush1.bf16.msra.mxu0 0
      %4041 = vmatprep.subr.bf16.mxu0 0
      %4042 = vmatpush1.bf16.msra.mxu0 0
      %4043 = vmatprep.subr.bf16.mxu0 0
      %4044 = vmatpush1.bf16.msra.mxu0 0
      %4045 = vmatprep.subr.bf16.mxu0 0
      %4046 = vmatpush1.bf16.msra.mxu0 0
      %4047 = vmatprep.subr.bf16.mxu0 0
      %4048 = vmatpush1.bf16.msra.mxu0 0
      %4049 = vmatprep.subr.bf16.mxu0 0
      %4050 = vmatpush1.bf16.msra.mxu0 0
      %4051 = vmatprep.subr.bf16.mxu0 0
      %4052 = vmatpush1.bf16.msra.mxu0 0
      %4053 = vmatprep.subr.bf16.mxu0 0
      %4054 = vmatpush1.bf16.msra.mxu0 0
      %4055 = vmatprep.subr.bf16.mxu0 0
      %4056 = vmatpush1.bf16.msra.mxu0 0
      %4057 = vmatprep.subr.bf16.mxu0 0
      %4058 = vmatpush1.bf16.msra.mxu0 0
      %4059 = vmatprep.mubr.bf16.mxu0 0
      %4060 = vmatmul.mubr.bf16.gmra.mrb[0].mxu0 %v4025
      %v4061 = vpop.f32.mrb[0].mxu0
      %v4062 = vadd.f32 0.0, %v4061
      %v4063 = vpop.f32.mrb[0].mxu0
      %v4064 = vpop.f32.mrb[0].mxu0
      %v4065 = vadd.f32 0.0, %v4064
      %v4066 = vpop.f32.mrb[0].mxu0
      %4067 = vdwg.mxu0
      %v4068 = vsel %vm454, %v4062, 0.0
      %4069 = vadd.xlane.f32.xlu0 %v4068
      %v4070 = vpop.xlane.xlu0 %4069
      %v4071 = vsel %vm454, %v4065, 0.0
      %4072 = vadd.xlane.f32.xlu0 %v4071
      %v4073 = vpop.xlane.xlu0 %4072
      %v4074 = vmul.f32 %v4070, %v2241
      %v4075 = vmul.f32 %v4073, %v2241
      %v4076 = vsub.f32 %v4062, %v4074
      %v4077 = vsub.f32 %v4065, %v4075
      %v4078 = vmul.f32 %v4076, %v4076
      %v4079 = vmul.f32 %v4077, %v4077
      %v4080 = vsel %vm454, %v4078, 0.0
      %4081 = vadd.xlane.f32.xlu0 %v4080
      %v4082 = vpop.xlane.xlu0 %4081
      %v4083 = vsel %vm454, %v4079, 0.0
      %4084 = vadd.xlane.f32.xlu0 %v4083
      %v4085 = vpop.xlane.xlu0 %4084
      %v4086 = vmul.f32 %v4082, %v2241
      %v4087 = vmul.f32 %v4085, %v2241
      %v4088 = vadd.f32 %v4086, 1e-05
      %v4089 = vadd.f32 %v4087, 1e-05
      %v4090 = vrsqrt.pop %v4088
      %v4091 = vrsqrt.pop %v4089
      %v4092 = vmul.f32 %v4076, %v4090
      %v4093 = vmul.f32 %v4077, %v4091
      %v4094 = vlaneseq
      %v4095 = vshrl.u32 %v4094, 7
      %v4096 = vsub.s32 0, %v4095
      %v4097 = vrot.slane %v3623, %v4096
      %v4098 = vmul.f32 %v4092, %v4097
      %v4099 = vmul.f32 %v4093, %v4097
      %v4100 = vlaneseq
      %v4101 = vshrl.u32 %v4100, 7
      %v4102 = vsub.s32 0, %v4101
      %v4103 = vrot.slane %v3624, %v4102
      %v4104 = vadd.f32 %v4098, %v4103
      %v4105 = vadd.f32 %v4099, %v4103
      %v4106 = vld [vmem:[%s9] sm:$0xf]
      %v4107 = vld [vmem:[%s9 + $0x4] sm:$0xf]
      %v4108 = vpack.c.bf16 %v4105, %v4104
      %s4109 = scalar_lea.vmem %s9, 8
      %v4110 = vld [vmem:[%s4109] sm:$0xf]
      %v4111 = vld [vmem:[%s4109 + $0x4] sm:$0xf]
      %v4114 = vunpack.c.l.b16 %v4110
      %v4115 = vunpack.c.l.b16 %v4111
      %v4116 = vpack.c.b16 %v4115, %v4114
      %v4119 = vsel %vm454, %v4108, 0
      %4121 = vmatprep.subr.bf16.mxu0 0
      %4122 = vmatpush1.bf16.msra.mxu0 %v4116
      %4123 = vmatprep.subr.bf16.mxu0 0
      %4124 = vmatpush1.bf16.msra.mxu0 0
      %4125 = vmatprep.subr.bf16.mxu0 0
      %4126 = vmatpush1.bf16.msra.mxu0 0
      %4127 = vmatprep.subr.bf16.mxu0 0
      %4128 = vmatpush1.bf16.msra.mxu0 0
      %4129 = vmatprep.subr.bf16.mxu0 0
      %4130 = vmatpush1.bf16.msra.mxu0 0
      %4131 = vmatprep.subr.bf16.mxu0 0
      %4132 = vmatpush1.bf16.msra.mxu0 0
      %4133 = vmatprep.subr.bf16.mxu0 0
      %4134 = vmatpush1.bf16.msra.mxu0 0
      %4135 = vmatprep.subr.bf16.mxu0 0
      %4136 = vmatpush1.bf16.msra.mxu0 0
      %4137 = vmatprep.subr.bf16.mxu0 0
      %4138 = vmatpush1.bf16.msra.mxu0 0
      %4139 = vmatprep.subr.bf16.mxu0 0
      %4140 = vmatpush1.bf16.msra.mxu0 0
      %4141 = vmatprep.subr.bf16.mxu0 0
      %4142 = vmatpush1.bf16.msra.mxu0 0
      %4143 = vmatprep.subr.bf16.mxu0 0
      %4144 = vmatpush1.bf16.msra.mxu0 0
      %4145 = vmatprep.subr.bf16.mxu0 0
      %4146 = vmatpush1.bf16.msra.mxu0 0
      %4147 = vmatprep.subr.bf16.mxu0 0
      %4148 = vmatpush1.bf16.msra.mxu0 0
      %4149 = vmatprep.subr.bf16.mxu0 0
      %4150 = vmatpush1.bf16.msra.mxu0 0
      %4151 = vmatprep.subr.bf16.mxu0 0
      %4152 = vmatpush1.bf16.msra.mxu0 0
      %4153 = vmatprep.mubr.bf16.mxu0 0
      %4154 = vmatmul.mubr.bf16.gmra.mrb[0].mxu0 %v4119
      %v4155 = vpop.f32.mrb[0].mxu0
      %v4156 = vadd.f32 0.0, %v4155
      %v4157 = vpop.f32.mrb[0].mxu0
      %v4158 = vpop.f32.mrb[0].mxu0
      %v4159 = vadd.f32 0.0, %v4158
      %v4160 = vpop.f32.mrb[0].mxu0
      %4161 = vdwg.mxu0
      %v4164 = vunpack.c.l.b16 %v4106
      %v4165 = vunpack.c.l.b16 %v4107
      %v4166 = vpack.c.b16 %v4165, %v4164
      %4168 = vmatprep.subr.bf16.mxu0 0
      %4169 = vmatpush1.bf16.msra.mxu0 %v4166
      %4170 = vmatprep.subr.bf16.mxu0 0
      %4171 = vmatpush1.bf16.msra.mxu0 0
      %4172 = vmatprep.subr.bf16.mxu0 0
      %4173 = vmatpush1.bf16.msra.mxu0 0
      %4174 = vmatprep.subr.bf16.mxu0 0
      %4175 = vmatpush1.bf16.msra.mxu0 0
      %4176 = vmatprep.subr.bf16.mxu0 0
      %4177 = vmatpush1.bf16.msra.mxu0 0
      %4178 = vmatprep.subr.bf16.mxu0 0
      %4179 = vmatpush1.bf16.msra.mxu0 0
      %4180 = vmatprep.subr.bf16.mxu0 0
      %4181 = vmatpush1.bf16.msra.mxu0 0
      %4182 = vmatprep.subr.bf16.mxu0 0
      %4183 = vmatpush1.bf16.msra.mxu0 0
      %4184 = vmatprep.subr.bf16.mxu0 0
      %4185 = vmatpush1.bf16.msra.mxu0 0
      %4186 = vmatprep.subr.bf16.mxu0 0
      %4187 = vmatpush1.bf16.msra.mxu0 0
      %4188 = vmatprep.subr.bf16.mxu0 0
      %4189 = vmatpush1.bf16.msra.mxu0 0
      %4190 = vmatprep.subr.bf16.mxu0 0
      %4191 = vmatpush1.bf16.msra.mxu0 0
      %4192 = vmatprep.subr.bf16.mxu0 0
      %4193 = vmatpush1.bf16.msra.mxu0 0
      %4194 = vmatprep.subr.bf16.mxu0 0
      %4195 = vmatpush1.bf16.msra.mxu0 0
      %4196 = vmatprep.subr.bf16.mxu0 0
      %4197 = vmatpush1.bf16.msra.mxu0 0
      %4198 = vmatprep.subr.bf16.mxu0 0
      %4199 = vmatpush1.bf16.msra.mxu0 0
      %4200 = vmatprep.mubr.bf16.mxu0 0
      %4201 = vmatmul.mubr.bf16.gmra.mrb[0].mxu0 %v3645
      %v4202 = vpop.f32.mrb[0].mxu0
      %v4203 = vadd.f32 %v4156, %v4202
      %v4204 = vpop.f32.mrb[0].mxu0
      %v4205 = vpop.f32.mrb[0].mxu0
      %v4206 = vadd.f32 %v4159, %v4205
      %v4207 = vpop.f32.mrb[0].mxu0
      %4208 = vdwg.mxu0
      %v4209 = vmax.f32 %v4203, 0.0
      %v4210 = vmax.f32 %v4206, 0.0
      %v4211 = vpack.c.bf16 %v4210, %v4209
      %v4212 = vld [vmem:[%s10] sm:$0xf]
      %v4213 = vld [vmem:[%s10 + $0x4] sm:$0xf]
      %v4214 = vld [vmem:[%s10 + $0x8] sm:$0xf]
      %v4215 = vld [vmem:[%s10 + $0xc] sm:$0xf]
      %v4220 = vunpack.c.l.b16 %v4212
      %v4221 = vunpack.c.l.b16 %v4213
      %v4222 = vunpack.c.l.b16 %v4214
      %v4223 = vunpack.c.l.b16 %v4215
      %v4224 = vpack.c.b16 %v4221, %v4220
      %v4225 = vpack.c.b16 %v4223, %v4222
      %v4229 = vsel %vm2537, %v4211, 0
      %4231 = vmatprep.subr.bf16.mxu0 0
      %4232 = vmatpush1.bf16.msra.mxu0 %v4224
      %4233 = vmatprep.subr.bf16.mxu0 0
      %4234 = vmatpush1.bf16.msra.mxu0 %v4225
      %4235 = vmatprep.subr.bf16.mxu0 0
      %4236 = vmatpush1.bf16.msra.mxu0 0
      %4237 = vmatprep.subr.bf16.mxu0 0
      %4238 = vmatpush1.bf16.msra.mxu0 0
      %4239 = vmatprep.subr.bf16.mxu0 0
      %4240 = vmatpush1.bf16.msra.mxu0 0
      %4241 = vmatprep.subr.bf16.mxu0 0
      %4242 = vmatpush1.bf16.msra.mxu0 0
      %4243 = vmatprep.subr.bf16.mxu0 0
      %4244 = vmatpush1.bf16.msra.mxu0 0
      %4245 = vmatprep.subr.bf16.mxu0 0
      %4246 = vmatpush1.bf16.msra.mxu0 0
      %4247 = vmatprep.subr.bf16.mxu0 0
      %4248 = vmatpush1.bf16.msra.mxu0 0
      %4249 = vmatprep.subr.bf16.mxu0 0
      %4250 = vmatpush1.bf16.msra.mxu0 0
      %4251 = vmatprep.subr.bf16.mxu0 0
      %4252 = vmatpush1.bf16.msra.mxu0 0
      %4253 = vmatprep.subr.bf16.mxu0 0
      %4254 = vmatpush1.bf16.msra.mxu0 0
      %4255 = vmatprep.subr.bf16.mxu0 0
      %4256 = vmatpush1.bf16.msra.mxu0 0
      %4257 = vmatprep.subr.bf16.mxu0 0
      %4258 = vmatpush1.bf16.msra.mxu0 0
      %4259 = vmatprep.subr.bf16.mxu0 0
      %4260 = vmatpush1.bf16.msra.mxu0 0
      %4261 = vmatprep.subr.bf16.mxu0 0
      %4262 = vmatpush1.bf16.msra.mxu0 0
      %4263 = vmatprep.mubr.bf16.mxu0 0
      %4264 = vmatmul.mubr.bf16.gmra.mrb[0].mxu0 %v4229
      %v4265 = vpop.f32.mrb[0].mxu0
      %v4266 = vadd.f32 0.0, %v4265
      %v4267 = vpop.f32.mrb[0].mxu0
      %v4268 = vpop.f32.mrb[0].mxu0
      %v4269 = vadd.f32 0.0, %v4268
      %v4270 = vpop.f32.mrb[0].mxu0
      %4271 = vdwg.mxu0
      %v4272 = vsel %vm454, %v4266, 0.0
      %4273 = vadd.xlane.f32.xlu0 %v4272
      %v4274 = vpop.xlane.xlu0 %4273
      %v4275 = vsel %vm454, %v4269, 0.0
      %4276 = vadd.xlane.f32.xlu0 %v4275
      %v4277 = vpop.xlane.xlu0 %4276
      %v4278 = vmul.f32 %v4274, %v2241
      %v4279 = vmul.f32 %v4277, %v2241
      %v4280 = vsub.f32 %v4266, %v4278
      %v4281 = vsub.f32 %v4269, %v4279
      %v4282 = vmul.f32 %v4280, %v4280
      %v4283 = vmul.f32 %v4281, %v4281
      %v4284 = vsel %vm454, %v4282, 0.0
      %4285 = vadd.xlane.f32.xlu0 %v4284
      %v4286 = vpop.xlane.xlu0 %4285
      %v4287 = vsel %vm454, %v4283, 0.0
      %4288 = vadd.xlane.f32.xlu0 %v4287
      %v4289 = vpop.xlane.xlu0 %4288
      %v4290 = vmul.f32 %v4286, %v2241
      %v4291 = vmul.f32 %v4289, %v2241
      %v4292 = vadd.f32 %v4290, 1e-05
      %v4293 = vadd.f32 %v4291, 1e-05
      %v4294 = vrsqrt.pop %v4292
      %v4295 = vrsqrt.pop %v4293
      %v4296 = vmul.f32 %v4280, %v4294
      %v4297 = vmul.f32 %v4281, %v4295
      %v4298 = vlaneseq
      %v4299 = vshrl.u32 %v4298, 7
      %v4300 = vsub.s32 0, %v4299
      %v4301 = vrot.slane %v3625, %v4300
      %v4302 = vmul.f32 %v4296, %v4301
      %v4303 = vmul.f32 %v4297, %v4301
      %v4304 = vlaneseq
      %v4305 = vshrl.u32 %v4304, 7
      %v4306 = vsub.s32 0, %v4305
      %v4307 = vrot.slane %v3626, %v4306
      %v4308 = vadd.f32 %v4302, %v4307
      %v4309 = vadd.f32 %v4303, %v4307
      %v4312 = vcombine.high %v4308, %v4308
      %v4313 = vcombine.high %v4309, %v4309
      %v4316 = vadd.f32 %v3619, %v4308
      %v4317 = vadd.f32 %v3620, %v4312
      %v4318 = vadd.f32 %v3621, %v4309
      %v4319 = vadd.f32 %v3622, %v4313
      %v4320 = vlaneseq
      %v4321 = vshrl.u32 %v4320, 7
      %v4322 = vsub.s32 0, %v4321
      %v4323 = vrot.slane %v3167, %v4322
      %v4324 = vlaneseq
      %v4325 = vshrl.u32 %v4324, 7
      %v4326 = vsub.s32 0, %v4325
      %v4327 = vrot.slane %v3168, %v4326
      %v4328 = vlaneseq
      %v4329 = vshrl.u32 %v4328, 7
      %v4330 = vsub.s32 0, %v4329
      %v4331 = vrot.slane %v3169, %v4330
      %v4332 = vlaneseq
      %v4333 = vshrl.u32 %v4332, 7
      %v4334 = vsub.s32 0, %v4333
      %v4335 = vrot.slane %v3170, %v4334
      %vm4336 = vcmp.eq.f32.partialorder %v2754, %v4323
      %vm4337 = vcmp.eq.f32.partialorder %v2755, %v4323
      %vm4338 = vcmp.eq.f32.partialorder %v2754, %v4327
      %vm4339 = vcmp.eq.f32.partialorder %v2755, %v4327
      %vm4340 = vcmp.eq.f32.partialorder %v2754, %v4331
      %vm4341 = vcmp.eq.f32.partialorder %v2755, %v4331
      %vm4342 = vcmp.eq.f32.partialorder %v2754, %v4335
      %vm4343 = vcmp.eq.f32.partialorder %v2755, %v4335
      %v4344 = vlaneseq
      %v4345 = vshrl.u32 %v4344, 7
      %v4346 = vsub.s32 0, %v4345
      %v4347 = vrot.slane %v4316, %v4346
      %v4348 = vlaneseq
      %v4349 = vshrl.u32 %v4348, 7
      %v4350 = vsub.s32 0, %v4349
      %v4351 = vrot.slane %v4317, %v4350
      %v4352 = vlaneseq
      %v4353 = vshrl.u32 %v4352, 7
      %v4354 = vsub.s32 0, %v4353
      %v4355 = vrot.slane %v4318, %v4354
      %v4356 = vlaneseq
      %v4357 = vshrl.u32 %v4356, 7
      %v4358 = vsub.s32 0, %v4357
      %v4359 = vrot.slane %v4319, %v4358
      %v4360 = vsel %vm4336, %v4347, 0.0
      %v4361 = vsel %vm4337, %v4347, 0.0
      %v4362 = vsel %vm4338, %v4351, 0.0
      %v4363 = vsel %vm4339, %v4351, 0.0
      %v4364 = vsel %vm4340, %v4355, 0.0
      %v4365 = vsel %vm4341, %v4355, 0.0
      %v4366 = vsel %vm4342, %v4359, 0.0
      %v4367 = vsel %vm4343, %v4359, 0.0
      %v4368 = vadd.f32 %v2743, %v4360
      %v4369 = vadd.f32 %v2744, %v4361
      %v4370 = vadd.f32 %v2745, %v4362
      %v4371 = vadd.f32 %v2746, %v4363
      %v4372 = vadd.f32 %v2747, %v4364
      %v4373 = vadd.f32 %v2748, %v4365
      %v4374 = vadd.f32 %v2749, %v4366
      %v4375 = vadd.f32 %v2750, %v4367
      %v4376 = vlaneseq
      %v4377 = vshrl.u32 %v4376, 7
      %v4378 = vsub.s32 1, %v4377
      %v4379 = vrot.slane %v3167, %v4378
      %v4380 = vlaneseq
      %v4381 = vshrl.u32 %v4380, 7
      %v4382 = vsub.s32 1, %v4381
      %v4383 = vrot.slane %v3168, %v4382
      %v4384 = vlaneseq
      %v4385 = vshrl.u32 %v4384, 7
      %v4386 = vsub.s32 1, %v4385
      %v4387 = vrot.slane %v3169, %v4386
      %v4388 = vlaneseq
      %v4389 = vshrl.u32 %v4388, 7
      %v4390 = vsub.s32 1, %v4389
      %v4391 = vrot.slane %v3170, %v4390
      %vm4392 = vcmp.eq.f32.partialorder %v2754, %v4379
      %vm4393 = vcmp.eq.f32.partialorder %v2755, %v4379
      %vm4394 = vcmp.eq.f32.partialorder %v2754, %v4383
      %vm4395 = vcmp.eq.f32.partialorder %v2755, %v4383
      %vm4396 = vcmp.eq.f32.partialorder %v2754, %v4387
      %vm4397 = vcmp.eq.f32.partialorder %v2755, %v4387
      %vm4398 = vcmp.eq.f32.partialorder %v2754, %v4391
      %vm4399 = vcmp.eq.f32.partialorder %v2755, %v4391
      %v4400 = vlaneseq
      %v4401 = vshrl.u32 %v4400, 7
      %v4402 = vsub.s32 1, %v4401
      %v4403 = vrot.slane %v4316, %v4402
      %v4404 = vlaneseq
      %v4405 = vshrl.u32 %v4404, 7
      %v4406 = vsub.s32 1, %v4405
      %v4407 = vrot.slane %v4317, %v4406
      %v4408 = vlaneseq
      %v4409 = vshrl.u32 %v4408, 7
      %v4410 = vsub.s32 1, %v4409
      %v4411 = vrot.slane %v4318, %v4410
      %v4412 = vlaneseq
      %v4413 = vshrl.u32 %v4412, 7
      %v4414 = vsub.s32 1, %v4413
      %v4415 = vrot.slane %v4319, %v4414
      %v4416 = vsel %vm4392, %v4403, 0.0
      %v4417 = vsel %vm4393, %v4403, 0.0
      %v4418 = vsel %vm4394, %v4407, 0.0
      %v4419 = vsel %vm4395, %v4407, 0.0
      %v4420 = vsel %vm4396, %v4411, 0.0
      %v4421 = vsel %vm4397, %v4411, 0.0
      %v4422 = vsel %vm4398, %v4415, 0.0
      %v4423 = vsel %vm4399, %v4415, 0.0
      %v4424 = vadd.f32 %v4368, %v4416
      %v4425 = vadd.f32 %v4369, %v4417
      %v4426 = vadd.f32 %v4370, %v4418
      %v4427 = vadd.f32 %v4371, %v4419
      %v4428 = vadd.f32 %v4372, %v4420
      %v4429 = vadd.f32 %v4373, %v4421
      %v4430 = vadd.f32 %v4374, %v4422
      %v4431 = vadd.f32 %v4375, %v4423
      %v4432 = vlaneseq
      %v4433 = vshrl.u32 %v4432, 7
      %v4434 = vsub.s32 2, %v4433
      %v4435 = vrot.slane %v3167, %v4434
      %v4436 = vlaneseq
      %v4437 = vshrl.u32 %v4436, 7
      %v4438 = vsub.s32 2, %v4437
      %v4439 = vrot.slane %v3168, %v4438
      %v4440 = vlaneseq
      %v4441 = vshrl.u32 %v4440, 7
      %v4442 = vsub.s32 2, %v4441
      %v4443 = vrot.slane %v3169, %v4442
      %v4444 = vlaneseq
      %v4445 = vshrl.u32 %v4444, 7
      %v4446 = vsub.s32 2, %v4445
      %v4447 = vrot.slane %v3170, %v4446
      %vm4448 = vcmp.eq.f32.partialorder %v2754, %v4435
      %vm4449 = vcmp.eq.f32.partialorder %v2755, %v4435
      %vm4450 = vcmp.eq.f32.partialorder %v2754, %v4439
      %vm4451 = vcmp.eq.f32.partialorder %v2755, %v4439
      %vm4452 = vcmp.eq.f32.partialorder %v2754, %v4443
      %vm4453 = vcmp.eq.f32.partialorder %v2755, %v4443
      %vm4454 = vcmp.eq.f32.partialorder %v2754, %v4447
      %vm4455 = vcmp.eq.f32.partialorder %v2755, %v4447
      %v4456 = vlaneseq
      %v4457 = vshrl.u32 %v4456, 7
      %v4458 = vsub.s32 2, %v4457
      %v4459 = vrot.slane %v4316, %v4458
      %v4460 = vlaneseq
      %v4461 = vshrl.u32 %v4460, 7
      %v4462 = vsub.s32 2, %v4461
      %v4463 = vrot.slane %v4317, %v4462
      %v4464 = vlaneseq
      %v4465 = vshrl.u32 %v4464, 7
      %v4466 = vsub.s32 2, %v4465
      %v4467 = vrot.slane %v4318, %v4466
      %v4468 = vlaneseq
      %v4469 = vshrl.u32 %v4468, 7
      %v4470 = vsub.s32 2, %v4469
      %v4471 = vrot.slane %v4319, %v4470
      %v4472 = vsel %vm4448, %v4459, 0.0
      %v4473 = vsel %vm4449, %v4459, 0.0
      %v4474 = vsel %vm4450, %v4463, 0.0
      %v4475 = vsel %vm4451, %v4463, 0.0
      %v4476 = vsel %vm4452, %v4467, 0.0
      %v4477 = vsel %vm4453, %v4467, 0.0
      %v4478 = vsel %vm4454, %v4471, 0.0
      %v4479 = vsel %vm4455, %v4471, 0.0
      %v4480 = vadd.f32 %v4424, %v4472
      %v4481 = vadd.f32 %v4425, %v4473
      %v4482 = vadd.f32 %v4426, %v4474
      %v4483 = vadd.f32 %v4427, %v4475
      %v4484 = vadd.f32 %v4428, %v4476
      %v4485 = vadd.f32 %v4429, %v4477
      %v4486 = vadd.f32 %v4430, %v4478
      %v4487 = vadd.f32 %v4431, %v4479
      %v4488 = vlaneseq
      %v4489 = vshrl.u32 %v4488, 7
      %v4490 = vsub.s32 3, %v4489
      %v4491 = vrot.slane %v3167, %v4490
      %v4492 = vlaneseq
      %v4493 = vshrl.u32 %v4492, 7
      %v4494 = vsub.s32 3, %v4493
      %v4495 = vrot.slane %v3168, %v4494
      %v4496 = vlaneseq
      %v4497 = vshrl.u32 %v4496, 7
      %v4498 = vsub.s32 3, %v4497
      %v4499 = vrot.slane %v3169, %v4498
      %v4500 = vlaneseq
      %v4501 = vshrl.u32 %v4500, 7
      %v4502 = vsub.s32 3, %v4501
      %v4503 = vrot.slane %v3170, %v4502
      %vm4504 = vcmp.eq.f32.partialorder %v2754, %v4491
      %vm4505 = vcmp.eq.f32.partialorder %v2755, %v4491
      %vm4506 = vcmp.eq.f32.partialorder %v2754, %v4495
      %vm4507 = vcmp.eq.f32.partialorder %v2755, %v4495
      %vm4508 = vcmp.eq.f32.partialorder %v2754, %v4499
      %vm4509 = vcmp.eq.f32.partialorder %v2755, %v4499
      %vm4510 = vcmp.eq.f32.partialorder %v2754, %v4503
      %vm4511 = vcmp.eq.f32.partialorder %v2755, %v4503
      %v4512 = vlaneseq
      %v4513 = vshrl.u32 %v4512, 7
      %v4514 = vsub.s32 3, %v4513
      %v4515 = vrot.slane %v4316, %v4514
      %v4516 = vlaneseq
      %v4517 = vshrl.u32 %v4516, 7
      %v4518 = vsub.s32 3, %v4517
      %v4519 = vrot.slane %v4317, %v4518
      %v4520 = vlaneseq
      %v4521 = vshrl.u32 %v4520, 7
      %v4522 = vsub.s32 3, %v4521
      %v4523 = vrot.slane %v4318, %v4522
      %v4524 = vlaneseq
      %v4525 = vshrl.u32 %v4524, 7
      %v4526 = vsub.s32 3, %v4525
      %v4527 = vrot.slane %v4319, %v4526
      %v4528 = vsel %vm4504, %v4515, 0.0
      %v4529 = vsel %vm4505, %v4515, 0.0
      %v4530 = vsel %vm4506, %v4519, 0.0
      %v4531 = vsel %vm4507, %v4519, 0.0
      %v4532 = vsel %vm4508, %v4523, 0.0
      %v4533 = vsel %vm4509, %v4523, 0.0
      %v4534 = vsel %vm4510, %v4527, 0.0
      %v4535 = vsel %vm4511, %v4527, 0.0
      %v4536 = vadd.f32 %v4480, %v4528
      %v4537 = vadd.f32 %v4481, %v4529
      %v4538 = vadd.f32 %v4482, %v4530
      %v4539 = vadd.f32 %v4483, %v4531
      %v4540 = vadd.f32 %v4484, %v4532
      %v4541 = vadd.f32 %v4485, %v4533
      %v4542 = vadd.f32 %v4486, %v4534
      %v4543 = vadd.f32 %v4487, %v4535
      %4544 = vst.msk [vmem:[%s413] sm:$0xff] %vm454, %v4536
      %4545 = vst.msk [vmem:[%s413 + $0x8] sm:$0xff] %vm454, %v4537
      %4546 = vst.msk [vmem:[%s413 + $0x10] sm:$0xff] %vm454, %v4538
      %4547 = vst.msk [vmem:[%s413 + $0x18] sm:$0xff] %vm454, %v4539
      %4548 = vst.msk [vmem:[%s413 + $0x20] sm:$0xff] %vm454, %v4540
      %4549 = vst.msk [vmem:[%s413 + $0x28] sm:$0xff] %vm454, %v4541
      %4550 = vst.msk [vmem:[%s413 + $0x30] sm:$0xff] %vm454, %v4542
      %4551 = vst.msk [vmem:[%s413 + $0x38] sm:$0xff] %vm454, %v4543
      %p4552 = scmp.lt.s32.totalorder %s23, 1
      %s4553 = scalar_select %p4552, %s23, 1
      %s4554 = smul.addr %s4553, 8
      %s4555 = smul.addr %s4554, 8
      %s4556 = scalar_lea.vmem %s12, %s4555
      // Predicated region
      $region69: #{window_topk_attention.1} parent=67 // pred_check
        %p4557 = pneg %p298
      $region70: #{window_topk_attention.1} parent=67 // pred_check_branch
        %4559 = sbr.rel (%p4557) target = $region72
      $region71: #{window_topk_attention.1} parent=67 // pred_region
        _
      $region72: #{window_topk_attention.1} parent=67 // pred_fallthru
        _
    $region68: #{window_topk_attention.1} parent=5 // pred_fallthru
      _
    %p4560 = scmp.le.s32.totalorder 2, %s18
    // Predicated region
    $region73: #{window_topk_attention.1} parent=5 // pred_check
      %p4561 = pneg %p4560
    $region74: #{window_topk_attention.1} parent=5 // pred_check_branch
      %4563 = sbr.rel (%p4561) target = $region76
    $region75: #{window_topk_attention.1} parent=5 // pred_region
      %s4564 = ssub.s32 %s18, 2
      // Predicated region
      $region77: #{window_topk_attention.1} parent=75 // pred_check
        %p4565 = pneg %p304
      $region78: #{window_topk_attention.1} parent=75 // pred_check_branch
        %4567 = sbr.rel (%p4565) target = $region80
      $region79: #{window_topk_attention.1} parent=75 // pred_region
        %p4568 = scmp.lt.s32.totalorder %s24, 1
        %s4569 = scalar_select %p4568, %s24, 1
        %s4570 = smul.addr %s4569, 8
        %s4571 = smul.addr %s4570, 8
        %s4572 = scalar_lea.vmem %s12, %s4571
      $region80: #{window_topk_attention.1} parent=75 // pred_fallthru
        _
    $region76: #{window_topk_attention.1} parent=5 // pred_fallthru
      _
  $region6: #{window_topk_attention.1} parent=0 // loop_footer
    %s22 = sadd.s32 1, %s18
  $region7: #{window_topk_attention.1} parent=0 // loop_footer_branch
    %17 = sbr.rel target = $region3
  $region8: #{window_topk_attention.1} parent=0 // loop_exit
    _

</llo_original>
